<compile_context>
chip_gen: v5e
topology: v5e:2x2
jax: 0.10.0
libtpu: 0.0.40
codegen_flags: <defaults>
</compile_context>

<pallas_src>
import math

import numpy as np
import jax
import jax.numpy as jnp
from jax.experimental import pallas as pl
from jax.experimental.pallas import tpu as pltpu


# ----------------------------------------------------------------------------
# Fused Pallas kernel: qkv linear -> (self + mutual) attention -> projection
# ----------------------------------------------------------------------------
def _make_fused_kernel(WG, N, C, num_heads, head_dim, mut_attn, has_bias,
                       compute_dtype):
    nh, hd = num_heads, head_dim
    Nh = N // 2
    rows = WG * N
    approx = compute_dtype != jnp.float32   # exact reciprocal in pure-f32 mode

    def _softmax(s):                         # s: f32 (..., n, m)
        s = s - jnp.max(s, axis=-1, keepdims=True)
        p = jnp.exp(s)
        return p * pl.reciprocal(jnp.sum(p, axis=-1, keepdims=True), approx=approx)

    def kernel(*refs):
        idx = 0
        x_ref = refs[idx]; idx += 1
        rpb_ref = refs[idx]; idx += 1
        w_self_ref = refs[idx]; idx += 1
        b_self_ref = None
        if has_bias:
            b_self_ref = refs[idx]; idx += 1
        wp_self_ref = refs[idx]; idx += 1
        bp_ref = refs[idx]; idx += 1
        pos_ref = w_mut_ref = b_mut_ref = wp_mut_ref = None
        if mut_attn:
            pos_ref = refs[idx]; idx += 1
            w_mut_ref = refs[idx]; idx += 1
            if has_bias:
                b_mut_ref = refs[idx]; idx += 1
            wp_mut_ref = refs[idx]; idx += 1
        o_ref = refs[idx]

        x = x_ref[...]                                        # (WG, N, C) f32

        def qkv_proj(x2d_f32, w_ref, b_ref):
            # One wide matmul per branch: (WG*N, C) @ (C, 3C), f32 accumulate.
            y = jnp.dot(x2d_f32.astype(compute_dtype), w_ref[...],
                        preferred_element_type=jnp.float32)
            if b_ref is not None:
                y = y + b_ref[...]
            return y.reshape(WG, N, 3 * C).astype(compute_dtype)

        qkv_s = qkv_proj(x.reshape(rows, C), w_self_ref, b_self_ref)
        if mut_attn:
            xm = x + pos_ref[...]                             # sine pos enc (broadcast)
            qkv_m = qkv_proj(xm.reshape(rows, C), w_mut_ref, b_mut_ref)

        def head_slice(qkv, j, h):
            # j in {0:q, 1:k, 2:v}; static lane slice of width hd.
            base = j * C + h * hd
            return qkv[:, :, base:base + hd]                  # (WG, N, hd)

        # ------------------- self attention (rel-pos bias) -------------------
        o_self_parts = []
        for h in range(nh):                                   # nh is small; unrolled
            q = head_slice(qkv_s, 0, h)                       # scale already folded in
            k = head_slice(qkv_s, 1, h)
            v = head_slice(qkv_s, 2, h)
            s = jnp.einsum('bid,bjd->bij', q, k,
                           preferred_element_type=jnp.float32)  # (WG, N, N)
            s = s + rpb_ref[h]
            p = _softmax(s).astype(compute_dtype)
            o_self_parts.append(
                jnp.einsum('bij,bjd->bid', p, v,
                           preferred_element_type=jnp.float32))  # (WG, N, hd)
        o_self = jnp.concatenate(o_self_parts, axis=-1)       # lane-packed (WG, N, C)
        acc = jnp.dot(o_self.reshape(rows, C).astype(compute_dtype),
                      wp_self_ref[...],
                      preferred_element_type=jnp.float32).reshape(WG, N, C)

        if not mut_attn:
            o_ref[...] = (acc + bp_ref[...]).astype(o_ref.dtype)
            return

        # ------------------- mutual attention (frame0 <-> frame1) ------------
        top_parts, bot_parts = [], []
        for h in range(nh):
            qm = head_slice(qkv_m, 0, h)
            km = head_slice(qkv_m, 1, h)
            vm = head_slice(qkv_m, 2, h)
            # x1_aligned -> output rows [:Nh]: q from 2nd half attends to 1st-half k/v
            s1 = jnp.einsum('bid,bjd->bij', qm[:, Nh:], km[:, :Nh],
                            preferred_element_type=jnp.float32)
            p1 = _softmax(s1).astype(compute_dtype)
            top_parts.append(jnp.einsum('bij,bjd->bid', p1, vm[:, :Nh],
                                        preferred_element_type=jnp.float32))
            # x2_aligned -> output rows [Nh:]: q from 1st half attends to 2nd-half k/v
            s2 = jnp.einsum('bid,bjd->bij', qm[:, :Nh], km[:, Nh:],
                            preferred_element_type=jnp.float32)
            p2 = _softmax(s2).astype(compute_dtype)
            bot_parts.append(jnp.einsum('bij,bjd->bid', p2, vm[:, Nh:],
                                        preferred_element_type=jnp.float32))
        o_top = jnp.concatenate(top_parts, axis=-1)           # (WG, Nh, C)
        o_bot = jnp.concatenate(bot_parts, axis=-1)           # (WG, Nh, C)
        y_top = jnp.dot(o_top.reshape(WG * Nh, C).astype(compute_dtype),
                        wp_mut_ref[...],
                        preferred_element_type=jnp.float32).reshape(WG, Nh, C)
        y_bot = jnp.dot(o_bot.reshape(WG * Nh, C).astype(compute_dtype),
                        wp_mut_ref[...],
                        preferred_element_type=jnp.float32).reshape(WG, Nh, C)

        # Accumulate mutual projection into the two row halves (no sublane concat).
        o_ref[:, :Nh, :] = (acc[:, :Nh] + y_top + bp_ref[...]).astype(o_ref.dtype)
        o_ref[:, Nh:, :] = (acc[:, Nh:] + y_bot + bp_ref[...]).astype(o_ref.dtype)

    return kernel


def window_attention_forward(x, packed, num_heads, mut_attn=True, qkv_bias=False,
                             compute_dtype=jnp.bfloat16, windows_per_step=None,
                             vmem_limit_bytes=None):
    """Fused WindowAttention forward.  x: (B_, N, C) -> (B_, N, C)."""
    B_, N, C = x.shape
    assert C % num_heads == 0
    hd = C // num_heads
    if mut_attn:
        assert N % 2 == 0

    if windows_per_step is None:
        # Keep >= 2 grid steps when possible (v7x has 2 TensorCores sharing the grid).
        windows_per_step = B_ // 2 if (B_ % 2 == 0 and B_ >= 2) else 1
    WG = windows_per_step
    assert B_ % WG == 0, "B_ must be divisible by windows_per_step"

    kernel = _make_fused_kernel(WG, N, C, num_heads, hd, mut_attn, qkv_bias,
                                compute_dtype)

    # Constant index_maps keep weights/bias/rpb resident in VMEM across grid steps.
    in_specs = [
        pl.BlockSpec((WG, N, C), lambda b: (b, 0, 0)),                 # x (WG windows)
        pl.BlockSpec((num_heads, N, N), lambda b: (0, 0, 0)),          # rel-pos bias
        pl.BlockSpec((C, 3 * C), lambda b: (0, 0)),                    # qkv_self weight
    ]
    args = [x, packed["rpb"], packed["w_self"]]
    if qkv_bias:
        in_specs.append(pl.BlockSpec((1, 3 * C), lambda b: (0, 0)))    # qkv_self bias
        args.append(packed["b_self"])
    in_specs += [
        pl.BlockSpec((C, C), lambda b: (0, 0)),                        # proj weight (self)
        pl.BlockSpec((1, C), lambda b: (0, 0)),                        # proj bias
    ]
    args += [packed["wp_self"], packed["bp"]]
    if mut_attn:
        in_specs += [
            pl.BlockSpec((1, N, C), lambda b: (0, 0, 0)),              # sine pos enc
            pl.BlockSpec((C, 3 * C), lambda b: (0, 0)),                # qkv_mut weight
        ]
        args += [packed["pos"], packed["w_mut"]]
        if qkv_bias:
            in_specs.append(pl.BlockSpec((1, 3 * C), lambda b: (0, 0)))
            args.append(packed["b_mut"])
        in_specs.append(pl.BlockSpec((C, C), lambda b: (0, 0)))        # proj weight (mut)
        args.append(packed["wp_mut"])

    cp_kwargs = dict(dimension_semantics=("parallel",))
    if vmem_limit_bytes is not None:     # set explicitly for production shapes (v7x: 64 MiB)
        cp_kwargs["vmem_limit_bytes"] = vmem_limit_bytes

    return pl.pallas_call(
        kernel,
        out_shape=jax.ShapeDtypeStruct((B_, N, C), x.dtype),
        grid=(B_ // WG,),
        in_specs=in_specs,
        out_specs=pl.BlockSpec((WG, N, C), lambda b: (b, 0, 0)),
        compiler_params=pltpu.CompilerParams(**cp_kwargs),
    )(*args)


# ----------------------------------------------------------------------------
# Buffers (deterministic, mirror the PyTorch __init__)
# ----------------------------------------------------------------------------
def get_position_index(window_size):
    wd, wh, ww = window_size
    coords = np.stack(
        np.meshgrid(np.arange(wd), np.arange(wh), np.arange(ww), indexing="ij"))
    coords_flatten = coords.reshape(3, -1)
    rel = coords_flatten[:, :, None] - coords_flatten[:, None, :]
    rel = rel.transpose(1, 2, 0).astype(np.int64)
    rel[:, :, 0] += wd - 1
    rel[:, :, 1] += wh - 1
    rel[:, :, 2] += ww - 1
    rel[:, :, 0] *= (2 * wh - 1) * (2 * ww - 1)
    rel[:, :, 1] *= 2 * ww - 1
    return rel.sum(-1)  # (N, N)


def get_sine_position_encoding(HW, num_pos_feats=64, temperature=10000,
                               normalize=False, scale=None):
    if scale is None:
        scale = 2 * math.pi
    H, W = HW
    not_mask = np.ones((1, H, W), dtype=np.float32)
    y_embed = not_mask.cumsum(1)
    x_embed = not_mask.cumsum(2)
    if normalize:
        eps = 1e-6
        y_embed = y_embed / (y_embed[:, -1:, :] + eps) * scale
        x_embed = x_embed / (x_embed[:, :, -1:] + eps) * scale
    dim_t = np.arange(num_pos_feats, dtype=np.float32)
    dim_t = temperature ** (2 * (dim_t // 2) / num_pos_feats)
    pos_x = x_embed[:, :, :, None] / dim_t
    pos_y = y_embed[:, :, :, None] / dim_t
    pos_x = np.stack((np.sin(pos_x[:, :, :, 0::2]), np.cos(pos_x[:, :, :, 1::2])),
                     axis=4).reshape(1, H, W, -1)
    pos_y = np.stack((np.sin(pos_y[:, :, :, 0::2]), np.cos(pos_y[:, :, :, 1::2])),
                     axis=4).reshape(1, H, W, -1)
    pos = np.concatenate((pos_y, pos_x), axis=3)              # (1,H,W,2F)
    pos = pos.transpose(0, 3, 1, 2).reshape(1, -1, H * W)     # (1,2F,HW)
    return pos.transpose(0, 2, 1).astype(np.float32)          # (1,HW,2F)


# ----------------------------------------------------------------------------
# Parameter init (synthetic, deterministic) + one-time kernel-layout packing
# ----------------------------------------------------------------------------
def init_params(key, dim, window_size, num_heads, qkv_bias=False, mut_attn=True):
    wd, wh, ww = window_size
    n_rel = (2 * wd - 1) * (2 * wh - 1) * (2 * ww - 1)
    ks = jax.random.split(key, 6)
    params = {
        "rpb_table": 0.02 * jax.random.truncated_normal(
            ks[0], -2.0, 2.0, (n_rel, num_heads), dtype=jnp.float32),
        # weights stored as (in, out) so y = x @ w (+ b)
        "qkv_self_w": 0.02 * jax.random.normal(ks[1], (dim, 3 * dim), jnp.float32),
        "qkv_self_b": (jnp.zeros((3 * dim,), jnp.float32) if qkv_bias else None),
        "proj_w": 0.02 * jax.random.normal(
            ks[2], ((2 * dim) if mut_attn else dim, dim), jnp.float32),
        "proj_b": 0.01 * jax.random.normal(ks[3], (dim,), jnp.float32),
        "rp_index": jnp.asarray(get_position_index(window_size), dtype=jnp.int32),
    }
    if mut_attn:
        params["qkv_mut_w"] = 0.02 * jax.random.normal(ks[4], (dim, 3 * dim),
                                                       jnp.float32)
        params["qkv_mut_b"] = (jnp.zeros((3 * dim,), jnp.float32) if qkv_bias else None)
        params["position_bias"] = jnp.asarray(
            get_sine_position_encoding(window_size[1:], dim // 2, normalize=True))
    return params


def pack_params(params, dim, window_size, num_heads, mut_attn=True, qkv_bias=False,
                qk_scale=None, compute_dtype=jnp.bfloat16):
    """One-time repack into the kernel-friendly layout.

    - softmax scale folded into the q columns of the qkv weights/bias;
    - weights pre-cast to compute_dtype (no per-step casts of resident data);
    - relative-position-bias gather hoisted out of the forward (f32, added to
      f32 scores); proj bias / pos enc kept f32 (added to f32 accumulators).
    """
    C, nh = dim, num_heads
    hd = C // nh
    N = window_size[0] * window_size[1] * window_size[2]
    scale = qk_scale or hd ** (-0.5)

    def fold_scale_w(w):   # (C, 3C): scale the q block (first C output columns)
        return jnp.concatenate([w[:, :C] * scale, w[:, C:]], axis=1)

    def fold_scale_b(b):   # (3C,)
        return jnp.concatenate([b[:C] * scale, b[C:]], axis=0)

    rpb = params["rpb_table"][params["rp_index"][:N, :N].reshape(-1)]
    rpb = rpb.reshape(N, N, nh).transpose(2, 0, 1).astype(jnp.float32)

    packed = {
        "rpb": rpb,
        "w_self": fold_scale_w(params["qkv_self_w"]).astype(compute_dtype),
        "bp": params["proj_b"].reshape(1, C).astype(jnp.float32),
    }
    if qkv_bias:
        packed["b_self"] = fold_scale_b(params["qkv_self_b"]).reshape(1, 3 * C) \
                                                             .astype(jnp.float32)
    pw = params["proj_w"]                       # (2C, C) if mut_attn else (C, C)
    if mut_attn:
        packed["wp_mut"] = pw[:C].astype(compute_dtype)
        packed["wp_self"] = pw[C:].astype(compute_dtype)
        packed["w_mut"] = fold_scale_w(params["qkv_mut_w"]).astype(compute_dtype)
        if qkv_bias:
            packed["b_mut"] = fold_scale_b(params["qkv_mut_b"]).reshape(1, 3 * C) \
                                                               .astype(jnp.float32)
        # position_bias.repeat(1, 2, 1): (1, H*W, C) -> (1, N, C), precomputed once.
        packed["pos"] = jnp.tile(params["position_bias"], (1, 2, 1)).astype(jnp.float32)
    else:
        packed["wp_self"] = pw.astype(compute_dtype)
    return packed


# ----------------------------------------------------------------------------
# Pure-JAX reference (mirrors the PyTorch module, f32) for a correctness check
# ----------------------------------------------------------------------------
def reference_forward(x, params, window_size, num_heads, mut_attn=True, qk_scale=None):
    B_, N, C = x.shape
    hd = C // num_heads
    scale = qk_scale or hd ** (-0.5)

    def attention(q, k, v, bias=None):
        attn = (q * scale) @ jnp.swapaxes(k, -2, -1)
        if bias is not None:
            attn = attn + bias[None]
        attn = jax.nn.softmax(attn, axis=-1)
        out = attn @ v                                      # (B_, nh, n, hd)
        return out.transpose(0, 2, 1, 3).reshape(B_, out.shape[2], C)

    def split_qkv(y, n_tok):
        y = y.reshape(B_, n_tok, 3, num_heads, hd).transpose(2, 0, 3, 1, 4)
        return y[0], y[1], y[2]

    b_self = params["qkv_self_b"] if params["qkv_self_b"] is not None else 0.0
    q, k, v = split_qkv(x @ params["qkv_self_w"] + b_self, N)
    rpb = params["rpb_table"][params["rp_index"][:N, :N].reshape(-1)]
    rpb = rpb.reshape(N, N, num_heads).transpose(2, 0, 1)
    x_out = attention(q, k, v, rpb)
    if mut_attn:
        pos = jnp.tile(params["position_bias"], (1, 2, 1))
        b_mut = params["qkv_mut_b"] if params["qkv_mut_b"] is not None else 0.0
        qm, km, vm = split_qkv((x + pos) @ params["qkv_mut_w"] + b_mut, N)
        Nh = N // 2
        x1 = attention(qm[:, :, Nh:], km[:, :, :Nh], vm[:, :, :Nh])
        x2 = attention(qm[:, :, :Nh], km[:, :, Nh:], vm[:, :, Nh:])
        x_out = jnp.concatenate([jnp.concatenate([x1, x2], axis=1), x_out], axis=2)
    return x_out @ params["proj_w"] + params["proj_b"]


# ----------------------------------------------------------------------------
if __name__ == "__main__":
    dim = 32
    num_heads = 4
    window_size = (2, 4, 4)          # (T, H, W); T=2 required by mutual attention
    N = window_size[0] * window_size[1] * window_size[2]    # 32 tokens per window
    B_ = 8                           # num_windows * batch
    WG = 4                           # windows per grid step -> 2 even grid steps

    key = jax.random.PRNGKey(0)
    kx, kp = jax.random.split(key)
    x = jax.random.normal(kx, (B_, N, dim), dtype=jnp.float32)
    params = init_params(kp, dim, window_size, num_heads, qkv_bias=False, mut_attn=True)
    packed = pack_params(params, dim, window_size, num_heads, mut_attn=True,
                         qkv_bias=False, compute_dtype=jnp.bfloat16)

    out = window_attention_forward(x, packed, num_heads, mut_attn=True,
                                   qkv_bias=False, compute_dtype=jnp.bfloat16,
                                   windows_per_step=WG)
    out = jax.block_until_ready(out)

    assert out.shape == (B_, N, dim)
    assert bool(jnp.all(jnp.isfinite(out)))

    ref = jax.block_until_ready(
        reference_forward(x, params, window_size, num_heads, mut_attn=True))
    np.testing.assert_allclose(np.asarray(out), np.asarray(ref), atol=1e-2, rtol=1e-1)

    print("KERNEL_OK")
</pallas_src>

<mosaic_0001>
module attributes {stable_mosaic.version = 11 : i64} {
  func.func @kernel(%arg0: i32, %arg1: memref<4x32x32xf32, #tpu.memory_space<vmem>>, %arg2: memref<4x32x32xf32, #tpu.memory_space<vmem>>, %arg3: memref<32x96xbf16, #tpu.memory_space<vmem>>, %arg4: memref<32x32xbf16, #tpu.memory_space<vmem>>, %arg5: memref<1x32xf32, #tpu.memory_space<vmem>>, %arg6: memref<1x32x32xf32, #tpu.memory_space<vmem>>, %arg7: memref<32x96xbf16, #tpu.memory_space<vmem>>, %arg8: memref<32x32xbf16, #tpu.memory_space<vmem>>, %arg9: memref<4x32x32xf32, #tpu.memory_space<vmem>>) attributes {dimension_semantics = [#tpu.dimension_semantics<parallel>], iteration_bounds = array<i64: 2>, scalar_prefetch = 0 : i64, scratch_operands = 0 : i64, tpu.core_type = #tpu.core_type<tc>, window_params = [{transform_indices = @transform_0, window_bounds = array<i64: 4, 32, 32>}, {pipeline_mode = #tpu.pipeline_mode<synchronous>, transform_indices = @transform_1, window_bounds = array<i64: 4, 32, 32>}, {pipeline_mode = #tpu.pipeline_mode<synchronous>, transform_indices = @transform_2, window_bounds = array<i64: 32, 96>}, {pipeline_mode = #tpu.pipeline_mode<synchronous>, transform_indices = @transform_3, window_bounds = array<i64: 32, 32>}, {pipeline_mode = #tpu.pipeline_mode<synchronous>, transform_indices = @transform_4, window_bounds = array<i64: 1, 32>}, {pipeline_mode = #tpu.pipeline_mode<synchronous>, transform_indices = @transform_5, window_bounds = array<i64: 1, 32, 32>}, {pipeline_mode = #tpu.pipeline_mode<synchronous>, transform_indices = @transform_6, window_bounds = array<i64: 32, 96>}, {pipeline_mode = #tpu.pipeline_mode<synchronous>, transform_indices = @transform_7, window_bounds = array<i64: 32, 32>}, {transform_indices = @transform_8, window_bounds = array<i64: 4, 32, 32>}]} {
    %c0 = arith.constant 0 : index
    %c0_0 = arith.constant 0 : index
    %c0_1 = arith.constant 0 : index
    %0 = vector.load %arg1[%c0, %c0_0, %c0_1] : memref<4x32x32xf32, #tpu.memory_space<vmem>>, vector<4x32x32xf32>
    %1 = vector.shape_cast %0 : vector<4x32x32xf32> to vector<128x32xf32>
    %2 = arith.truncf %1 : vector<128x32xf32> to vector<128x32xbf16>
    %c0_2 = arith.constant 0 : index
    %c0_3 = arith.constant 0 : index
    %3 = vector.load %arg3[%c0_2, %c0_3] : memref<32x96xbf16, #tpu.memory_space<vmem>>, vector<32x96xbf16>
    %cst = arith.constant dense<0.000000e+00> : vector<128x96xf32>
    %4 = tpu.matmul %2, %3, %cst {dimension_numbers = #tpu.dot_dimension_numbers<[1], [0], [0], [1], [0, 0, 1, 1], [], []>} : vector<128x32xbf16>, vector<32x96xbf16>, vector<128x96xf32> -> vector<128x96xf32>
    %5 = vector.shape_cast %4 : vector<128x96xf32> to vector<4x32x96xf32>
    %6 = arith.truncf %5 : vector<4x32x96xf32> to vector<4x32x96xbf16>
    %c0_4 = arith.constant 0 : index
    %c0_5 = arith.constant 0 : index
    %c0_6 = arith.constant 0 : index
    %7 = vector.load %arg6[%c0_4, %c0_5, %c0_6] : memref<1x32x32xf32, #tpu.memory_space<vmem>>, vector<1x32x32xf32>
    %8 = vector.broadcast %7 : vector<1x32x32xf32> to vector<4x32x32xf32>
    %9 = arith.addf %0, %8 : vector<4x32x32xf32>
    %10 = vector.shape_cast %9 : vector<4x32x32xf32> to vector<128x32xf32>
    %11 = arith.truncf %10 : vector<128x32xf32> to vector<128x32xbf16>
    %c0_7 = arith.constant 0 : index
    %c0_8 = arith.constant 0 : index
    %12 = vector.load %arg7[%c0_7, %c0_8] : memref<32x96xbf16, #tpu.memory_space<vmem>>, vector<32x96xbf16>
    %cst_9 = arith.constant dense<0.000000e+00> : vector<128x96xf32>
    %13 = tpu.matmul %11, %12, %cst_9 {dimension_numbers = #tpu.dot_dimension_numbers<[1], [0], [0], [1], [0, 0, 1, 1], [], []>} : vector<128x32xbf16>, vector<32x96xbf16>, vector<128x96xf32> -> vector<128x96xf32>
    %14 = vector.shape_cast %13 : vector<128x96xf32> to vector<4x32x96xf32>
    %15 = arith.truncf %14 : vector<4x32x96xf32> to vector<4x32x96xbf16>
    %16 = vector.extract_strided_slice %6 {offsets = [0, 0, 0], sizes = [4, 32, 8], strides = [1, 1, 1]} : vector<4x32x96xbf16> to vector<4x32x8xbf16>
    %17 = vector.extract_strided_slice %6 {offsets = [0, 0, 32], sizes = [4, 32, 8], strides = [1, 1, 1]} : vector<4x32x96xbf16> to vector<4x32x8xbf16>
    %18 = vector.extract_strided_slice %6 {offsets = [0, 0, 64], sizes = [4, 32, 8], strides = [1, 1, 1]} : vector<4x32x96xbf16> to vector<4x32x8xbf16>
    "tpu.trace_start"() <{level = 10 : i32, message = "bid,bjd->bij"}> : () -> ()
    %cst_10 = arith.constant dense<0.000000e+00> : vector<4x32x32xf32>
    %19 = tpu.matmul %16, %17, %cst_10 {dimension_numbers = #tpu.dot_dimension_numbers<[2], [2], [1], [1], [0, 0, 0, 1, 1, 1], [0], [0]>} : vector<4x32x8xbf16>, vector<4x32x8xbf16>, vector<4x32x32xf32> -> vector<4x32x32xf32>
    "tpu.trace_stop"() : () -> ()
    %c0_11 = arith.constant 0 : index
    %c0_12 = arith.constant 0 : index
    %c0_13 = arith.constant 0 : index
    %20 = vector.load %arg2[%c0_11, %c0_12, %c0_13] : memref<4x32x32xf32, #tpu.memory_space<vmem>>, vector<1x32x32xf32>
    %21 = vector.shape_cast %20 : vector<1x32x32xf32> to vector<32x32xf32>
    %22 = vector.shape_cast %21 : vector<32x32xf32> to vector<1x32x32xf32>
    %23 = vector.broadcast %22 : vector<1x32x32xf32> to vector<4x32x32xf32>
    %24 = arith.addf %19, %23 : vector<4x32x32xf32>
    %cst_14 = arith.constant dense<0xFF800000> : vector<4x32xf32>
    %25 = vector.multi_reduction <maximumf>, %24, %cst_14 [2] : vector<4x32x32xf32> to vector<4x32xf32>
    %26 = vector.shape_cast %25 : vector<4x32xf32> to vector<4x32x1xf32>
    %27 = vector.broadcast %26 : vector<4x32x1xf32> to vector<4x32x32xf32>
    %28 = arith.subf %24, %27 : vector<4x32x32xf32>
    %29 = math.exp %28 : vector<4x32x32xf32>
    %cst_15 = arith.constant dense<0.000000e+00> : vector<4x32xf32>
    %30 = vector.multi_reduction <add>, %29, %cst_15 [2] : vector<4x32x32xf32> to vector<4x32xf32>
    %31 = vector.shape_cast %30 : vector<4x32xf32> to vector<4x32x1xf32>
    %32 = tpu.reciprocal %31 {approx = true} : vector<4x32x1xf32> -> vector<4x32x1xf32>
    %33 = vector.broadcast %32 : vector<4x32x1xf32> to vector<4x32x32xf32>
    %34 = arith.mulf %29, %33 : vector<4x32x32xf32>
    %35 = arith.truncf %34 : vector<4x32x32xf32> to vector<4x32x32xbf16>
    "tpu.trace_start"() <{level = 10 : i32, message = "bij,bjd->bid"}> : () -> ()
    %cst_16 = arith.constant dense<0.000000e+00> : vector<4x32x8xf32>
    %36 = tpu.matmul %35, %18, %cst_16 {dimension_numbers = #tpu.dot_dimension_numbers<[2], [1], [1], [2], [0, 0, 0, 1, 1, 2], [0], [0]>} : vector<4x32x32xbf16>, vector<4x32x8xbf16>, vector<4x32x8xf32> -> vector<4x32x8xf32>
    "tpu.trace_stop"() : () -> ()
    %37 = vector.extract_strided_slice %6 {offsets = [0, 0, 8], sizes = [4, 32, 8], strides = [1, 1, 1]} : vector<4x32x96xbf16> to vector<4x32x8xbf16>
    %38 = vector.extract_strided_slice %6 {offsets = [0, 0, 40], sizes = [4, 32, 8], strides = [1, 1, 1]} : vector<4x32x96xbf16> to vector<4x32x8xbf16>
    %39 = vector.extract_strided_slice %6 {offsets = [0, 0, 72], sizes = [4, 32, 8], strides = [1, 1, 1]} : vector<4x32x96xbf16> to vector<4x32x8xbf16>
    "tpu.trace_start"() <{level = 10 : i32, message = "bid,bjd->bij"}> : () -> ()
    %cst_17 = arith.constant dense<0.000000e+00> : vector<4x32x32xf32>
    %40 = tpu.matmul %37, %38, %cst_17 {dimension_numbers = #tpu.dot_dimension_numbers<[2], [2], [1], [1], [0, 0, 0, 1, 1, 1], [0], [0]>} : vector<4x32x8xbf16>, vector<4x32x8xbf16>, vector<4x32x32xf32> -> vector<4x32x32xf32>
    "tpu.trace_stop"() : () -> ()
    %c1 = arith.constant 1 : index
    %c0_18 = arith.constant 0 : index
    %c0_19 = arith.constant 0 : index
    %41 = vector.load %arg2[%c1, %c0_18, %c0_19] : memref<4x32x32xf32, #tpu.memory_space<vmem>>, vector<1x32x32xf32>
    %42 = vector.shape_cast %41 : vector<1x32x32xf32> to vector<32x32xf32>
    %43 = vector.shape_cast %42 : vector<32x32xf32> to vector<1x32x32xf32>
    %44 = vector.broadcast %43 : vector<1x32x32xf32> to vector<4x32x32xf32>
    %45 = arith.addf %40, %44 : vector<4x32x32xf32>
    %cst_20 = arith.constant dense<0xFF800000> : vector<4x32xf32>
    %46 = vector.multi_reduction <maximumf>, %45, %cst_20 [2] : vector<4x32x32xf32> to vector<4x32xf32>
    %47 = vector.shape_cast %46 : vector<4x32xf32> to vector<4x32x1xf32>
    %48 = vector.broadcast %47 : vector<4x32x1xf32> to vector<4x32x32xf32>
    %49 = arith.subf %45, %48 : vector<4x32x32xf32>
    %50 = math.exp %49 : vector<4x32x32xf32>
    %cst_21 = arith.constant dense<0.000000e+00> : vector<4x32xf32>
    %51 = vector.multi_reduction <add>, %50, %cst_21 [2] : vector<4x32x32xf32> to vector<4x32xf32>
    %52 = vector.shape_cast %51 : vector<4x32xf32> to vector<4x32x1xf32>
    %53 = tpu.reciprocal %52 {approx = true} : vector<4x32x1xf32> -> vector<4x32x1xf32>
    %54 = vector.broadcast %53 : vector<4x32x1xf32> to vector<4x32x32xf32>
    %55 = arith.mulf %50, %54 : vector<4x32x32xf32>
    %56 = arith.truncf %55 : vector<4x32x32xf32> to vector<4x32x32xbf16>
    "tpu.trace_start"() <{level = 10 : i32, message = "bij,bjd->bid"}> : () -> ()
    %cst_22 = arith.constant dense<0.000000e+00> : vector<4x32x8xf32>
    %57 = tpu.matmul %56, %39, %cst_22 {dimension_numbers = #tpu.dot_dimension_numbers<[2], [1], [1], [2], [0, 0, 0, 1, 1, 2], [0], [0]>} : vector<4x32x32xbf16>, vector<4x32x8xbf16>, vector<4x32x8xf32> -> vector<4x32x8xf32>
    "tpu.trace_stop"() : () -> ()
    %58 = vector.extract_strided_slice %6 {offsets = [0, 0, 16], sizes = [4, 32, 8], strides = [1, 1, 1]} : vector<4x32x96xbf16> to vector<4x32x8xbf16>
    %59 = vector.extract_strided_slice %6 {offsets = [0, 0, 48], sizes = [4, 32, 8], strides = [1, 1, 1]} : vector<4x32x96xbf16> to vector<4x32x8xbf16>
    %60 = vector.extract_strided_slice %6 {offsets = [0, 0, 80], sizes = [4, 32, 8], strides = [1, 1, 1]} : vector<4x32x96xbf16> to vector<4x32x8xbf16>
    "tpu.trace_start"() <{level = 10 : i32, message = "bid,bjd->bij"}> : () -> ()
    %cst_23 = arith.constant dense<0.000000e+00> : vector<4x32x32xf32>
    %61 = tpu.matmul %58, %59, %cst_23 {dimension_numbers = #tpu.dot_dimension_numbers<[2], [2], [1], [1], [0, 0, 0, 1, 1, 1], [0], [0]>} : vector<4x32x8xbf16>, vector<4x32x8xbf16>, vector<4x32x32xf32> -> vector<4x32x32xf32>
    "tpu.trace_stop"() : () -> ()
    %c2 = arith.constant 2 : index
    %c0_24 = arith.constant 0 : index
    %c0_25 = arith.constant 0 : index
    %62 = vector.load %arg2[%c2, %c0_24, %c0_25] : memref<4x32x32xf32, #tpu.memory_space<vmem>>, vector<1x32x32xf32>
    %63 = vector.shape_cast %62 : vector<1x32x32xf32> to vector<32x32xf32>
    %64 = vector.shape_cast %63 : vector<32x32xf32> to vector<1x32x32xf32>
    %65 = vector.broadcast %64 : vector<1x32x32xf32> to vector<4x32x32xf32>
    %66 = arith.addf %61, %65 : vector<4x32x32xf32>
    %cst_26 = arith.constant dense<0xFF800000> : vector<4x32xf32>
    %67 = vector.multi_reduction <maximumf>, %66, %cst_26 [2] : vector<4x32x32xf32> to vector<4x32xf32>
    %68 = vector.shape_cast %67 : vector<4x32xf32> to vector<4x32x1xf32>
    %69 = vector.broadcast %68 : vector<4x32x1xf32> to vector<4x32x32xf32>
    %70 = arith.subf %66, %69 : vector<4x32x32xf32>
    %71 = math.exp %70 : vector<4x32x32xf32>
    %cst_27 = arith.constant dense<0.000000e+00> : vector<4x32xf32>
    %72 = vector.multi_reduction <add>, %71, %cst_27 [2] : vector<4x32x32xf32> to vector<4x32xf32>
    %73 = vector.shape_cast %72 : vector<4x32xf32> to vector<4x32x1xf32>
    %74 = tpu.reciprocal %73 {approx = true} : vector<4x32x1xf32> -> vector<4x32x1xf32>
    %75 = vector.broadcast %74 : vector<4x32x1xf32> to vector<4x32x32xf32>
    %76 = arith.mulf %71, %75 : vector<4x32x32xf32>
    %77 = arith.truncf %76 : vector<4x32x32xf32> to vector<4x32x32xbf16>
    "tpu.trace_start"() <{level = 10 : i32, message = "bij,bjd->bid"}> : () -> ()
    %cst_28 = arith.constant dense<0.000000e+00> : vector<4x32x8xf32>
    %78 = tpu.matmul %77, %60, %cst_28 {dimension_numbers = #tpu.dot_dimension_numbers<[2], [1], [1], [2], [0, 0, 0, 1, 1, 2], [0], [0]>} : vector<4x32x32xbf16>, vector<4x32x8xbf16>, vector<4x32x8xf32> -> vector<4x32x8xf32>
    "tpu.trace_stop"() : () -> ()
    %79 = vector.extract_strided_slice %6 {offsets = [0, 0, 24], sizes = [4, 32, 8], strides = [1, 1, 1]} : vector<4x32x96xbf16> to vector<4x32x8xbf16>
    %80 = vector.extract_strided_slice %6 {offsets = [0, 0, 56], sizes = [4, 32, 8], strides = [1, 1, 1]} : vector<4x32x96xbf16> to vector<4x32x8xbf16>
    %81 = vector.extract_strided_slice %6 {offsets = [0, 0, 88], sizes = [4, 32, 8], strides = [1, 1, 1]} : vector<4x32x96xbf16> to vector<4x32x8xbf16>
    "tpu.trace_start"() <{level = 10 : i32, message = "bid,bjd->bij"}> : () -> ()
    %cst_29 = arith.constant dense<0.000000e+00> : vector<4x32x32xf32>
    %82 = tpu.matmul %79, %80, %cst_29 {dimension_numbers = #tpu.dot_dimension_numbers<[2], [2], [1], [1], [0, 0, 0, 1, 1, 1], [0], [0]>} : vector<4x32x8xbf16>, vector<4x32x8xbf16>, vector<4x32x32xf32> -> vector<4x32x32xf32>
    "tpu.trace_stop"() : () -> ()
    %c3 = arith.constant 3 : index
    %c0_30 = arith.constant 0 : index
    %c0_31 = arith.constant 0 : index
    %83 = vector.load %arg2[%c3, %c0_30, %c0_31] : memref<4x32x32xf32, #tpu.memory_space<vmem>>, vector<1x32x32xf32>
    %84 = vector.shape_cast %83 : vector<1x32x32xf32> to vector<32x32xf32>
    %85 = vector.shape_cast %84 : vector<32x32xf32> to vector<1x32x32xf32>
    %86 = vector.broadcast %85 : vector<1x32x32xf32> to vector<4x32x32xf32>
    %87 = arith.addf %82, %86 : vector<4x32x32xf32>
    %cst_32 = arith.constant dense<0xFF800000> : vector<4x32xf32>
    %88 = vector.multi_reduction <maximumf>, %87, %cst_32 [2] : vector<4x32x32xf32> to vector<4x32xf32>
    %89 = vector.shape_cast %88 : vector<4x32xf32> to vector<4x32x1xf32>
    %90 = vector.broadcast %89 : vector<4x32x1xf32> to vector<4x32x32xf32>
    %91 = arith.subf %87, %90 : vector<4x32x32xf32>
    %92 = math.exp %91 : vector<4x32x32xf32>
    %cst_33 = arith.constant dense<0.000000e+00> : vector<4x32xf32>
    %93 = vector.multi_reduction <add>, %92, %cst_33 [2] : vector<4x32x32xf32> to vector<4x32xf32>
    %94 = vector.shape_cast %93 : vector<4x32xf32> to vector<4x32x1xf32>
    %95 = tpu.reciprocal %94 {approx = true} : vector<4x32x1xf32> -> vector<4x32x1xf32>
    %96 = vector.broadcast %95 : vector<4x32x1xf32> to vector<4x32x32xf32>
    %97 = arith.mulf %92, %96 : vector<4x32x32xf32>
    %98 = arith.truncf %97 : vector<4x32x32xf32> to vector<4x32x32xbf16>
    "tpu.trace_start"() <{level = 10 : i32, message = "bij,bjd->bid"}> : () -> ()
    %cst_34 = arith.constant dense<0.000000e+00> : vector<4x32x8xf32>
    %99 = tpu.matmul %98, %81, %cst_34 {dimension_numbers = #tpu.dot_dimension_numbers<[2], [1], [1], [2], [0, 0, 0, 1, 1, 2], [0], [0]>} : vector<4x32x32xbf16>, vector<4x32x8xbf16>, vector<4x32x8xf32> -> vector<4x32x8xf32>
    "tpu.trace_stop"() : () -> ()
    %100 = tpu.concatenate %36, %57, %78, %99 in 2 : vector<4x32x8xf32>, vector<4x32x8xf32>, vector<4x32x8xf32>, vector<4x32x8xf32> -> vector<4x32x32xf32>
    %101 = vector.shape_cast %100 : vector<4x32x32xf32> to vector<128x32xf32>
    %102 = arith.truncf %101 : vector<128x32xf32> to vector<128x32xbf16>
    %c0_35 = arith.constant 0 : index
    %c0_36 = arith.constant 0 : index
    %103 = vector.load %arg4[%c0_35, %c0_36] : memref<32x32xbf16, #tpu.memory_space<vmem>>, vector<32x32xbf16>
    %cst_37 = arith.constant dense<0.000000e+00> : vector<128x32xf32>
    %104 = tpu.matmul %102, %103, %cst_37 {dimension_numbers = #tpu.dot_dimension_numbers<[1], [0], [0], [1], [0, 0, 1, 1], [], []>} : vector<128x32xbf16>, vector<32x32xbf16>, vector<128x32xf32> -> vector<128x32xf32>
    %105 = vector.shape_cast %104 : vector<128x32xf32> to vector<4x32x32xf32>
    %106 = vector.extract_strided_slice %15 {offsets = [0, 0, 0], sizes = [4, 32, 8], strides = [1, 1, 1]} : vector<4x32x96xbf16> to vector<4x32x8xbf16>
    %107 = vector.extract_strided_slice %15 {offsets = [0, 0, 32], sizes = [4, 32, 8], strides = [1, 1, 1]} : vector<4x32x96xbf16> to vector<4x32x8xbf16>
    %108 = vector.extract_strided_slice %15 {offsets = [0, 0, 64], sizes = [4, 32, 8], strides = [1, 1, 1]} : vector<4x32x96xbf16> to vector<4x32x8xbf16>
    %109 = vector.extract_strided_slice %106 {offsets = [0, 16, 0], sizes = [4, 16, 8], strides = [1, 1, 1]} : vector<4x32x8xbf16> to vector<4x16x8xbf16>
    %110 = vector.extract_strided_slice %107 {offsets = [0, 0, 0], sizes = [4, 16, 8], strides = [1, 1, 1]} : vector<4x32x8xbf16> to vector<4x16x8xbf16>
    "tpu.trace_start"() <{level = 10 : i32, message = "bid,bjd->bij"}> : () -> ()
    %cst_38 = arith.constant dense<0.000000e+00> : vector<4x16x16xf32>
    %111 = tpu.matmul %109, %110, %cst_38 {dimension_numbers = #tpu.dot_dimension_numbers<[2], [2], [1], [1], [0, 0, 0, 1, 1, 1], [0], [0]>} : vector<4x16x8xbf16>, vector<4x16x8xbf16>, vector<4x16x16xf32> -> vector<4x16x16xf32>
    "tpu.trace_stop"() : () -> ()
    %cst_39 = arith.constant dense<0xFF800000> : vector<4x16xf32>
    %112 = vector.multi_reduction <maximumf>, %111, %cst_39 [2] : vector<4x16x16xf32> to vector<4x16xf32>
    %113 = vector.shape_cast %112 : vector<4x16xf32> to vector<4x16x1xf32>
    %114 = vector.broadcast %113 : vector<4x16x1xf32> to vector<4x16x16xf32>
    %115 = arith.subf %111, %114 : vector<4x16x16xf32>
    %116 = math.exp %115 : vector<4x16x16xf32>
    %cst_40 = arith.constant dense<0.000000e+00> : vector<4x16xf32>
    %117 = vector.multi_reduction <add>, %116, %cst_40 [2] : vector<4x16x16xf32> to vector<4x16xf32>
    %118 = vector.shape_cast %117 : vector<4x16xf32> to vector<4x16x1xf32>
    %119 = tpu.reciprocal %118 {approx = true} : vector<4x16x1xf32> -> vector<4x16x1xf32>
    %120 = vector.broadcast %119 : vector<4x16x1xf32> to vector<4x16x16xf32>
    %121 = arith.mulf %116, %120 : vector<4x16x16xf32>
    %122 = arith.truncf %121 : vector<4x16x16xf32> to vector<4x16x16xbf16>
    %123 = vector.extract_strided_slice %108 {offsets = [0, 0, 0], sizes = [4, 16, 8], strides = [1, 1, 1]} : vector<4x32x8xbf16> to vector<4x16x8xbf16>
    "tpu.trace_start"() <{level = 10 : i32, message = "bij,bjd->bid"}> : () -> ()
    %cst_41 = arith.constant dense<0.000000e+00> : vector<4x16x8xf32>
    %124 = tpu.matmul %122, %123, %cst_41 {dimension_numbers = #tpu.dot_dimension_numbers<[2], [1], [1], [2], [0, 0, 0, 1, 1, 2], [0], [0]>} : vector<4x16x16xbf16>, vector<4x16x8xbf16>, vector<4x16x8xf32> -> vector<4x16x8xf32>
    "tpu.trace_stop"() : () -> ()
    %125 = vector.extract_strided_slice %106 {offsets = [0, 0, 0], sizes = [4, 16, 8], strides = [1, 1, 1]} : vector<4x32x8xbf16> to vector<4x16x8xbf16>
    %126 = vector.extract_strided_slice %107 {offsets = [0, 16, 0], sizes = [4, 16, 8], strides = [1, 1, 1]} : vector<4x32x8xbf16> to vector<4x16x8xbf16>
    "tpu.trace_start"() <{level = 10 : i32, message = "bid,bjd->bij"}> : () -> ()
    %cst_42 = arith.constant dense<0.000000e+00> : vector<4x16x16xf32>
    %127 = tpu.matmul %125, %126, %cst_42 {dimension_numbers = #tpu.dot_dimension_numbers<[2], [2], [1], [1], [0, 0, 0, 1, 1, 1], [0], [0]>} : vector<4x16x8xbf16>, vector<4x16x8xbf16>, vector<4x16x16xf32> -> vector<4x16x16xf32>
    "tpu.trace_stop"() : () -> ()
    %cst_43 = arith.constant dense<0xFF800000> : vector<4x16xf32>
    %128 = vector.multi_reduction <maximumf>, %127, %cst_43 [2] : vector<4x16x16xf32> to vector<4x16xf32>
    %129 = vector.shape_cast %128 : vector<4x16xf32> to vector<4x16x1xf32>
    %130 = vector.broadcast %129 : vector<4x16x1xf32> to vector<4x16x16xf32>
    %131 = arith.subf %127, %130 : vector<4x16x16xf32>
    %132 = math.exp %131 : vector<4x16x16xf32>
    %cst_44 = arith.constant dense<0.000000e+00> : vector<4x16xf32>
    %133 = vector.multi_reduction <add>, %132, %cst_44 [2] : vector<4x16x16xf32> to vector<4x16xf32>
    %134 = vector.shape_cast %133 : vector<4x16xf32> to vector<4x16x1xf32>
    %135 = tpu.reciprocal %134 {approx = true} : vector<4x16x1xf32> -> vector<4x16x1xf32>
    %136 = vector.broadcast %135 : vector<4x16x1xf32> to vector<4x16x16xf32>
    %137 = arith.mulf %132, %136 : vector<4x16x16xf32>
    %138 = arith.truncf %137 : vector<4x16x16xf32> to vector<4x16x16xbf16>
    %139 = vector.extract_strided_slice %108 {offsets = [0, 16, 0], sizes = [4, 16, 8], strides = [1, 1, 1]} : vector<4x32x8xbf16> to vector<4x16x8xbf16>
    "tpu.trace_start"() <{level = 10 : i32, message = "bij,bjd->bid"}> : () -> ()
    %cst_45 = arith.constant dense<0.000000e+00> : vector<4x16x8xf32>
    %140 = tpu.matmul %138, %139, %cst_45 {dimension_numbers = #tpu.dot_dimension_numbers<[2], [1], [1], [2], [0, 0, 0, 1, 1, 2], [0], [0]>} : vector<4x16x16xbf16>, vector<4x16x8xbf16>, vector<4x16x8xf32> -> vector<4x16x8xf32>
    "tpu.trace_stop"() : () -> ()
    %141 = vector.extract_strided_slice %15 {offsets = [0, 0, 8], sizes = [4, 32, 8], strides = [1, 1, 1]} : vector<4x32x96xbf16> to vector<4x32x8xbf16>
    %142 = vector.extract_strided_slice %15 {offsets = [0, 0, 40], sizes = [4, 32, 8], strides = [1, 1, 1]} : vector<4x32x96xbf16> to vector<4x32x8xbf16>
    %143 = vector.extract_strided_slice %15 {offsets = [0, 0, 72], sizes = [4, 32, 8], strides = [1, 1, 1]} : vector<4x32x96xbf16> to vector<4x32x8xbf16>
    %144 = vector.extract_strided_slice %141 {offsets = [0, 16, 0], sizes = [4, 16, 8], strides = [1, 1, 1]} : vector<4x32x8xbf16> to vector<4x16x8xbf16>
    %145 = vector.extract_strided_slice %142 {offsets = [0, 0, 0], sizes = [4, 16, 8], strides = [1, 1, 1]} : vector<4x32x8xbf16> to vector<4x16x8xbf16>
    "tpu.trace_start"() <{level = 10 : i32, message = "bid,bjd->bij"}> : () -> ()
    %cst_46 = arith.constant dense<0.000000e+00> : vector<4x16x16xf32>
    %146 = tpu.matmul %144, %145, %cst_46 {dimension_numbers = #tpu.dot_dimension_numbers<[2], [2], [1], [1], [0, 0, 0, 1, 1, 1], [0], [0]>} : vector<4x16x8xbf16>, vector<4x16x8xbf16>, vector<4x16x16xf32> -> vector<4x16x16xf32>
    "tpu.trace_stop"() : () -> ()
    %cst_47 = arith.constant dense<0xFF800000> : vector<4x16xf32>
    %147 = vector.multi_reduction <maximumf>, %146, %cst_47 [2] : vector<4x16x16xf32> to vector<4x16xf32>
    %148 = vector.shape_cast %147 : vector<4x16xf32> to vector<4x16x1xf32>
    %149 = vector.broadcast %148 : vector<4x16x1xf32> to vector<4x16x16xf32>
    %150 = arith.subf %146, %149 : vector<4x16x16xf32>
    %151 = math.exp %150 : vector<4x16x16xf32>
    %cst_48 = arith.constant dense<0.000000e+00> : vector<4x16xf32>
    %152 = vector.multi_reduction <add>, %151, %cst_48 [2] : vector<4x16x16xf32> to vector<4x16xf32>
    %153 = vector.shape_cast %152 : vector<4x16xf32> to vector<4x16x1xf32>
    %154 = tpu.reciprocal %153 {approx = true} : vector<4x16x1xf32> -> vector<4x16x1xf32>
    %155 = vector.broadcast %154 : vector<4x16x1xf32> to vector<4x16x16xf32>
    %156 = arith.mulf %151, %155 : vector<4x16x16xf32>
    %157 = arith.truncf %156 : vector<4x16x16xf32> to vector<4x16x16xbf16>
    %158 = vector.extract_strided_slice %143 {offsets = [0, 0, 0], sizes = [4, 16, 8], strides = [1, 1, 1]} : vector<4x32x8xbf16> to vector<4x16x8xbf16>
    "tpu.trace_start"() <{level = 10 : i32, message = "bij,bjd->bid"}> : () -> ()
    %cst_49 = arith.constant dense<0.000000e+00> : vector<4x16x8xf32>
    %159 = tpu.matmul %157, %158, %cst_49 {dimension_numbers = #tpu.dot_dimension_numbers<[2], [1], [1], [2], [0, 0, 0, 1, 1, 2], [0], [0]>} : vector<4x16x16xbf16>, vector<4x16x8xbf16>, vector<4x16x8xf32> -> vector<4x16x8xf32>
    "tpu.trace_stop"() : () -> ()
    %160 = vector.extract_strided_slice %141 {offsets = [0, 0, 0], sizes = [4, 16, 8], strides = [1, 1, 1]} : vector<4x32x8xbf16> to vector<4x16x8xbf16>
    %161 = vector.extract_strided_slice %142 {offsets = [0, 16, 0], sizes = [4, 16, 8], strides = [1, 1, 1]} : vector<4x32x8xbf16> to vector<4x16x8xbf16>
    "tpu.trace_start"() <{level = 10 : i32, message = "bid,bjd->bij"}> : () -> ()
    %cst_50 = arith.constant dense<0.000000e+00> : vector<4x16x16xf32>
    %162 = tpu.matmul %160, %161, %cst_50 {dimension_numbers = #tpu.dot_dimension_numbers<[2], [2], [1], [1], [0, 0, 0, 1, 1, 1], [0], [0]>} : vector<4x16x8xbf16>, vector<4x16x8xbf16>, vector<4x16x16xf32> -> vector<4x16x16xf32>
    "tpu.trace_stop"() : () -> ()
    %cst_51 = arith.constant dense<0xFF800000> : vector<4x16xf32>
    %163 = vector.multi_reduction <maximumf>, %162, %cst_51 [2] : vector<4x16x16xf32> to vector<4x16xf32>
    %164 = vector.shape_cast %163 : vector<4x16xf32> to vector<4x16x1xf32>
    %165 = vector.broadcast %164 : vector<4x16x1xf32> to vector<4x16x16xf32>
    %166 = arith.subf %162, %165 : vector<4x16x16xf32>
    %167 = math.exp %166 : vector<4x16x16xf32>
    %cst_52 = arith.constant dense<0.000000e+00> : vector<4x16xf32>
    %168 = vector.multi_reduction <add>, %167, %cst_52 [2] : vector<4x16x16xf32> to vector<4x16xf32>
    %169 = vector.shape_cast %168 : vector<4x16xf32> to vector<4x16x1xf32>
    %170 = tpu.reciprocal %169 {approx = true} : vector<4x16x1xf32> -> vector<4x16x1xf32>
    %171 = vector.broadcast %170 : vector<4x16x1xf32> to vector<4x16x16xf32>
    %172 = arith.mulf %167, %171 : vector<4x16x16xf32>
    %173 = arith.truncf %172 : vector<4x16x16xf32> to vector<4x16x16xbf16>
    %174 = vector.extract_strided_slice %143 {offsets = [0, 16, 0], sizes = [4, 16, 8], strides = [1, 1, 1]} : vector<4x32x8xbf16> to vector<4x16x8xbf16>
    "tpu.trace_start"() <{level = 10 : i32, message = "bij,bjd->bid"}> : () -> ()
    %cst_53 = arith.constant dense<0.000000e+00> : vector<4x16x8xf32>
    %175 = tpu.matmul %173, %174, %cst_53 {dimension_numbers = #tpu.dot_dimension_numbers<[2], [1], [1], [2], [0, 0, 0, 1, 1, 2], [0], [0]>} : vector<4x16x16xbf16>, vector<4x16x8xbf16>, vector<4x16x8xf32> -> vector<4x16x8xf32>
    "tpu.trace_stop"() : () -> ()
    %176 = vector.extract_strided_slice %15 {offsets = [0, 0, 16], sizes = [4, 32, 8], strides = [1, 1, 1]} : vector<4x32x96xbf16> to vector<4x32x8xbf16>
    %177 = vector.extract_strided_slice %15 {offsets = [0, 0, 48], sizes = [4, 32, 8], strides = [1, 1, 1]} : vector<4x32x96xbf16> to vector<4x32x8xbf16>
    %178 = vector.extract_strided_slice %15 {offsets = [0, 0, 80], sizes = [4, 32, 8], strides = [1, 1, 1]} : vector<4x32x96xbf16> to vector<4x32x8xbf16>
    %179 = vector.extract_strided_slice %176 {offsets = [0, 16, 0], sizes = [4, 16, 8], strides = [1, 1, 1]} : vector<4x32x8xbf16> to vector<4x16x8xbf16>
    %180 = vector.extract_strided_slice %177 {offsets = [0, 0, 0], sizes = [4, 16, 8], strides = [1, 1, 1]} : vector<4x32x8xbf16> to vector<4x16x8xbf16>
    "tpu.trace_start"() <{level = 10 : i32, message = "bid,bjd->bij"}> : () -> ()
    %cst_54 = arith.constant dense<0.000000e+00> : vector<4x16x16xf32>
    %181 = tpu.matmul %179, %180, %cst_54 {dimension_numbers = #tpu.dot_dimension_numbers<[2], [2], [1], [1], [0, 0, 0, 1, 1, 1], [0], [0]>} : vector<4x16x8xbf16>, vector<4x16x8xbf16>, vector<4x16x16xf32> -> vector<4x16x16xf32>
    "tpu.trace_stop"() : () -> ()
    %cst_55 = arith.constant dense<0xFF800000> : vector<4x16xf32>
    %182 = vector.multi_reduction <maximumf>, %181, %cst_55 [2] : vector<4x16x16xf32> to vector<4x16xf32>
    %183 = vector.shape_cast %182 : vector<4x16xf32> to vector<4x16x1xf32>
    %184 = vector.broadcast %183 : vector<4x16x1xf32> to vector<4x16x16xf32>
    %185 = arith.subf %181, %184 : vector<4x16x16xf32>
    %186 = math.exp %185 : vector<4x16x16xf32>
    %cst_56 = arith.constant dense<0.000000e+00> : vector<4x16xf32>
    %187 = vector.multi_reduction <add>, %186, %cst_56 [2] : vector<4x16x16xf32> to vector<4x16xf32>
    %188 = vector.shape_cast %187 : vector<4x16xf32> to vector<4x16x1xf32>
    %189 = tpu.reciprocal %188 {approx = true} : vector<4x16x1xf32> -> vector<4x16x1xf32>
    %190 = vector.broadcast %189 : vector<4x16x1xf32> to vector<4x16x16xf32>
    %191 = arith.mulf %186, %190 : vector<4x16x16xf32>
    %192 = arith.truncf %191 : vector<4x16x16xf32> to vector<4x16x16xbf16>
    %193 = vector.extract_strided_slice %178 {offsets = [0, 0, 0], sizes = [4, 16, 8], strides = [1, 1, 1]} : vector<4x32x8xbf16> to vector<4x16x8xbf16>
    "tpu.trace_start"() <{level = 10 : i32, message = "bij,bjd->bid"}> : () -> ()
    %cst_57 = arith.constant dense<0.000000e+00> : vector<4x16x8xf32>
    %194 = tpu.matmul %192, %193, %cst_57 {dimension_numbers = #tpu.dot_dimension_numbers<[2], [1], [1], [2], [0, 0, 0, 1, 1, 2], [0], [0]>} : vector<4x16x16xbf16>, vector<4x16x8xbf16>, vector<4x16x8xf32> -> vector<4x16x8xf32>
    "tpu.trace_stop"() : () -> ()
    %195 = vector.extract_strided_slice %176 {offsets = [0, 0, 0], sizes = [4, 16, 8], strides = [1, 1, 1]} : vector<4x32x8xbf16> to vector<4x16x8xbf16>
    %196 = vector.extract_strided_slice %177 {offsets = [0, 16, 0], sizes = [4, 16, 8], strides = [1, 1, 1]} : vector<4x32x8xbf16> to vector<4x16x8xbf16>
    "tpu.trace_start"() <{level = 10 : i32, message = "bid,bjd->bij"}> : () -> ()
    %cst_58 = arith.constant dense<0.000000e+00> : vector<4x16x16xf32>
    %197 = tpu.matmul %195, %196, %cst_58 {dimension_numbers = #tpu.dot_dimension_numbers<[2], [2], [1], [1], [0, 0, 0, 1, 1, 1], [0], [0]>} : vector<4x16x8xbf16>, vector<4x16x8xbf16>, vector<4x16x16xf32> -> vector<4x16x16xf32>
    "tpu.trace_stop"() : () -> ()
    %cst_59 = arith.constant dense<0xFF800000> : vector<4x16xf32>
    %198 = vector.multi_reduction <maximumf>, %197, %cst_59 [2] : vector<4x16x16xf32> to vector<4x16xf32>
    %199 = vector.shape_cast %198 : vector<4x16xf32> to vector<4x16x1xf32>
    %200 = vector.broadcast %199 : vector<4x16x1xf32> to vector<4x16x16xf32>
    %201 = arith.subf %197, %200 : vector<4x16x16xf32>
    %202 = math.exp %201 : vector<4x16x16xf32>
    %cst_60 = arith.constant dense<0.000000e+00> : vector<4x16xf32>
    %203 = vector.multi_reduction <add>, %202, %cst_60 [2] : vector<4x16x16xf32> to vector<4x16xf32>
    %204 = vector.shape_cast %203 : vector<4x16xf32> to vector<4x16x1xf32>
    %205 = tpu.reciprocal %204 {approx = true} : vector<4x16x1xf32> -> vector<4x16x1xf32>
    %206 = vector.broadcast %205 : vector<4x16x1xf32> to vector<4x16x16xf32>
    %207 = arith.mulf %202, %206 : vector<4x16x16xf32>
    %208 = arith.truncf %207 : vector<4x16x16xf32> to vector<4x16x16xbf16>
    %209 = vector.extract_strided_slice %178 {offsets = [0, 16, 0], sizes = [4, 16, 8], strides = [1, 1, 1]} : vector<4x32x8xbf16> to vector<4x16x8xbf16>
    "tpu.trace_start"() <{level = 10 : i32, message = "bij,bjd->bid"}> : () -> ()
    %cst_61 = arith.constant dense<0.000000e+00> : vector<4x16x8xf32>
    %210 = tpu.matmul %208, %209, %cst_61 {dimension_numbers = #tpu.dot_dimension_numbers<[2], [1], [1], [2], [0, 0, 0, 1, 1, 2], [0], [0]>} : vector<4x16x16xbf16>, vector<4x16x8xbf16>, vector<4x16x8xf32> -> vector<4x16x8xf32>
    "tpu.trace_stop"() : () -> ()
    %211 = vector.extract_strided_slice %15 {offsets = [0, 0, 24], sizes = [4, 32, 8], strides = [1, 1, 1]} : vector<4x32x96xbf16> to vector<4x32x8xbf16>
    %212 = vector.extract_strided_slice %15 {offsets = [0, 0, 56], sizes = [4, 32, 8], strides = [1, 1, 1]} : vector<4x32x96xbf16> to vector<4x32x8xbf16>
    %213 = vector.extract_strided_slice %15 {offsets = [0, 0, 88], sizes = [4, 32, 8], strides = [1, 1, 1]} : vector<4x32x96xbf16> to vector<4x32x8xbf16>
    %214 = vector.extract_strided_slice %211 {offsets = [0, 16, 0], sizes = [4, 16, 8], strides = [1, 1, 1]} : vector<4x32x8xbf16> to vector<4x16x8xbf16>
    %215 = vector.extract_strided_slice %212 {offsets = [0, 0, 0], sizes = [4, 16, 8], strides = [1, 1, 1]} : vector<4x32x8xbf16> to vector<4x16x8xbf16>
    "tpu.trace_start"() <{level = 10 : i32, message = "bid,bjd->bij"}> : () -> ()
    %cst_62 = arith.constant dense<0.000000e+00> : vector<4x16x16xf32>
    %216 = tpu.matmul %214, %215, %cst_62 {dimension_numbers = #tpu.dot_dimension_numbers<[2], [2], [1], [1], [0, 0, 0, 1, 1, 1], [0], [0]>} : vector<4x16x8xbf16>, vector<4x16x8xbf16>, vector<4x16x16xf32> -> vector<4x16x16xf32>
    "tpu.trace_stop"() : () -> ()
    %cst_63 = arith.constant dense<0xFF800000> : vector<4x16xf32>
    %217 = vector.multi_reduction <maximumf>, %216, %cst_63 [2] : vector<4x16x16xf32> to vector<4x16xf32>
    %218 = vector.shape_cast %217 : vector<4x16xf32> to vector<4x16x1xf32>
    %219 = vector.broadcast %218 : vector<4x16x1xf32> to vector<4x16x16xf32>
    %220 = arith.subf %216, %219 : vector<4x16x16xf32>
    %221 = math.exp %220 : vector<4x16x16xf32>
    %cst_64 = arith.constant dense<0.000000e+00> : vector<4x16xf32>
    %222 = vector.multi_reduction <add>, %221, %cst_64 [2] : vector<4x16x16xf32> to vector<4x16xf32>
    %223 = vector.shape_cast %222 : vector<4x16xf32> to vector<4x16x1xf32>
    %224 = tpu.reciprocal %223 {approx = true} : vector<4x16x1xf32> -> vector<4x16x1xf32>
    %225 = vector.broadcast %224 : vector<4x16x1xf32> to vector<4x16x16xf32>
    %226 = arith.mulf %221, %225 : vector<4x16x16xf32>
    %227 = arith.truncf %226 : vector<4x16x16xf32> to vector<4x16x16xbf16>
    %228 = vector.extract_strided_slice %213 {offsets = [0, 0, 0], sizes = [4, 16, 8], strides = [1, 1, 1]} : vector<4x32x8xbf16> to vector<4x16x8xbf16>
    "tpu.trace_start"() <{level = 10 : i32, message = "bij,bjd->bid"}> : () -> ()
    %cst_65 = arith.constant dense<0.000000e+00> : vector<4x16x8xf32>
    %229 = tpu.matmul %227, %228, %cst_65 {dimension_numbers = #tpu.dot_dimension_numbers<[2], [1], [1], [2], [0, 0, 0, 1, 1, 2], [0], [0]>} : vector<4x16x16xbf16>, vector<4x16x8xbf16>, vector<4x16x8xf32> -> vector<4x16x8xf32>
    "tpu.trace_stop"() : () -> ()
    %230 = vector.extract_strided_slice %211 {offsets = [0, 0, 0], sizes = [4, 16, 8], strides = [1, 1, 1]} : vector<4x32x8xbf16> to vector<4x16x8xbf16>
    %231 = vector.extract_strided_slice %212 {offsets = [0, 16, 0], sizes = [4, 16, 8], strides = [1, 1, 1]} : vector<4x32x8xbf16> to vector<4x16x8xbf16>
    "tpu.trace_start"() <{level = 10 : i32, message = "bid,bjd->bij"}> : () -> ()
    %cst_66 = arith.constant dense<0.000000e+00> : vector<4x16x16xf32>
    %232 = tpu.matmul %230, %231, %cst_66 {dimension_numbers = #tpu.dot_dimension_numbers<[2], [2], [1], [1], [0, 0, 0, 1, 1, 1], [0], [0]>} : vector<4x16x8xbf16>, vector<4x16x8xbf16>, vector<4x16x16xf32> -> vector<4x16x16xf32>
    "tpu.trace_stop"() : () -> ()
    %cst_67 = arith.constant dense<0xFF800000> : vector<4x16xf32>
    %233 = vector.multi_reduction <maximumf>, %232, %cst_67 [2] : vector<4x16x16xf32> to vector<4x16xf32>
    %234 = vector.shape_cast %233 : vector<4x16xf32> to vector<4x16x1xf32>
    %235 = vector.broadcast %234 : vector<4x16x1xf32> to vector<4x16x16xf32>
    %236 = arith.subf %232, %235 : vector<4x16x16xf32>
    %237 = math.exp %236 : vector<4x16x16xf32>
    %cst_68 = arith.constant dense<0.000000e+00> : vector<4x16xf32>
    %238 = vector.multi_reduction <add>, %237, %cst_68 [2] : vector<4x16x16xf32> to vector<4x16xf32>
    %239 = vector.shape_cast %238 : vector<4x16xf32> to vector<4x16x1xf32>
    %240 = tpu.reciprocal %239 {approx = true} : vector<4x16x1xf32> -> vector<4x16x1xf32>
    %241 = vector.broadcast %240 : vector<4x16x1xf32> to vector<4x16x16xf32>
    %242 = arith.mulf %237, %241 : vector<4x16x16xf32>
    %243 = arith.truncf %242 : vector<4x16x16xf32> to vector<4x16x16xbf16>
    %244 = vector.extract_strided_slice %213 {offsets = [0, 16, 0], sizes = [4, 16, 8], strides = [1, 1, 1]} : vector<4x32x8xbf16> to vector<4x16x8xbf16>
    "tpu.trace_start"() <{level = 10 : i32, message = "bij,bjd->bid"}> : () -> ()
    %cst_69 = arith.constant dense<0.000000e+00> : vector<4x16x8xf32>
    %245 = tpu.matmul %243, %244, %cst_69 {dimension_numbers = #tpu.dot_dimension_numbers<[2], [1], [1], [2], [0, 0, 0, 1, 1, 2], [0], [0]>} : vector<4x16x16xbf16>, vector<4x16x8xbf16>, vector<4x16x8xf32> -> vector<4x16x8xf32>
    "tpu.trace_stop"() : () -> ()
    %246 = tpu.concatenate %124, %159, %194, %229 in 2 : vector<4x16x8xf32>, vector<4x16x8xf32>, vector<4x16x8xf32>, vector<4x16x8xf32> -> vector<4x16x32xf32>
    %247 = tpu.concatenate %140, %175, %210, %245 in 2 : vector<4x16x8xf32>, vector<4x16x8xf32>, vector<4x16x8xf32>, vector<4x16x8xf32> -> vector<4x16x32xf32>
    %248 = vector.shape_cast %246 : vector<4x16x32xf32> to vector<64x32xf32>
    %249 = arith.truncf %248 : vector<64x32xf32> to vector<64x32xbf16>
    %c0_70 = arith.constant 0 : index
    %c0_71 = arith.constant 0 : index
    %250 = vector.load %arg8[%c0_70, %c0_71] : memref<32x32xbf16, #tpu.memory_space<vmem>>, vector<32x32xbf16>
    %cst_72 = arith.constant dense<0.000000e+00> : vector<64x32xf32>
    %251 = tpu.matmul %249, %250, %cst_72 {dimension_numbers = #tpu.dot_dimension_numbers<[1], [0], [0], [1], [0, 0, 1, 1], [], []>} : vector<64x32xbf16>, vector<32x32xbf16>, vector<64x32xf32> -> vector<64x32xf32>
    %252 = vector.shape_cast %251 : vector<64x32xf32> to vector<4x16x32xf32>
    %253 = vector.shape_cast %247 : vector<4x16x32xf32> to vector<64x32xf32>
    %254 = arith.truncf %253 : vector<64x32xf32> to vector<64x32xbf16>
    %c0_73 = arith.constant 0 : index
    %c0_74 = arith.constant 0 : index
    %255 = vector.load %arg8[%c0_73, %c0_74] : memref<32x32xbf16, #tpu.memory_space<vmem>>, vector<32x32xbf16>
    %cst_75 = arith.constant dense<0.000000e+00> : vector<64x32xf32>
    %256 = tpu.matmul %254, %255, %cst_75 {dimension_numbers = #tpu.dot_dimension_numbers<[1], [0], [0], [1], [0, 0, 1, 1], [], []>} : vector<64x32xbf16>, vector<32x32xbf16>, vector<64x32xf32> -> vector<64x32xf32>
    %257 = vector.shape_cast %256 : vector<64x32xf32> to vector<4x16x32xf32>
    %258 = vector.extract_strided_slice %105 {offsets = [0, 0, 0], sizes = [4, 16, 32], strides = [1, 1, 1]} : vector<4x32x32xf32> to vector<4x16x32xf32>
    %259 = arith.addf %258, %252 : vector<4x16x32xf32>
    %c0_76 = arith.constant 0 : index
    %c0_77 = arith.constant 0 : index
    %260 = vector.load %arg5[%c0_76, %c0_77] : memref<1x32xf32, #tpu.memory_space<vmem>>, vector<1x32xf32>
    %261 = vector.shape_cast %260 : vector<1x32xf32> to vector<1x1x32xf32>
    %262 = vector.broadcast %261 : vector<1x1x32xf32> to vector<4x16x32xf32>
    %263 = arith.addf %259, %262 : vector<4x16x32xf32>
    %c0_78 = arith.constant 0 : index
    %c0_79 = arith.constant 0 : index
    %c0_80 = arith.constant 0 : index
    %264 = vector.load %arg9[%c0_78, %c0_79, %c0_80] : memref<4x32x32xf32, #tpu.memory_space<vmem>>, vector<4x16x32xf32>
    tpu.vector_store %arg9[%c0_78, %c0_79, %c0_80], %263 {strides = array<i32>} : memref<4x32x32xf32, #tpu.memory_space<vmem>>, vector<4x16x32xf32>,
    %265 = vector.extract_strided_slice %105 {offsets = [0, 16, 0], sizes = [4, 16, 32], strides = [1, 1, 1]} : vector<4x32x32xf32> to vector<4x16x32xf32>
    %266 = arith.addf %265, %257 : vector<4x16x32xf32>
    %c0_81 = arith.constant 0 : index
    %c0_82 = arith.constant 0 : index
    %267 = vector.load %arg5[%c0_81, %c0_82] : memref<1x32xf32, #tpu.memory_space<vmem>>, vector<1x32xf32>
    %268 = vector.shape_cast %267 : vector<1x32xf32> to vector<1x1x32xf32>
    %269 = vector.broadcast %268 : vector<1x1x32xf32> to vector<4x16x32xf32>
    %270 = arith.addf %266, %269 : vector<4x16x32xf32>
    %c0_83 = arith.constant 0 : index
    %c16 = arith.constant 16 : index
    %c0_84 = arith.constant 0 : index
    %271 = vector.load %arg9[%c0_83, %c16, %c0_84] : memref<4x32x32xf32, #tpu.memory_space<vmem>>, vector<4x16x32xf32>
    tpu.vector_store %arg9[%c0_83, %c16, %c0_84], %270 {strides = array<i32>} : memref<4x32x32xf32, #tpu.memory_space<vmem>>, vector<4x16x32xf32>,
    return
  }
  func.func @transform_0(%arg0: i32) -> (i32, i32, i32) {
    %c0_i32 = arith.constant 0 : i32
    %c0_i32_0 = arith.constant 0 : i32
    %c0_i32_1 = arith.constant 0 : i32
    return %arg0, %c0_i32, %c0_i32_0 : i32, i32, i32
  }
  func.func @transform_1(%arg0: i32) -> (i32, i32, i32) {
    %c0_i32 = arith.constant 0 : i32
    %c0_i32_0 = arith.constant 0 : i32
    %c0_i32_1 = arith.constant 0 : i32
    %c0_i32_2 = arith.constant 0 : i32
    return %c0_i32, %c0_i32_0, %c0_i32_1 : i32, i32, i32
  }
  func.func @transform_2(%arg0: i32) -> (i32, i32) {
    %c0_i32 = arith.constant 0 : i32
    %c0_i32_0 = arith.constant 0 : i32
    %c0_i32_1 = arith.constant 0 : i32
    return %c0_i32, %c0_i32_0 : i32, i32
  }
  func.func @transform_3(%arg0: i32) -> (i32, i32) {
    %c0_i32 = arith.constant 0 : i32
    %c0_i32_0 = arith.constant 0 : i32
    %c0_i32_1 = arith.constant 0 : i32
    return %c0_i32, %c0_i32_0 : i32, i32
  }
  func.func @transform_4(%arg0: i32) -> (i32, i32) {
    %c0_i32 = arith.constant 0 : i32
    %c0_i32_0 = arith.constant 0 : i32
    %c0_i32_1 = arith.constant 0 : i32
    return %c0_i32, %c0_i32_0 : i32, i32
  }
  func.func @transform_5(%arg0: i32) -> (i32, i32, i32) {
    %c0_i32 = arith.constant 0 : i32
    %c0_i32_0 = arith.constant 0 : i32
    %c0_i32_1 = arith.constant 0 : i32
    %c0_i32_2 = arith.constant 0 : i32
    return %c0_i32, %c0_i32_0, %c0_i32_1 : i32, i32, i32
  }
  func.func @transform_6(%arg0: i32) -> (i32, i32) {
    %c0_i32 = arith.constant 0 : i32
    %c0_i32_0 = arith.constant 0 : i32
    %c0_i32_1 = arith.constant 0 : i32
    return %c0_i32, %c0_i32_0 : i32, i32
  }
  func.func @transform_7(%arg0: i32) -> (i32, i32) {
    %c0_i32 = arith.constant 0 : i32
    %c0_i32_0 = arith.constant 0 : i32
    %c0_i32_1 = arith.constant 0 : i32
    return %c0_i32, %c0_i32_0 : i32, i32
  }
  func.func @transform_8(%arg0: i32) -> (i32, i32, i32) {
    %c0_i32 = arith.constant 0 : i32
    %c0_i32_0 = arith.constant 0 : i32
    %c0_i32_1 = arith.constant 0 : i32
    return %arg0, %c0_i32, %c0_i32_0 : i32, i32, i32
  }
}

</mosaic_0001>

<llo_original>
// kernel: tpu_custom_call.1
$region0: #{tpu_custom_call.1}
  #allocation0 [shape = 'u32[]', space=smem, size = 0x4, offset = 0x4, fixed_abs, tag = 'smem constant byte address 0x4 - core index']
  #allocation1 [shape = 'u32[72,128]{1,0:T(1,128)}', space=vmem, size = 0x9000, scoped, tag = 'internal scratch']
  %s0 = inlined_call_operand.hbm [shape: f32[8,32,32], index: 0, kind: input, shape index: {}]
  %s1 = inlined_call_operand.hbm [shape: f32[4,32,32], index: 1, kind: input, shape index: {}]
  %s2 = inlined_call_operand.hbm [shape: bf16[32,96], index: 2, kind: input, shape index: {}]
  %s3 = inlined_call_operand.hbm [shape: bf16[32,32], index: 3, kind: input, shape index: {}]
  %s4 = inlined_call_operand.vmem [shape: f32[1,32], index: 4, kind: input, shape index: {}]
  %s5 = inlined_call_operand.hbm [shape: f32[1,32,32], index: 5, kind: input, shape index: {}]
  %s6 = inlined_call_operand.hbm [shape: bf16[32,96], index: 6, kind: input, shape index: {}]
  %s7 = inlined_call_operand.hbm [shape: bf16[32,32], index: 7, kind: input, shape index: {}]
  %s8 = inlined_call_operand.hbm [shape: f32[8,32,32], index: 8, kind: output, shape index: {}]
  %s9 = sld [smem:[#allocation0]]
  $region93: #{tpu_custom_call.1} parent=0
    _
  %s11 = ssub.s32 1, %s9
  %s12 = scalar_select 0, %s11, %s9
  $region1: #{tpu_custom_call.1} parent=0
    #allocation2 [shape = 'u8[131072]{0}', space=vmem, size = 0x20000, scoped, tag = 'input window, operand 0']
    #allocation3 [shape = 's32[2]{0}', space=sflag, size = 0x8, scoped, tag = 'scoped memory for tpu_custom_call.1']
    #allocation4 [shape = 's32[2]{0}', space=sflag, size = 0x8, scoped, tag = 'scoped memory for tpu_custom_call.1']
    #allocation5 [shape = 'u8[65536]{0}', space=vmem, size = 0x10000, scoped, tag = 'input window, operand 1, single buffered']
    #allocation6 [shape = 's32[1]{0}', space=sflag, size = 0x4, scoped, tag = 'scoped memory for tpu_custom_call.1']
    #allocation7 [shape = 'u8[8192]{0}', space=vmem, size = 0x2000, scoped, tag = 'input window, operand 2, single buffered']
    #allocation8 [shape = 'u8[8192]{0}', space=vmem, size = 0x2000, scoped, tag = 'input window, operand 3, single buffered']
    #allocation9 [shape = 's32[1]{0}', space=sflag, size = 0x4, scoped, tag = 'scoped memory for tpu_custom_call.1']
    #allocation10 [shape = 'u8[16384]{0}', space=vmem, size = 0x4000, scoped, tag = 'input window, operand 5, single buffered']
    #allocation11 [shape = 'u8[8192]{0}', space=vmem, size = 0x2000, scoped, tag = 'input window, operand 6, single buffered']
    #allocation12 [shape = 's32[1]{0}', space=sflag, size = 0x4, scoped, tag = 'scoped memory for tpu_custom_call.1']
    #allocation13 [shape = 'u8[8192]{0}', space=vmem, size = 0x2000, scoped, tag = 'input window, operand 7, single buffered']
    #allocation14 [shape = 'u8[131072]{0}', space=vmem, size = 0x20000, scoped, tag = 'output window, operand 0']
    %13 = vsyncpa [#allocation3], 0
    %s14 = scalar_lea.sflag [#allocation3], 1
    %15 = vsyncpa %s14, 0
    %16 = vsyncpa [#allocation6], 0
    %17 = vsyncpa [#allocation9], 0
    %18 = vsyncpa [#allocation12], 0
    %19 = vsyncpa [#allocation4], 0
    %s20 = scalar_lea.sflag [#allocation4], 1
    %21 = vsyncpa %s20, 0
    loop: start=0, step=1, limit=4
    $region2: #{tpu_custom_call.1} parent=1 // loop_pre_header
      _
    $region3: #{tpu_custom_call.1} parent=1 // loop_header
      %s23 = sphi 0, %s27
      %p24 = scmp.ge.s32.totalorder %s23, 4
      %s33 = sphi 0, %s35
      %s36 = sphi 0, %s33
      %s37 = sphi 0, %s36
      %s53 = sphi 0, %s37
      %s57 = sphi 0, %s57
      %s59 = sphi 0, %s57
      %s60 = sphi 0, %s59
      %s74 = sphi 0, %s60
      %s78 = sphi 0, %s78
      %s80 = sphi 0, %s78
      %s81 = sphi 0, %s80
      %s95 = sphi 0, %s81
      %s99 = sphi 0, %s99
      %s101 = sphi 0, %s99
      %s102 = sphi 0, %s101
      %s116 = sphi 0, %s102
      %s120 = sphi 0, %s120
      %s122 = sphi 0, %s120
      %s123 = sphi 0, %s122
      %s137 = sphi 0, %s123
      %s141 = sphi 0, %s141
      %s143 = sphi 0, %s141
      %s144 = sphi 0, %s143
      %s158 = sphi 0, %s144
      %s162 = sphi 0, %s162
      %s164 = sphi 0, %s162
      %s165 = sphi 0, %s164
      %s179 = sphi 0, %s165
      %s183 = sphi 0, %s183
      %s185 = sphi 0, %s183
      %s186 = sphi 0, %s185
      %s200 = sphi 0, %s186
      %s206 = sphi 0, %s208
      %s209 = sphi 0, %s206
      %s210 = sphi 0, %s209
      %s226 = sphi 0, %s210
    $region4: #{tpu_custom_call.1} parent=1 // loop_header_branch
      %26 = sbr.rel (%p24) target = $region8
    $region5: #{tpu_custom_call.1} parent=1 // loop_body
      %s28 = ssub.s32 %s23, 1
      %s29 = ssub.s32 %s23, 2
      %s30 = sadd.s32 %s23, 1
      %s31 = ssub.s32 %s23, %s30
      %p32 = scmp.eq.s32.totalorder %s31, 0
      %s34 = sadd.s32 %s33, 1
      %s35 = scalar_select %p32, %s33, %s34
      %p38 = pneg %p32
      %p39 = scmp.eq.s32.totalorder %s23, 1
      %p40 = por %p38, %p39
      %p41 = scmp.ne.s32.totalorder %s33, %s36
      %p42 = scmp.eq.s32.totalorder %s23, 0
      %p43 = por %p41, %p42
      %p44 = scmp.ne.s32.totalorder %s33, %s36
      %p45 = scmp.eq.s32.totalorder %s28, 1
      %p46 = por %p44, %p45
      %p47 = scmp.ne.s32.totalorder %s36, %s37
      %p48 = scmp.eq.s32.totalorder %s28, 0
      %p49 = por %p47, %p48
      %p50 = scmp.ne.s32.totalorder %s36, %s37
      %p51 = scmp.eq.s32.totalorder %s29, 1
      %p52 = por %p50, %p51
      %p54 = scmp.ne.s32.totalorder %s37, %s53
      %p55 = scmp.eq.s32.totalorder %s29, 0
      %p56 = por %p54, %p55
      %s58 = sadd.s32 %s57, 1
      %p61 = scmp.eq.s32.totalorder %s23, 1
      %p62 = scmp.ne.s32.totalorder %s57, %s59
      %p63 = scmp.eq.s32.totalorder %s23, 0
      %p64 = por %p62, %p63
      %p65 = scmp.ne.s32.totalorder %s57, %s59
      %p66 = scmp.eq.s32.totalorder %s28, 1
      %p67 = por %p65, %p66
      %p68 = scmp.ne.s32.totalorder %s59, %s60
      %p69 = scmp.eq.s32.totalorder %s28, 0
      %p70 = por %p68, %p69
      %p71 = scmp.ne.s32.totalorder %s59, %s60
      %p72 = scmp.eq.s32.totalorder %s29, 1
      %p73 = por %p71, %p72
      %p75 = scmp.ne.s32.totalorder %s60, %s74
      %p76 = scmp.eq.s32.totalorder %s29, 0
      %p77 = por %p75, %p76
      %s79 = sadd.s32 %s78, 1
      %p82 = scmp.eq.s32.totalorder %s23, 1
      %p83 = scmp.ne.s32.totalorder %s78, %s80
      %p84 = scmp.eq.s32.totalorder %s23, 0
      %p85 = por %p83, %p84
      %p86 = scmp.ne.s32.totalorder %s78, %s80
      %p87 = scmp.eq.s32.totalorder %s28, 1
      %p88 = por %p86, %p87
      %p89 = scmp.ne.s32.totalorder %s80, %s81
      %p90 = scmp.eq.s32.totalorder %s28, 0
      %p91 = por %p89, %p90
      %p92 = scmp.ne.s32.totalorder %s80, %s81
      %p93 = scmp.eq.s32.totalorder %s29, 1
      %p94 = por %p92, %p93
      %p96 = scmp.ne.s32.totalorder %s81, %s95
      %p97 = scmp.eq.s32.totalorder %s29, 0
      %p98 = por %p96, %p97
      %s100 = sadd.s32 %s99, 1
      %p103 = scmp.eq.s32.totalorder %s23, 1
      %p104 = scmp.ne.s32.totalorder %s99, %s101
      %p105 = scmp.eq.s32.totalorder %s23, 0
      %p106 = por %p104, %p105
      %p107 = scmp.ne.s32.totalorder %s99, %s101
      %p108 = scmp.eq.s32.totalorder %s28, 1
      %p109 = por %p107, %p108
      %p110 = scmp.ne.s32.totalorder %s101, %s102
      %p111 = scmp.eq.s32.totalorder %s28, 0
      %p112 = por %p110, %p111
      %p113 = scmp.ne.s32.totalorder %s101, %s102
      %p114 = scmp.eq.s32.totalorder %s29, 1
      %p115 = por %p113, %p114
      %p117 = scmp.ne.s32.totalorder %s102, %s116
      %p118 = scmp.eq.s32.totalorder %s29, 0
      %p119 = por %p117, %p118
      %s121 = sadd.s32 %s120, 1
      %p124 = scmp.eq.s32.totalorder %s23, 1
      %p125 = scmp.ne.s32.totalorder %s120, %s122
      %p126 = scmp.eq.s32.totalorder %s23, 0
      %p127 = por %p125, %p126
      %p128 = scmp.ne.s32.totalorder %s120, %s122
      %p129 = scmp.eq.s32.totalorder %s28, 1
      %p130 = por %p128, %p129
      %p131 = scmp.ne.s32.totalorder %s122, %s123
      %p132 = scmp.eq.s32.totalorder %s28, 0
      %p133 = por %p131, %p132
      %p134 = scmp.ne.s32.totalorder %s122, %s123
      %p135 = scmp.eq.s32.totalorder %s29, 1
      %p136 = por %p134, %p135
      %p138 = scmp.ne.s32.totalorder %s123, %s137
      %p139 = scmp.eq.s32.totalorder %s29, 0
      %p140 = por %p138, %p139
      %s142 = sadd.s32 %s141, 1
      %p145 = scmp.eq.s32.totalorder %s23, 1
      %p146 = scmp.ne.s32.totalorder %s141, %s143
      %p147 = scmp.eq.s32.totalorder %s23, 0
      %p148 = por %p146, %p147
      %p149 = scmp.ne.s32.totalorder %s141, %s143
      %p150 = scmp.eq.s32.totalorder %s28, 1
      %p151 = por %p149, %p150
      %p152 = scmp.ne.s32.totalorder %s143, %s144
      %p153 = scmp.eq.s32.totalorder %s28, 0
      %p154 = por %p152, %p153
      %p155 = scmp.ne.s32.totalorder %s143, %s144
      %p156 = scmp.eq.s32.totalorder %s29, 1
      %p157 = por %p155, %p156
      %p159 = scmp.ne.s32.totalorder %s144, %s158
      %p160 = scmp.eq.s32.totalorder %s29, 0
      %p161 = por %p159, %p160
      %s163 = sadd.s32 %s162, 1
      %p166 = scmp.eq.s32.totalorder %s23, 1
      %p167 = scmp.ne.s32.totalorder %s162, %s164
      %p168 = scmp.eq.s32.totalorder %s23, 0
      %p169 = por %p167, %p168
      %p170 = scmp.ne.s32.totalorder %s162, %s164
      %p171 = scmp.eq.s32.totalorder %s28, 1
      %p172 = por %p170, %p171
      %p173 = scmp.ne.s32.totalorder %s164, %s165
      %p174 = scmp.eq.s32.totalorder %s28, 0
      %p175 = por %p173, %p174
      %p176 = scmp.ne.s32.totalorder %s164, %s165
      %p177 = scmp.eq.s32.totalorder %s29, 1
      %p178 = por %p176, %p177
      %p180 = scmp.ne.s32.totalorder %s165, %s179
      %p181 = scmp.eq.s32.totalorder %s29, 0
      %p182 = por %p180, %p181
      %s184 = sadd.s32 %s183, 1
      %p187 = scmp.eq.s32.totalorder %s23, 1
      %p188 = scmp.ne.s32.totalorder %s183, %s185
      %p189 = scmp.eq.s32.totalorder %s23, 0
      %p190 = por %p188, %p189
      %p191 = scmp.ne.s32.totalorder %s183, %s185
      %p192 = scmp.eq.s32.totalorder %s28, 1
      %p193 = por %p191, %p192
      %p194 = scmp.ne.s32.totalorder %s185, %s186
      %p195 = scmp.eq.s32.totalorder %s28, 0
      %p196 = por %p194, %p195
      %p197 = scmp.ne.s32.totalorder %s185, %s186
      %p198 = scmp.eq.s32.totalorder %s29, 1
      %p199 = por %p197, %p198
      %p201 = scmp.ne.s32.totalorder %s186, %s200
      %p202 = scmp.eq.s32.totalorder %s29, 0
      %p203 = por %p201, %p202
      %s204 = ssub.s32 %s23, %s30
      %p205 = scmp.eq.s32.totalorder %s204, 0
      %s207 = sadd.s32 %s206, 1
      %s208 = scalar_select %p205, %s206, %s207
      %p211 = pneg %p205
      %p212 = scmp.eq.s32.totalorder %s23, 1
      %p213 = por %p211, %p212
      %p214 = scmp.ne.s32.totalorder %s206, %s209
      %p215 = scmp.eq.s32.totalorder %s23, 0
      %p216 = por %p214, %p215
      %p217 = scmp.ne.s32.totalorder %s206, %s209
      %p218 = scmp.eq.s32.totalorder %s28, 1
      %p219 = por %p217, %p218
      %p220 = scmp.ne.s32.totalorder %s209, %s210
      %p221 = scmp.eq.s32.totalorder %s28, 0
      %p222 = por %p220, %p221
      %p223 = scmp.ne.s32.totalorder %s209, %s210
      %p224 = scmp.eq.s32.totalorder %s29, 1
      %p225 = por %p223, %p224
      %p227 = scmp.ne.s32.totalorder %s210, %s226
      %p228 = scmp.eq.s32.totalorder %s29, 0
      %p229 = por %p227, %p228
      %p230 = scmp.le.s32.totalorder 1, %s23
      %p231 = scmp.lt.s32.totalorder %s23, 3
      %p232 = pnand %p230, %p231
      %p233 = pneg %p232
      // Predicated region
      $region9: #{tpu_custom_call.1} parent=5 // pred_check
        _
      $region10: #{tpu_custom_call.1} parent=5 // pred_check_branch
        %235 = sbr.rel (%p232) target = $region12
      $region11: #{tpu_custom_call.1} parent=5 // pred_region
        %s236 = ssub.s32 %s23, 1
        // Predicated region
        $region13: #{tpu_custom_call.1} parent=11 // pred_check
          %p237 = pneg %p70
        $region14: #{tpu_custom_call.1} parent=11 // pred_check_branch
          %239 = sbr.rel (%p237) target = $region16
        $region15: #{tpu_custom_call.1} parent=11 // pred_region
          %241 = vsyncadd [#allocation6], 0
          %s242 = sshll.u32 %s1, 4
          %s243 = int_to_ptr.hbm [resolvable:$true] %s242
          %s244 = sshll.u32 [#allocation5], 4
          %s245 = int_to_ptr.vmem [resolvable:$true] %s244
          %250 = dma.hbm_to_vmem [thread:$0]  %s243, 2048, %s245, [#allocation6], 128, 128, 8
        $region16: #{tpu_custom_call.1} parent=11 // pred_fallthru
          _
        // Predicated region
        $region17: #{tpu_custom_call.1} parent=11 // pred_check
          %p251 = pneg %p91
        $region18: #{tpu_custom_call.1} parent=11 // pred_check_branch
          %253 = sbr.rel (%p251) target = $region20
        $region19: #{tpu_custom_call.1} parent=11 // pred_region
          %255 = vsyncadd [#allocation6], 0
          %s256 = sshll.u32 %s2, 4
          %s257 = int_to_ptr.hbm [resolvable:$true] %s256
          %s258 = sshll.u32 [#allocation7], 4
          %s259 = int_to_ptr.vmem [resolvable:$true] %s258
          %264 = dma.hbm_to_vmem [thread:$0]  %s257, 256, %s259, [#allocation6], 64, 64, 4
        $region20: #{tpu_custom_call.1} parent=11 // pred_fallthru
          _
        // Predicated region
        $region21: #{tpu_custom_call.1} parent=11 // pred_check
          %p265 = pneg %p112
        $region22: #{tpu_custom_call.1} parent=11 // pred_check_branch
          %267 = sbr.rel (%p265) target = $region24
        $region23: #{tpu_custom_call.1} parent=11 // pred_region
          %269 = vsyncadd [#allocation9], 0
          %s270 = sshll.u32 %s3, 4
          %s271 = int_to_ptr.hbm [resolvable:$true] %s270
          %s272 = sshll.u32 [#allocation8], 4
          %s273 = int_to_ptr.vmem [resolvable:$true] %s272
          %278 = dma.hbm_to_vmem [thread:$0]  %s271, 256, %s273, [#allocation9], 64, 64, 4
        $region24: #{tpu_custom_call.1} parent=11 // pred_fallthru
          _
        // Predicated region
        $region25: #{tpu_custom_call.1} parent=11 // pred_check
          %p279 = pneg %p133
        $region26: #{tpu_custom_call.1} parent=11 // pred_check_branch
          %281 = sbr.rel (%p279) target = $region28
        $region27: #{tpu_custom_call.1} parent=11 // pred_region
          _
        $region28: #{tpu_custom_call.1} parent=11 // pred_fallthru
          _
        // Predicated region
        $region29: #{tpu_custom_call.1} parent=11 // pred_check
          %p282 = pneg %p154
        $region30: #{tpu_custom_call.1} parent=11 // pred_check_branch
          %284 = sbr.rel (%p282) target = $region32
        $region31: #{tpu_custom_call.1} parent=11 // pred_region
          %286 = vsyncadd [#allocation9], 0
          %s287 = sshll.u32 %s5, 4
          %s288 = int_to_ptr.hbm [resolvable:$true] %s287
          %s289 = sshll.u32 [#allocation10], 4
          %s290 = int_to_ptr.vmem [resolvable:$true] %s289
          %295 = dma.hbm_to_vmem [thread:$0]  %s288, 512, %s290, [#allocation9], 128, 128, 8
        $region32: #{tpu_custom_call.1} parent=11 // pred_fallthru
          _
        // Predicated region
        $region33: #{tpu_custom_call.1} parent=11 // pred_check
          %p296 = pneg %p175
        $region34: #{tpu_custom_call.1} parent=11 // pred_check_branch
          %298 = sbr.rel (%p296) target = $region36
        $region35: #{tpu_custom_call.1} parent=11 // pred_region
          %300 = vsyncadd [#allocation12], 0
          %s301 = sshll.u32 %s6, 4
          %s302 = int_to_ptr.hbm [resolvable:$true] %s301
          %s303 = sshll.u32 [#allocation11], 4
          %s304 = int_to_ptr.vmem [resolvable:$true] %s303
          %309 = dma.hbm_to_vmem [thread:$0]  %s302, 256, %s304, [#allocation12], 64, 64, 4
        $region36: #{tpu_custom_call.1} parent=11 // pred_fallthru
          _
        // Predicated region
        $region37: #{tpu_custom_call.1} parent=11 // pred_check
          %p310 = pneg %p196
        $region38: #{tpu_custom_call.1} parent=11 // pred_check_branch
          %312 = sbr.rel (%p310) target = $region40
        $region39: #{tpu_custom_call.1} parent=11 // pred_region
          %314 = vsyncadd [#allocation12], 0
          %s315 = sshll.u32 %s7, 4
          %s316 = int_to_ptr.hbm [resolvable:$true] %s315
          %s317 = sshll.u32 [#allocation13], 4
          %s318 = int_to_ptr.vmem [resolvable:$true] %s317
          %323 = dma.hbm_to_vmem [thread:$0]  %s316, 256, %s318, [#allocation12], 64, 64, 4
        $region40: #{tpu_custom_call.1} parent=11 // pred_fallthru
          _
      $region12: #{tpu_custom_call.1} parent=5 // pred_fallthru
        _
      %p324 = scmp.lt.s32.totalorder %s23, 2
      // Predicated region
      $region41: #{tpu_custom_call.1} parent=5 // pred_check
        %p325 = pneg %p324
      $region42: #{tpu_custom_call.1} parent=5 // pred_check_branch
        %327 = sbr.rel (%p325) target = $region44
      $region43: #{tpu_custom_call.1} parent=5 // pred_region
        // Predicated region
        $region45: #{tpu_custom_call.1} parent=43 // pred_check
          %p328 = pneg %p43
        $region46: #{tpu_custom_call.1} parent=43 // pred_check_branch
          %330 = sbr.rel (%p328) target = $region48
        $region47: #{tpu_custom_call.1} parent=43 // pred_region
          %s331 = sand.u32 %s33, 1
          %s332 = scalar_lea.sflag [#allocation3], %s331
          %s333 = sand.u32 %s33, 1
          %s334 = smul.addr %s333, 128
          %s335 = scalar_lea.vmem [#allocation2], %s334
          %s336 = smul.u32 4, %s23
          %338 = vsyncadd %s332, 0
          %s339 = smul.addr %s336, 4
          %s340 = smul.addr %s339, 8
          %s341 = scalar_lea.hbm %s0, %s340
          %s342 = sshll.u32 %s341, 4
          %s343 = int_to_ptr.hbm [resolvable:$true] %s342
          %s344 = sshll.u32 %s335, 4
          %s345 = int_to_ptr.vmem [resolvable:$true] %s344
          %350 = dma.hbm_to_vmem [thread:$0]  %s343, 2048, %s345, %s332, 128, 128, 8
        $region48: #{tpu_custom_call.1} parent=43 // pred_fallthru
          _
      $region44: #{tpu_custom_call.1} parent=5 // pred_fallthru
        _
      %p351 = scmp.le.s32.totalorder 1, %s23
      %p352 = scmp.lt.s32.totalorder %s23, 3
      %p353 = pnand %p351, %p352
      %p354 = pneg %p353
      // Predicated region
      $region49: #{tpu_custom_call.1} parent=5 // pred_check
        _
      $region50: #{tpu_custom_call.1} parent=5 // pred_check_branch
        %356 = sbr.rel (%p353) target = $region52
      $region51: #{tpu_custom_call.1} parent=5 // pred_region
        %s357 = ssub.s32 %s23, 1
        %s358 = sand.u32 %s36, 1
        %s359 = scalar_lea.sflag [#allocation3], %s358
        %s360 = sand.u32 %s36, 1
        %s361 = smul.addr %s360, 128
        %s362 = scalar_lea.vmem [#allocation2], %s361
        // Predicated region
        $region53: #{tpu_custom_call.1} parent=51 // pred_check
          %p363 = pneg %p49
        $region54: #{tpu_custom_call.1} parent=51 // pred_check_branch
          %365 = sbr.rel (%p363) target = $region56
        $region55: #{tpu_custom_call.1} parent=51 // pred_region
          %367 = dma.done %s359, 2048
        $region56: #{tpu_custom_call.1} parent=51 // pred_fallthru
          _
        // Predicated region
        $region57: #{tpu_custom_call.1} parent=51 // pred_check
          %p368 = pneg %p70
        $region58: #{tpu_custom_call.1} parent=51 // pred_check_branch
          %370 = sbr.rel (%p368) target = $region60
        $region59: #{tpu_custom_call.1} parent=51 // pred_region
          %372 = dma.done [#allocation6], 2048
        $region60: #{tpu_custom_call.1} parent=51 // pred_fallthru
          _
        // Predicated region
        $region61: #{tpu_custom_call.1} parent=51 // pred_check
          %p373 = pneg %p91
        $region62: #{tpu_custom_call.1} parent=51 // pred_check_branch
          %375 = sbr.rel (%p373) target = $region64
        $region63: #{tpu_custom_call.1} parent=51 // pred_region
          %377 = dma.done [#allocation6], 256
        $region64: #{tpu_custom_call.1} parent=51 // pred_fallthru
          _
        // Predicated region
        $region65: #{tpu_custom_call.1} parent=51 // pred_check
          %p378 = pneg %p112
        $region66: #{tpu_custom_call.1} parent=51 // pred_check_branch
          %380 = sbr.rel (%p378) target = $region68
        $region67: #{tpu_custom_call.1} parent=51 // pred_region
          %382 = dma.done [#allocation9], 256
        $region68: #{tpu_custom_call.1} parent=51 // pred_fallthru
          _
        // Predicated region
        $region69: #{tpu_custom_call.1} parent=51 // pred_check
          %p383 = pneg %p154
        $region70: #{tpu_custom_call.1} parent=51 // pred_check_branch
          %385 = sbr.rel (%p383) target = $region72
        $region71: #{tpu_custom_call.1} parent=51 // pred_region
          %387 = dma.done [#allocation9], 512
        $region72: #{tpu_custom_call.1} parent=51 // pred_fallthru
          _
        // Predicated region
        $region73: #{tpu_custom_call.1} parent=51 // pred_check
          %p388 = pneg %p175
        $region74: #{tpu_custom_call.1} parent=51 // pred_check_branch
          %390 = sbr.rel (%p388) target = $region76
        $region75: #{tpu_custom_call.1} parent=51 // pred_region
          %392 = dma.done [#allocation12], 256
        $region76: #{tpu_custom_call.1} parent=51 // pred_fallthru
          _
        // Predicated region
        $region77: #{tpu_custom_call.1} parent=51 // pred_check
          %p393 = pneg %p196
        $region78: #{tpu_custom_call.1} parent=51 // pred_check_branch
          %395 = sbr.rel (%p393) target = $region80
        $region79: #{tpu_custom_call.1} parent=51 // pred_region
          %397 = dma.done [#allocation12], 256
        $region80: #{tpu_custom_call.1} parent=51 // pred_fallthru
          _
        %s398 = sand.u32 %s36, 1
        %s399 = scalar_lea.sflag [#allocation3], %s398
        %s400 = sand.u32 %s36, 1
        %s401 = smul.addr %s400, 128
        %s402 = scalar_lea.vmem [#allocation2], %s401
        %p403 = pneg %p49
        %p404 = pneg %p46
        %p405 = pneg %p70
        %p406 = pneg %p67
        %p407 = pneg %p91
        %p408 = pneg %p88
        %p409 = pneg %p112
        %p410 = pneg %p109
        %p411 = pneg %p133
        %p412 = pneg %p130
        %p413 = pneg %p154
        %p414 = pneg %p151
        %p415 = pneg %p175
        %p416 = pneg %p172
        %p417 = pneg %p196
        %p418 = pneg %p193
        %p419 = pneg %p222
        %p420 = pneg %p219
        %s421 = sand.u32 %s209, 1
        %s422 = scalar_lea.sflag [#allocation4], %s421
        %s423 = sand.u32 %s209, 1
        %s424 = smul.addr %s423, 128
        %s425 = scalar_lea.vmem [#allocation14], %s424
        %s426 = smul.u32 4, %s28
        %s427 = smul.u32 4, %s28
        %v429 = vld [vmem:[%s362] sm:$0xff]
        %v430 = vld [vmem:[%s362 + $0x8] sm:$0xff]
        %v431 = vld [vmem:[%s362 + $0x10] sm:$0xff]
        %v432 = vld [vmem:[%s362 + $0x18] sm:$0xff]
        %v433 = vld [vmem:[%s362 + $0x20] sm:$0xff]
        %v434 = vld [vmem:[%s362 + $0x28] sm:$0xff]
        %v435 = vld [vmem:[%s362 + $0x30] sm:$0xff]
        %v436 = vld [vmem:[%s362 + $0x38] sm:$0xff]
        %v437 = vld [vmem:[%s362 + $0x40] sm:$0xff]
        %v438 = vld [vmem:[%s362 + $0x48] sm:$0xff]
        %v439 = vld [vmem:[%s362 + $0x50] sm:$0xff]
        %v440 = vld [vmem:[%s362 + $0x58] sm:$0xff]
        %v441 = vld [vmem:[%s362 + $0x60] sm:$0xff]
        %v442 = vld [vmem:[%s362 + $0x68] sm:$0xff]
        %v443 = vld [vmem:[%s362 + $0x70] sm:$0xff]
        %v444 = vld [vmem:[%s362 + $0x78] sm:$0xff]
        %v445 = vpack.c.bf16 %v430, %v429
        %v446 = vpack.c.bf16 %v432, %v431
        %v447 = vpack.c.bf16 %v434, %v433
        %v448 = vpack.c.bf16 %v436, %v435
        %v449 = vpack.c.bf16 %v438, %v437
        %v450 = vpack.c.bf16 %v440, %v439
        %v451 = vpack.c.bf16 %v442, %v441
        %v452 = vpack.c.bf16 %v444, %v443
        %v453 = vld [vmem:[#allocation7] sm:$0xf]
        %v454 = vld [vmem:[#allocation7 + $0x4] sm:$0xf]
        %v455 = vld [vmem:[#allocation7 + $0x8] sm:$0xf]
        %v456 = vld [vmem:[#allocation7 + $0xc] sm:$0xf]
        %v461 = vunpack.c.l.b16 %v453
        %v462 = vunpack.c.l.b16 %v454
        %v463 = vunpack.c.l.b16 %v455
        %v464 = vunpack.c.l.b16 %v456
        %v465 = vpack.c.b16 %v462, %v461
        %v466 = vpack.c.b16 %v464, %v463
        %vm469 = vcmask 261120
        %v471 = vsel %vm469, %v445, 0
        %v474 = vsel %vm469, %v446, 0
        %v477 = vsel %vm469, %v447, 0
        %v480 = vsel %vm469, %v448, 0
        %v483 = vsel %vm469, %v449, 0
        %v486 = vsel %vm469, %v450, 0
        %v489 = vsel %vm469, %v451, 0
        %v492 = vsel %vm469, %v452, 0
        %494 = vmatpush.bf16.msra.mxu0 0
        %495 = vmatpush.bf16.msra.mxu0 0
        %496 = vmatpush.bf16.msra.mxu0 0
        %497 = vmatpush.bf16.msra.mxu0 0
        %498 = vmatpush.bf16.msra.mxu0 0
        %499 = vmatpush.bf16.msra.mxu0 0
        %500 = vmatpush.bf16.msra.mxu0 %v466
        %501 = vmatpush.bf16.msra.mxu0 %v465
        %502 = vmatmul.bf16.gmra.mxu0 %v471
        %v503 = vpop.f32.mrf.mxu0
        %v504 = vadd.f32 0.0, %v503
        %v505 = vpop.f32.mrf.mxu0
        %v506 = vadd.f32 0.0, %v505
        %507 = vmatmul.bf16.gmra.mxu0 %v474
        %v508 = vpop.f32.mrf.mxu0
        %v509 = vadd.f32 0.0, %v508
        %v510 = vpop.f32.mrf.mxu0
        %v511 = vadd.f32 0.0, %v510
        %512 = vmatmul.bf16.gmra.mxu0 %v477
        %v513 = vpop.f32.mrf.mxu0
        %v514 = vadd.f32 0.0, %v513
        %v515 = vpop.f32.mrf.mxu0
        %v516 = vadd.f32 0.0, %v515
        %517 = vmatmul.bf16.gmra.mxu0 %v480
        %v518 = vpop.f32.mrf.mxu0
        %v519 = vadd.f32 0.0, %v518
        %v520 = vpop.f32.mrf.mxu0
        %v521 = vadd.f32 0.0, %v520
        %522 = vmatmul.bf16.gmra.mxu0 %v483
        %v523 = vpop.f32.mrf.mxu0
        %v524 = vadd.f32 0.0, %v523
        %v525 = vpop.f32.mrf.mxu0
        %v526 = vadd.f32 0.0, %v525
        %527 = vmatmul.bf16.gmra.mxu0 %v486
        %v528 = vpop.f32.mrf.mxu0
        %v529 = vadd.f32 0.0, %v528
        %v530 = vpop.f32.mrf.mxu0
        %v531 = vadd.f32 0.0, %v530
        %532 = vmatmul.bf16.gmra.mxu0 %v489
        %v533 = vpop.f32.mrf.mxu0
        %v534 = vadd.f32 0.0, %v533
        %v535 = vpop.f32.mrf.mxu0
        %v536 = vadd.f32 0.0, %v535
        %537 = vmatmul.bf16.gmra.mxu0 %v492
        %v538 = vpop.f32.mrf.mxu0
        %v539 = vadd.f32 0.0, %v538
        %v540 = vpop.f32.mrf.mxu0
        %v541 = vadd.f32 0.0, %v540
        %542 = vdwg.mxu0
        %v543 = vpack.c.bf16 %v504, %v504
        %v544 = vpack.c.bf16 %v506, %v506
        %v545 = vpack.c.bf16 %v509, %v509
        %v546 = vpack.c.bf16 %v511, %v511
        %v547 = vpack.c.bf16 %v514, %v514
        %v548 = vpack.c.bf16 %v516, %v516
        %v549 = vpack.c.bf16 %v519, %v519
        %v550 = vpack.c.bf16 %v521, %v521
        %v551 = vpack.c.bf16 %v524, %v524
        %v552 = vpack.c.bf16 %v526, %v526
        %v553 = vpack.c.bf16 %v529, %v529
        %v554 = vpack.c.bf16 %v531, %v531
        %v555 = vpack.c.bf16 %v534, %v534
        %v556 = vpack.c.bf16 %v536, %v536
        %v557 = vpack.c.bf16 %v539, %v539
        %v558 = vpack.c.bf16 %v541, %v541
        %v559 = vld [vmem:[#allocation10] sm:$0xff]
        %v560 = vld [vmem:[#allocation10 + $0x8] sm:$0xff]
        %v561 = vld [vmem:[#allocation10 + $0x10] sm:$0xff]
        %v562 = vld [vmem:[#allocation10 + $0x18] sm:$0xff]
        %v563 = vadd.f32 %v429, %v559
        %v564 = vadd.f32 %v430, %v560
        %v565 = vadd.f32 %v431, %v561
        %v566 = vadd.f32 %v432, %v562
        %v567 = vadd.f32 %v433, %v559
        %v568 = vadd.f32 %v434, %v560
        %v569 = vadd.f32 %v435, %v561
        %v570 = vadd.f32 %v436, %v562
        %v571 = vadd.f32 %v437, %v559
        %v572 = vadd.f32 %v438, %v560
        %v573 = vadd.f32 %v439, %v561
        %v574 = vadd.f32 %v440, %v562
        %v575 = vadd.f32 %v441, %v559
        %v576 = vadd.f32 %v442, %v560
        %v577 = vadd.f32 %v443, %v561
        %v578 = vadd.f32 %v444, %v562
        %v579 = vpack.c.bf16 %v564, %v563
        %v580 = vpack.c.bf16 %v566, %v565
        %v581 = vpack.c.bf16 %v568, %v567
        %v582 = vpack.c.bf16 %v570, %v569
        %v583 = vpack.c.bf16 %v572, %v571
        %v584 = vpack.c.bf16 %v574, %v573
        %v585 = vpack.c.bf16 %v576, %v575
        %v586 = vpack.c.bf16 %v578, %v577
        %v587 = vld [vmem:[#allocation11] sm:$0xf]
        %v588 = vld [vmem:[#allocation11 + $0x4] sm:$0xf]
        %v589 = vld [vmem:[#allocation11 + $0x8] sm:$0xf]
        %v590 = vld [vmem:[#allocation11 + $0xc] sm:$0xf]
        %v595 = vunpack.c.l.b16 %v587
        %v596 = vunpack.c.l.b16 %v588
        %v597 = vunpack.c.l.b16 %v589
        %v598 = vunpack.c.l.b16 %v590
        %v599 = vpack.c.b16 %v596, %v595
        %v600 = vpack.c.b16 %v598, %v597
        %v604 = vsel %vm469, %v579, 0
        %v607 = vsel %vm469, %v580, 0
        %v610 = vsel %vm469, %v581, 0
        %v613 = vsel %vm469, %v582, 0
        %v616 = vsel %vm469, %v583, 0
        %v619 = vsel %vm469, %v584, 0
        %v622 = vsel %vm469, %v585, 0
        %v625 = vsel %vm469, %v586, 0
        %627 = vmatpush.bf16.msra.mxu0 0
        %628 = vmatpush.bf16.msra.mxu0 0
        %629 = vmatpush.bf16.msra.mxu0 0
        %630 = vmatpush.bf16.msra.mxu0 0
        %631 = vmatpush.bf16.msra.mxu0 0
        %632 = vmatpush.bf16.msra.mxu0 0
        %633 = vmatpush.bf16.msra.mxu0 %v600
        %634 = vmatpush.bf16.msra.mxu0 %v599
        %635 = vmatmul.bf16.gmra.mxu0 %v604
        %v636 = vpop.f32.mrf.mxu0
        %v637 = vadd.f32 0.0, %v636
        %v638 = vpop.f32.mrf.mxu0
        %v639 = vadd.f32 0.0, %v638
        %640 = vmatmul.bf16.gmra.mxu0 %v607
        %v641 = vpop.f32.mrf.mxu0
        %v642 = vadd.f32 0.0, %v641
        %v643 = vpop.f32.mrf.mxu0
        %v644 = vadd.f32 0.0, %v643
        %645 = vmatmul.bf16.gmra.mxu0 %v610
        %v646 = vpop.f32.mrf.mxu0
        %v647 = vadd.f32 0.0, %v646
        %v648 = vpop.f32.mrf.mxu0
        %v649 = vadd.f32 0.0, %v648
        %650 = vmatmul.bf16.gmra.mxu0 %v613
        %v651 = vpop.f32.mrf.mxu0
        %v652 = vadd.f32 0.0, %v651
        %v653 = vpop.f32.mrf.mxu0
        %v654 = vadd.f32 0.0, %v653
        %655 = vmatmul.bf16.gmra.mxu0 %v616
        %v656 = vpop.f32.mrf.mxu0
        %v657 = vadd.f32 0.0, %v656
        %v658 = vpop.f32.mrf.mxu0
        %v659 = vadd.f32 0.0, %v658
        %660 = vmatmul.bf16.gmra.mxu0 %v619
        %v661 = vpop.f32.mrf.mxu0
        %v662 = vadd.f32 0.0, %v661
        %v663 = vpop.f32.mrf.mxu0
        %v664 = vadd.f32 0.0, %v663
        %665 = vmatmul.bf16.gmra.mxu0 %v622
        %v666 = vpop.f32.mrf.mxu0
        %v667 = vadd.f32 0.0, %v666
        %v668 = vpop.f32.mrf.mxu0
        %v669 = vadd.f32 0.0, %v668
        %670 = vmatmul.bf16.gmra.mxu0 %v625
        %v671 = vpop.f32.mrf.mxu0
        %v672 = vadd.f32 0.0, %v671
        %v673 = vpop.f32.mrf.mxu0
        %v674 = vadd.f32 0.0, %v673
        %675 = vdwg.mxu0
        %v676 = vpack.c.bf16 %v637, %v637
        %v677 = vpack.c.bf16 %v639, %v639
        %v678 = vpack.c.bf16 %v642, %v642
        %v679 = vpack.c.bf16 %v644, %v644
        %v680 = vpack.c.bf16 %v647, %v647
        %v681 = vpack.c.bf16 %v649, %v649
        %v682 = vpack.c.bf16 %v652, %v652
        %v683 = vpack.c.bf16 %v654, %v654
        %v684 = vpack.c.bf16 %v657, %v657
        %v685 = vpack.c.bf16 %v659, %v659
        %v686 = vpack.c.bf16 %v662, %v662
        %v687 = vpack.c.bf16 %v664, %v664
        %v688 = vpack.c.bf16 %v667, %v667
        %v689 = vpack.c.bf16 %v669, %v669
        %v690 = vpack.c.bf16 %v672, %v672
        %v691 = vpack.c.bf16 %v674, %v674
        %v692 = vld [vmem:[#allocation5] sm:$0xff]
        %v693 = vld [vmem:[#allocation5 + $0x8] sm:$0xff]
        %v694 = vld [vmem:[#allocation5 + $0x10] sm:$0xff]
        %v695 = vld [vmem:[#allocation5 + $0x18] sm:$0xff]
        %v700 = vunpack.c.l.b16 %v543
        %v701 = vunpack.c.l.b16 %v544
        %v702 = vunpack.c.l.b16 %v545
        %v703 = vunpack.c.l.b16 %v546
        %v704 = vpack.c.b16 %v701, %v700
        %v705 = vpack.c.b16 %v703, %v702
        %706 = vrot.lane.b32.xlu0 %v704, 96
        %v707 = vpop.permute.xlu0 %706
        %708 = vrot.lane.b32.xlu0 %v705, 96
        %v709 = vpop.permute.xlu0 %708
        %vm710 = vcmask 64512
        %v712 = vsel %vm710, %v704, 0
        %v715 = vsel %vm710, %v705, 0
        %v718 = vsel %vm710, %v707, 0
        %v721 = vsel %vm710, %v709, 0
        %723 = vmatpush.bf16.xpose.msra.mxu0 0
        %724 = vmatpush.bf16.xpose.msra.mxu0 0
        %725 = vmatpush.bf16.xpose.msra.mxu0 0
        %726 = vmatpush.bf16.xpose.msra.mxu0 0
        %727 = vmatpush.bf16.xpose.msra.mxu0 0
        %728 = vmatpush.bf16.xpose.msra.mxu0 0
        %729 = vmatpush.bf16.xpose.msra.mxu0 %v721
        %730 = vmatpush.bf16.xpose.msra.mxu0 %v718
        %731 = vmatmul.bf16.gmra.mxu0 %v712
        %v732 = vpop.f32.mrf.mxu0
        %v733 = vadd.f32 %v692, %v732
        %v734 = vpop.f32.mrf.mxu0
        %v735 = vadd.f32 %v693, %v734
        %736 = vmatmul.bf16.gmra.mxu0 %v715
        %v737 = vpop.f32.mrf.mxu0
        %v738 = vadd.f32 %v694, %v737
        %v739 = vpop.f32.mrf.mxu0
        %v740 = vadd.f32 %v695, %v739
        %741 = vdwg.mxu0
        %v746 = vunpack.c.l.b16 %v547
        %v747 = vunpack.c.l.b16 %v548
        %v748 = vunpack.c.l.b16 %v549
        %v749 = vunpack.c.l.b16 %v550
        %v750 = vpack.c.b16 %v747, %v746
        %v751 = vpack.c.b16 %v749, %v748
        %752 = vrot.lane.b32.xlu0 %v750, 96
        %v753 = vpop.permute.xlu0 %752
        %754 = vrot.lane.b32.xlu0 %v751, 96
        %v755 = vpop.permute.xlu0 %754
        %v757 = vsel %vm710, %v750, 0
        %v760 = vsel %vm710, %v751, 0
        %v763 = vsel %vm710, %v753, 0
        %v766 = vsel %vm710, %v755, 0
        %768 = vmatpush.bf16.xpose.msra.mxu0 0
        %769 = vmatpush.bf16.xpose.msra.mxu0 0
        %770 = vmatpush.bf16.xpose.msra.mxu0 0
        %771 = vmatpush.bf16.xpose.msra.mxu0 0
        %772 = vmatpush.bf16.xpose.msra.mxu0 0
        %773 = vmatpush.bf16.xpose.msra.mxu0 0
        %774 = vmatpush.bf16.xpose.msra.mxu0 %v766
        %775 = vmatpush.bf16.xpose.msra.mxu0 %v763
        %776 = vmatmul.bf16.gmra.mxu0 %v757
        %v777 = vpop.f32.mrf.mxu0
        %v778 = vadd.f32 %v692, %v777
        %v779 = vpop.f32.mrf.mxu0
        %v780 = vadd.f32 %v693, %v779
        %781 = vmatmul.bf16.gmra.mxu0 %v760
        %v782 = vpop.f32.mrf.mxu0
        %v783 = vadd.f32 %v694, %v782
        %v784 = vpop.f32.mrf.mxu0
        %v785 = vadd.f32 %v695, %v784
        %786 = vdwg.mxu0
        %v791 = vunpack.c.l.b16 %v551
        %v792 = vunpack.c.l.b16 %v552
        %v793 = vunpack.c.l.b16 %v553
        %v794 = vunpack.c.l.b16 %v554
        %v795 = vpack.c.b16 %v792, %v791
        %v796 = vpack.c.b16 %v794, %v793
        %797 = vrot.lane.b32.xlu0 %v795, 96
        %v798 = vpop.permute.xlu0 %797
        %799 = vrot.lane.b32.xlu0 %v796, 96
        %v800 = vpop.permute.xlu0 %799
        %v802 = vsel %vm710, %v795, 0
        %v805 = vsel %vm710, %v796, 0
        %v808 = vsel %vm710, %v798, 0
        %v811 = vsel %vm710, %v800, 0
        %813 = vmatpush.bf16.xpose.msra.mxu0 0
        %814 = vmatpush.bf16.xpose.msra.mxu0 0
        %815 = vmatpush.bf16.xpose.msra.mxu0 0
        %816 = vmatpush.bf16.xpose.msra.mxu0 0
        %817 = vmatpush.bf16.xpose.msra.mxu0 0
        %818 = vmatpush.bf16.xpose.msra.mxu0 0
        %819 = vmatpush.bf16.xpose.msra.mxu0 %v811
        %820 = vmatpush.bf16.xpose.msra.mxu0 %v808
        %821 = vmatmul.bf16.gmra.mxu0 %v802
        %v822 = vpop.f32.mrf.mxu0
        %v823 = vadd.f32 %v692, %v822
        %v824 = vpop.f32.mrf.mxu0
        %v825 = vadd.f32 %v693, %v824
        %826 = vmatmul.bf16.gmra.mxu0 %v805
        %v827 = vpop.f32.mrf.mxu0
        %v828 = vadd.f32 %v694, %v827
        %v829 = vpop.f32.mrf.mxu0
        %v830 = vadd.f32 %v695, %v829
        %831 = vdwg.mxu0
        %v836 = vunpack.c.l.b16 %v555
        %v837 = vunpack.c.l.b16 %v556
        %v838 = vunpack.c.l.b16 %v557
        %v839 = vunpack.c.l.b16 %v558
        %v840 = vpack.c.b16 %v837, %v836
        %v841 = vpack.c.b16 %v839, %v838
        %842 = vrot.lane.b32.xlu0 %v840, 96
        %v843 = vpop.permute.xlu0 %842
        %844 = vrot.lane.b32.xlu0 %v841, 96
        %v845 = vpop.permute.xlu0 %844
        %v847 = vsel %vm710, %v840, 0
        %v850 = vsel %vm710, %v841, 0
        %v853 = vsel %vm710, %v843, 0
        %v856 = vsel %vm710, %v845, 0
        %858 = vmatpush.bf16.xpose.msra.mxu0 0
        %859 = vmatpush.bf16.xpose.msra.mxu0 0
        %860 = vmatpush.bf16.xpose.msra.mxu0 0
        %861 = vmatpush.bf16.xpose.msra.mxu0 0
        %862 = vmatpush.bf16.xpose.msra.mxu0 0
        %863 = vmatpush.bf16.xpose.msra.mxu0 0
        %864 = vmatpush.bf16.xpose.msra.mxu0 %v856
        %865 = vmatpush.bf16.xpose.msra.mxu0 %v853
        %866 = vmatmul.bf16.gmra.mxu0 %v847
        %v867 = vpop.f32.mrf.mxu0
        %v868 = vadd.f32 %v692, %v867
        %v869 = vpop.f32.mrf.mxu0
        %v870 = vadd.f32 %v693, %v869
        %871 = vmatmul.bf16.gmra.mxu0 %v850
        %v872 = vpop.f32.mrf.mxu0
        %v873 = vadd.f32 %v694, %v872
        %v874 = vpop.f32.mrf.mxu0
        %v875 = vadd.f32 %v695, %v874
        %876 = vdwg.mxu0
        %v877 = vsel %vm469, %v733, -inf
        %878 = vmax.xlane.f32.xlu0 %v877
        %v879 = vpop.xlane.xlu0 %878
        %v880 = vsel %vm469, %v735, -inf
        %881 = vmax.xlane.f32.xlu0 %v880
        %v882 = vpop.xlane.xlu0 %881
        %v883 = vsel %vm469, %v738, -inf
        %884 = vmax.xlane.f32.xlu0 %v883
        %v885 = vpop.xlane.xlu0 %884
        %v886 = vsel %vm469, %v740, -inf
        %887 = vmax.xlane.f32.xlu0 %v886
        %v888 = vpop.xlane.xlu0 %887
        %v889 = vsel %vm469, %v778, -inf
        %890 = vmax.xlane.f32.xlu0 %v889
        %v891 = vpop.xlane.xlu0 %890
        %v892 = vsel %vm469, %v780, -inf
        %893 = vmax.xlane.f32.xlu0 %v892
        %v894 = vpop.xlane.xlu0 %893
        %v895 = vsel %vm469, %v783, -inf
        %896 = vmax.xlane.f32.xlu0 %v895
        %v897 = vpop.xlane.xlu0 %896
        %v898 = vsel %vm469, %v785, -inf
        %899 = vmax.xlane.f32.xlu0 %v898
        %v900 = vpop.xlane.xlu0 %899
        %v901 = vsel %vm469, %v823, -inf
        %902 = vmax.xlane.f32.xlu0 %v901
        %v903 = vpop.xlane.xlu0 %902
        %v904 = vsel %vm469, %v825, -inf
        %905 = vmax.xlane.f32.xlu0 %v904
        %v906 = vpop.xlane.xlu0 %905
        %v907 = vsel %vm469, %v828, -inf
        %908 = vmax.xlane.f32.xlu0 %v907
        %v909 = vpop.xlane.xlu0 %908
        %v910 = vsel %vm469, %v830, -inf
        %911 = vmax.xlane.f32.xlu0 %v910
        %v912 = vpop.xlane.xlu0 %911
        %v913 = vsel %vm469, %v868, -inf
        %914 = vmax.xlane.f32.xlu0 %v913
        %v915 = vpop.xlane.xlu0 %914
        %v916 = vsel %vm469, %v870, -inf
        %917 = vmax.xlane.f32.xlu0 %v916
        %v918 = vpop.xlane.xlu0 %917
        %v919 = vsel %vm469, %v873, -inf
        %920 = vmax.xlane.f32.xlu0 %v919
        %v921 = vpop.xlane.xlu0 %920
        %v922 = vsel %vm469, %v875, -inf
        %923 = vmax.xlane.f32.xlu0 %v922
        %v924 = vpop.xlane.xlu0 %923
        %v925 = vsub.f32 %v733, %v879
        %v926 = vsub.f32 %v735, %v882
        %v927 = vsub.f32 %v738, %v885
        %v928 = vsub.f32 %v740, %v888
        %v929 = vsub.f32 %v778, %v891
        %v930 = vsub.f32 %v780, %v894
        %v931 = vsub.f32 %v783, %v897
        %v932 = vsub.f32 %v785, %v900
        %v933 = vsub.f32 %v823, %v903
        %v934 = vsub.f32 %v825, %v906
        %v935 = vsub.f32 %v828, %v909
        %v936 = vsub.f32 %v830, %v912
        %v937 = vsub.f32 %v868, %v915
        %v938 = vsub.f32 %v870, %v918
        %v939 = vsub.f32 %v873, %v921
        %v940 = vsub.f32 %v875, %v924
        %v941 = vmul.f32 %v925, 1.442695
        %v942 = vpow.pop %v941
        %v943 = vmul.f32 %v926, 1.442695
        %v944 = vpow.pop %v943
        %v945 = vmul.f32 %v927, 1.442695
        %v946 = vpow.pop %v945
        %v947 = vmul.f32 %v928, 1.442695
        %v948 = vpow.pop %v947
        %v949 = vmul.f32 %v929, 1.442695
        %v950 = vpow.pop %v949
        %v951 = vmul.f32 %v930, 1.442695
        %v952 = vpow.pop %v951
        %v953 = vmul.f32 %v931, 1.442695
        %v954 = vpow.pop %v953
        %v955 = vmul.f32 %v932, 1.442695
        %v956 = vpow.pop %v955
        %v957 = vmul.f32 %v933, 1.442695
        %v958 = vpow.pop %v957
        %v959 = vmul.f32 %v934, 1.442695
        %v960 = vpow.pop %v959
        %v961 = vmul.f32 %v935, 1.442695
        %v962 = vpow.pop %v961
        %v963 = vmul.f32 %v936, 1.442695
        %v964 = vpow.pop %v963
        %v965 = vmul.f32 %v937, 1.442695
        %v966 = vpow.pop %v965
        %v967 = vmul.f32 %v938, 1.442695
        %v968 = vpow.pop %v967
        %v969 = vmul.f32 %v939, 1.442695
        %v970 = vpow.pop %v969
        %v971 = vmul.f32 %v940, 1.442695
        %v972 = vpow.pop %v971
        %v973 = vsel %vm469, %v942, 0.0
        %974 = vadd.xlane.f32.xlu0 %v973
        %v975 = vpop.xlane.xlu0 %974
        %v976 = vsel %vm469, %v944, 0.0
        %977 = vadd.xlane.f32.xlu0 %v976
        %v978 = vpop.xlane.xlu0 %977
        %v979 = vsel %vm469, %v946, 0.0
        %980 = vadd.xlane.f32.xlu0 %v979
        %v981 = vpop.xlane.xlu0 %980
        %v982 = vsel %vm469, %v948, 0.0
        %983 = vadd.xlane.f32.xlu0 %v982
        %v984 = vpop.xlane.xlu0 %983
        %v985 = vsel %vm469, %v950, 0.0
        %986 = vadd.xlane.f32.xlu0 %v985
        %v987 = vpop.xlane.xlu0 %986
        %v988 = vsel %vm469, %v952, 0.0
        %989 = vadd.xlane.f32.xlu0 %v988
        %v990 = vpop.xlane.xlu0 %989
        %v991 = vsel %vm469, %v954, 0.0
        %992 = vadd.xlane.f32.xlu0 %v991
        %v993 = vpop.xlane.xlu0 %992
        %v994 = vsel %vm469, %v956, 0.0
        %995 = vadd.xlane.f32.xlu0 %v994
        %v996 = vpop.xlane.xlu0 %995
        %v997 = vsel %vm469, %v958, 0.0
        %998 = vadd.xlane.f32.xlu0 %v997
        %v999 = vpop.xlane.xlu0 %998
        %v1000 = vsel %vm469, %v960, 0.0
        %1001 = vadd.xlane.f32.xlu0 %v1000
        %v1002 = vpop.xlane.xlu0 %1001
        %v1003 = vsel %vm469, %v962, 0.0
        %1004 = vadd.xlane.f32.xlu0 %v1003
        %v1005 = vpop.xlane.xlu0 %1004
        %v1006 = vsel %vm469, %v964, 0.0
        %1007 = vadd.xlane.f32.xlu0 %v1006
        %v1008 = vpop.xlane.xlu0 %1007
        %v1009 = vsel %vm469, %v966, 0.0
        %1010 = vadd.xlane.f32.xlu0 %v1009
        %v1011 = vpop.xlane.xlu0 %1010
        %v1012 = vsel %vm469, %v968, 0.0
        %1013 = vadd.xlane.f32.xlu0 %v1012
        %v1014 = vpop.xlane.xlu0 %1013
        %v1015 = vsel %vm469, %v970, 0.0
        %1016 = vadd.xlane.f32.xlu0 %v1015
        %v1017 = vpop.xlane.xlu0 %1016
        %v1018 = vsel %vm469, %v972, 0.0
        %1019 = vadd.xlane.f32.xlu0 %v1018
        %v1020 = vpop.xlane.xlu0 %1019
        %v1021 = vrcp.pop %v975
        %v1022 = vrcp.pop %v978
        %v1023 = vrcp.pop %v981
        %v1024 = vrcp.pop %v984
        %v1025 = vrcp.pop %v987
        %v1026 = vrcp.pop %v990
        %v1027 = vrcp.pop %v993
        %v1028 = vrcp.pop %v996
        %v1029 = vrcp.pop %v999
        %v1030 = vrcp.pop %v1002
        %v1031 = vrcp.pop %v1005
        %v1032 = vrcp.pop %v1008
        %v1033 = vrcp.pop %v1011
        %v1034 = vrcp.pop %v1014
        %v1035 = vrcp.pop %v1017
        %v1036 = vrcp.pop %v1020
        %v1037 = vmul.f32 %v942, %v1021
        %v1038 = vmul.f32 %v944, %v1022
        %v1039 = vmul.f32 %v946, %v1023
        %v1040 = vmul.f32 %v948, %v1024
        %v1041 = vmul.f32 %v950, %v1025
        %v1042 = vmul.f32 %v952, %v1026
        %v1043 = vmul.f32 %v954, %v1027
        %v1044 = vmul.f32 %v956, %v1028
        %v1045 = vmul.f32 %v958, %v1029
        %v1046 = vmul.f32 %v960, %v1030
        %v1047 = vmul.f32 %v962, %v1031
        %v1048 = vmul.f32 %v964, %v1032
        %v1049 = vmul.f32 %v966, %v1033
        %v1050 = vmul.f32 %v968, %v1034
        %v1051 = vmul.f32 %v970, %v1035
        %v1052 = vmul.f32 %v972, %v1036
        %v1053 = vpack.c.bf16 %v1037, %v1037
        %v1054 = vpack.c.bf16 %v1038, %v1038
        %v1055 = vpack.c.bf16 %v1039, %v1039
        %v1056 = vpack.c.bf16 %v1040, %v1040
        %v1057 = vpack.c.bf16 %v1041, %v1041
        %v1058 = vpack.c.bf16 %v1042, %v1042
        %v1059 = vpack.c.bf16 %v1043, %v1043
        %v1060 = vpack.c.bf16 %v1044, %v1044
        %v1061 = vpack.c.bf16 %v1045, %v1045
        %v1062 = vpack.c.bf16 %v1046, %v1046
        %v1063 = vpack.c.bf16 %v1047, %v1047
        %v1064 = vpack.c.bf16 %v1048, %v1048
        %v1065 = vpack.c.bf16 %v1049, %v1049
        %v1066 = vpack.c.bf16 %v1050, %v1050
        %v1067 = vpack.c.bf16 %v1051, %v1051
        %v1068 = vpack.c.bf16 %v1052, %v1052
        %v1073 = vunpack.c.l.b16 %v1053
        %v1074 = vunpack.c.l.b16 %v1054
        %v1075 = vunpack.c.l.b16 %v1055
        %v1076 = vunpack.c.l.b16 %v1056
        %v1077 = vpack.c.b16 %v1074, %v1073
        %v1078 = vpack.c.b16 %v1076, %v1075
        %1079 = vrot.lane.b32.xlu0 %v704, 64
        %v1080 = vpop.permute.xlu0 %1079
        %1081 = vrot.lane.b32.xlu0 %v705, 64
        %v1082 = vpop.permute.xlu0 %1081
        %v1086 = vsel %vm469, %v1077, 0
        %v1089 = vsel %vm469, %v1078, 0
        %1091 = vmatpush.bf16.msra.mxu0 0
        %1092 = vmatpush.bf16.msra.mxu0 0
        %1093 = vmatpush.bf16.msra.mxu0 0
        %1094 = vmatpush.bf16.msra.mxu0 0
        %1095 = vmatpush.bf16.msra.mxu0 0
        %1096 = vmatpush.bf16.msra.mxu0 0
        %1097 = vmatpush.bf16.msra.mxu0 %v1082
        %1098 = vmatpush.bf16.msra.mxu0 %v1080
        %1099 = vmatmul.bf16.gmra.mxu0 %v1086
        %v1100 = vpop.f32.mrf.mxu0
        %v1101 = vadd.f32 0.0, %v1100
        %v1102 = vpop.f32.mrf.mxu0
        %v1103 = vadd.f32 0.0, %v1102
        %1104 = vmatmul.bf16.gmra.mxu0 %v1089
        %v1105 = vpop.f32.mrf.mxu0
        %v1106 = vadd.f32 0.0, %v1105
        %v1107 = vpop.f32.mrf.mxu0
        %v1108 = vadd.f32 0.0, %v1107
        %1109 = vdwg.mxu0
        %v1114 = vunpack.c.l.b16 %v1057
        %v1115 = vunpack.c.l.b16 %v1058
        %v1116 = vunpack.c.l.b16 %v1059
        %v1117 = vunpack.c.l.b16 %v1060
        %v1118 = vpack.c.b16 %v1115, %v1114
        %v1119 = vpack.c.b16 %v1117, %v1116
        %1120 = vrot.lane.b32.xlu0 %v750, 64
        %v1121 = vpop.permute.xlu0 %1120
        %1122 = vrot.lane.b32.xlu0 %v751, 64
        %v1123 = vpop.permute.xlu0 %1122
        %v1127 = vsel %vm469, %v1118, 0
        %v1130 = vsel %vm469, %v1119, 0
        %1132 = vmatpush.bf16.msra.mxu0 0
        %1133 = vmatpush.bf16.msra.mxu0 0
        %1134 = vmatpush.bf16.msra.mxu0 0
        %1135 = vmatpush.bf16.msra.mxu0 0
        %1136 = vmatpush.bf16.msra.mxu0 0
        %1137 = vmatpush.bf16.msra.mxu0 0
        %1138 = vmatpush.bf16.msra.mxu0 %v1123
        %1139 = vmatpush.bf16.msra.mxu0 %v1121
        %1140 = vmatmul.bf16.gmra.mxu0 %v1127
        %v1141 = vpop.f32.mrf.mxu0
        %v1142 = vadd.f32 0.0, %v1141
        %v1143 = vpop.f32.mrf.mxu0
        %v1144 = vadd.f32 0.0, %v1143
        %1145 = vmatmul.bf16.gmra.mxu0 %v1130
        %v1146 = vpop.f32.mrf.mxu0
        %v1147 = vadd.f32 0.0, %v1146
        %v1148 = vpop.f32.mrf.mxu0
        %v1149 = vadd.f32 0.0, %v1148
        %1150 = vdwg.mxu0
        %v1155 = vunpack.c.l.b16 %v1061
        %v1156 = vunpack.c.l.b16 %v1062
        %v1157 = vunpack.c.l.b16 %v1063
        %v1158 = vunpack.c.l.b16 %v1064
        %v1159 = vpack.c.b16 %v1156, %v1155
        %v1160 = vpack.c.b16 %v1158, %v1157
        %1161 = vrot.lane.b32.xlu0 %v795, 64
        %v1162 = vpop.permute.xlu0 %1161
        %1163 = vrot.lane.b32.xlu0 %v796, 64
        %v1164 = vpop.permute.xlu0 %1163
        %v1168 = vsel %vm469, %v1159, 0
        %v1171 = vsel %vm469, %v1160, 0
        %1173 = vmatpush.bf16.msra.mxu0 0
        %1174 = vmatpush.bf16.msra.mxu0 0
        %1175 = vmatpush.bf16.msra.mxu0 0
        %1176 = vmatpush.bf16.msra.mxu0 0
        %1177 = vmatpush.bf16.msra.mxu0 0
        %1178 = vmatpush.bf16.msra.mxu0 0
        %1179 = vmatpush.bf16.msra.mxu0 %v1164
        %1180 = vmatpush.bf16.msra.mxu0 %v1162
        %1181 = vmatmul.bf16.gmra.mxu0 %v1168
        %v1182 = vpop.f32.mrf.mxu0
        %v1183 = vadd.f32 0.0, %v1182
        %v1184 = vpop.f32.mrf.mxu0
        %v1185 = vadd.f32 0.0, %v1184
        %1186 = vmatmul.bf16.gmra.mxu0 %v1171
        %v1187 = vpop.f32.mrf.mxu0
        %v1188 = vadd.f32 0.0, %v1187
        %v1189 = vpop.f32.mrf.mxu0
        %v1190 = vadd.f32 0.0, %v1189
        %1191 = vdwg.mxu0
        %v1196 = vunpack.c.l.b16 %v1065
        %v1197 = vunpack.c.l.b16 %v1066
        %v1198 = vunpack.c.l.b16 %v1067
        %v1199 = vunpack.c.l.b16 %v1068
        %v1200 = vpack.c.b16 %v1197, %v1196
        %v1201 = vpack.c.b16 %v1199, %v1198
        %1202 = vrot.lane.b32.xlu0 %v840, 64
        %v1203 = vpop.permute.xlu0 %1202
        %1204 = vrot.lane.b32.xlu0 %v841, 64
        %v1205 = vpop.permute.xlu0 %1204
        %v1209 = vsel %vm469, %v1200, 0
        %v1212 = vsel %vm469, %v1201, 0
        %1214 = vmatpush.bf16.msra.mxu0 0
        %1215 = vmatpush.bf16.msra.mxu0 0
        %1216 = vmatpush.bf16.msra.mxu0 0
        %1217 = vmatpush.bf16.msra.mxu0 0
        %1218 = vmatpush.bf16.msra.mxu0 0
        %1219 = vmatpush.bf16.msra.mxu0 0
        %1220 = vmatpush.bf16.msra.mxu0 %v1205
        %1221 = vmatpush.bf16.msra.mxu0 %v1203
        %1222 = vmatmul.bf16.gmra.mxu0 %v1209
        %v1223 = vpop.f32.mrf.mxu0
        %v1224 = vadd.f32 0.0, %v1223
        %v1225 = vpop.f32.mrf.mxu0
        %v1226 = vadd.f32 0.0, %v1225
        %1227 = vmatmul.bf16.gmra.mxu0 %v1212
        %v1228 = vpop.f32.mrf.mxu0
        %v1229 = vadd.f32 0.0, %v1228
        %v1230 = vpop.f32.mrf.mxu0
        %v1231 = vadd.f32 0.0, %v1230
        %1232 = vdwg.mxu0
        %s1233 = scalar_lea.vmem [#allocation5], 32
        %v1234 = vld [vmem:[%s1233] sm:$0xff]
        %v1235 = vld [vmem:[%s1233 + $0x8] sm:$0xff]
        %v1236 = vld [vmem:[%s1233 + $0x10] sm:$0xff]
        %v1237 = vld [vmem:[%s1233 + $0x18] sm:$0xff]
        %1238 = vrot.lane.b32.xlu0 %v704, 120
        %v1239 = vpop.permute.xlu0 %1238
        %1240 = vrot.lane.b32.xlu0 %v705, 120
        %v1241 = vpop.permute.xlu0 %1240
        %1242 = vrot.lane.b32.xlu0 %v704, 88
        %v1243 = vpop.permute.xlu0 %1242
        %1244 = vrot.lane.b32.xlu0 %v705, 88
        %v1245 = vpop.permute.xlu0 %1244
        %v1247 = vsel %vm710, %v1239, 0
        %v1250 = vsel %vm710, %v1241, 0
        %v1253 = vsel %vm710, %v1243, 0
        %v1256 = vsel %vm710, %v1245, 0
        %1258 = vmatpush.bf16.xpose.msra.mxu0 0
        %1259 = vmatpush.bf16.xpose.msra.mxu0 0
        %1260 = vmatpush.bf16.xpose.msra.mxu0 0
        %1261 = vmatpush.bf16.xpose.msra.mxu0 0
        %1262 = vmatpush.bf16.xpose.msra.mxu0 0
        %1263 = vmatpush.bf16.xpose.msra.mxu0 0
        %1264 = vmatpush.bf16.xpose.msra.mxu0 %v1256
        %1265 = vmatpush.bf16.xpose.msra.mxu0 %v1253
        %1266 = vmatmul.bf16.gmra.mxu0 %v1247
        %v1267 = vpop.f32.mrf.mxu0
        %v1268 = vadd.f32 %v1234, %v1267
        %v1269 = vpop.f32.mrf.mxu0
        %v1270 = vadd.f32 %v1235, %v1269
        %1271 = vmatmul.bf16.gmra.mxu0 %v1250
        %v1272 = vpop.f32.mrf.mxu0
        %v1273 = vadd.f32 %v1236, %v1272
        %v1274 = vpop.f32.mrf.mxu0
        %v1275 = vadd.f32 %v1237, %v1274
        %1276 = vdwg.mxu0
        %1277 = vrot.lane.b32.xlu0 %v750, 120
        %v1278 = vpop.permute.xlu0 %1277
        %1279 = vrot.lane.b32.xlu0 %v751, 120
        %v1280 = vpop.permute.xlu0 %1279
        %1281 = vrot.lane.b32.xlu0 %v750, 88
        %v1282 = vpop.permute.xlu0 %1281
        %1283 = vrot.lane.b32.xlu0 %v751, 88
        %v1284 = vpop.permute.xlu0 %1283
        %v1286 = vsel %vm710, %v1278, 0
        %v1289 = vsel %vm710, %v1280, 0
        %v1292 = vsel %vm710, %v1282, 0
        %v1295 = vsel %vm710, %v1284, 0
        %1297 = vmatpush.bf16.xpose.msra.mxu0 0
        %1298 = vmatpush.bf16.xpose.msra.mxu0 0
        %1299 = vmatpush.bf16.xpose.msra.mxu0 0
        %1300 = vmatpush.bf16.xpose.msra.mxu0 0
        %1301 = vmatpush.bf16.xpose.msra.mxu0 0
        %1302 = vmatpush.bf16.xpose.msra.mxu0 0
        %1303 = vmatpush.bf16.xpose.msra.mxu0 %v1295
        %1304 = vmatpush.bf16.xpose.msra.mxu0 %v1292
        %1305 = vmatmul.bf16.gmra.mxu0 %v1286
        %v1306 = vpop.f32.mrf.mxu0
        %v1307 = vadd.f32 %v1234, %v1306
        %v1308 = vpop.f32.mrf.mxu0
        %v1309 = vadd.f32 %v1235, %v1308
        %1310 = vmatmul.bf16.gmra.mxu0 %v1289
        %v1311 = vpop.f32.mrf.mxu0
        %v1312 = vadd.f32 %v1236, %v1311
        %v1313 = vpop.f32.mrf.mxu0
        %v1314 = vadd.f32 %v1237, %v1313
        %1315 = vdwg.mxu0
        %1316 = vrot.lane.b32.xlu0 %v795, 120
        %v1317 = vpop.permute.xlu0 %1316
        %1318 = vrot.lane.b32.xlu0 %v796, 120
        %v1319 = vpop.permute.xlu0 %1318
        %1320 = vrot.lane.b32.xlu0 %v795, 88
        %v1321 = vpop.permute.xlu0 %1320
        %1322 = vrot.lane.b32.xlu0 %v796, 88
        %v1323 = vpop.permute.xlu0 %1322
        %v1325 = vsel %vm710, %v1317, 0
        %v1328 = vsel %vm710, %v1319, 0
        %v1331 = vsel %vm710, %v1321, 0
        %v1334 = vsel %vm710, %v1323, 0
        %1336 = vmatpush.bf16.xpose.msra.mxu0 0
        %1337 = vmatpush.bf16.xpose.msra.mxu0 0
        %1338 = vmatpush.bf16.xpose.msra.mxu0 0
        %1339 = vmatpush.bf16.xpose.msra.mxu0 0
        %1340 = vmatpush.bf16.xpose.msra.mxu0 0
        %1341 = vmatpush.bf16.xpose.msra.mxu0 0
        %1342 = vmatpush.bf16.xpose.msra.mxu0 %v1334
        %1343 = vmatpush.bf16.xpose.msra.mxu0 %v1331
        %1344 = vmatmul.bf16.gmra.mxu0 %v1325
        %v1345 = vpop.f32.mrf.mxu0
        %v1346 = vadd.f32 %v1234, %v1345
        %v1347 = vpop.f32.mrf.mxu0
        %v1348 = vadd.f32 %v1235, %v1347
        %1349 = vmatmul.bf16.gmra.mxu0 %v1328
        %v1350 = vpop.f32.mrf.mxu0
        %v1351 = vadd.f32 %v1236, %v1350
        %v1352 = vpop.f32.mrf.mxu0
        %v1353 = vadd.f32 %v1237, %v1352
        %1354 = vdwg.mxu0
        %1355 = vrot.lane.b32.xlu0 %v840, 120
        %v1356 = vpop.permute.xlu0 %1355
        %1357 = vrot.lane.b32.xlu0 %v841, 120
        %v1358 = vpop.permute.xlu0 %1357
        %1359 = vrot.lane.b32.xlu0 %v840, 88
        %v1360 = vpop.permute.xlu0 %1359
        %1361 = vrot.lane.b32.xlu0 %v841, 88
        %v1362 = vpop.permute.xlu0 %1361
        %v1364 = vsel %vm710, %v1356, 0
        %v1367 = vsel %vm710, %v1358, 0
        %v1370 = vsel %vm710, %v1360, 0
        %v1373 = vsel %vm710, %v1362, 0
        %1375 = vmatpush.bf16.xpose.msra.mxu0 0
        %1376 = vmatpush.bf16.xpose.msra.mxu0 0
        %1377 = vmatpush.bf16.xpose.msra.mxu0 0
        %1378 = vmatpush.bf16.xpose.msra.mxu0 0
        %1379 = vmatpush.bf16.xpose.msra.mxu0 0
        %1380 = vmatpush.bf16.xpose.msra.mxu0 0
        %1381 = vmatpush.bf16.xpose.msra.mxu0 %v1373
        %1382 = vmatpush.bf16.xpose.msra.mxu0 %v1370
        %1383 = vmatmul.bf16.gmra.mxu0 %v1364
        %v1384 = vpop.f32.mrf.mxu0
        %v1385 = vadd.f32 %v1234, %v1384
        %v1386 = vpop.f32.mrf.mxu0
        %v1387 = vadd.f32 %v1235, %v1386
        %1388 = vmatmul.bf16.gmra.mxu0 %v1367
        %v1389 = vpop.f32.mrf.mxu0
        %v1390 = vadd.f32 %v1236, %v1389
        %v1391 = vpop.f32.mrf.mxu0
        %v1392 = vadd.f32 %v1237, %v1391
        %1393 = vdwg.mxu0
        %v1394 = vsel %vm469, %v1268, -inf
        %1395 = vmax.xlane.f32.xlu0 %v1394
        %v1396 = vpop.xlane.xlu0 %1395
        %v1397 = vsel %vm469, %v1270, -inf
        %1398 = vmax.xlane.f32.xlu0 %v1397
        %v1399 = vpop.xlane.xlu0 %1398
        %v1400 = vsel %vm469, %v1273, -inf
        %1401 = vmax.xlane.f32.xlu0 %v1400
        %v1402 = vpop.xlane.xlu0 %1401
        %v1403 = vsel %vm469, %v1275, -inf
        %1404 = vmax.xlane.f32.xlu0 %v1403
        %v1405 = vpop.xlane.xlu0 %1404
        %v1406 = vsel %vm469, %v1307, -inf
        %1407 = vmax.xlane.f32.xlu0 %v1406
        %v1408 = vpop.xlane.xlu0 %1407
        %v1409 = vsel %vm469, %v1309, -inf
        %1410 = vmax.xlane.f32.xlu0 %v1409
        %v1411 = vpop.xlane.xlu0 %1410
        %v1412 = vsel %vm469, %v1312, -inf
        %1413 = vmax.xlane.f32.xlu0 %v1412
        %v1414 = vpop.xlane.xlu0 %1413
        %v1415 = vsel %vm469, %v1314, -inf
        %1416 = vmax.xlane.f32.xlu0 %v1415
        %v1417 = vpop.xlane.xlu0 %1416
        %v1418 = vsel %vm469, %v1346, -inf
        %1419 = vmax.xlane.f32.xlu0 %v1418
        %v1420 = vpop.xlane.xlu0 %1419
        %v1421 = vsel %vm469, %v1348, -inf
        %1422 = vmax.xlane.f32.xlu0 %v1421
        %v1423 = vpop.xlane.xlu0 %1422
        %v1424 = vsel %vm469, %v1351, -inf
        %1425 = vmax.xlane.f32.xlu0 %v1424
        %v1426 = vpop.xlane.xlu0 %1425
        %v1427 = vsel %vm469, %v1353, -inf
        %1428 = vmax.xlane.f32.xlu0 %v1427
        %v1429 = vpop.xlane.xlu0 %1428
        %v1430 = vsel %vm469, %v1385, -inf
        %1431 = vmax.xlane.f32.xlu0 %v1430
        %v1432 = vpop.xlane.xlu0 %1431
        %v1433 = vsel %vm469, %v1387, -inf
        %1434 = vmax.xlane.f32.xlu0 %v1433
        %v1435 = vpop.xlane.xlu0 %1434
        %v1436 = vsel %vm469, %v1390, -inf
        %1437 = vmax.xlane.f32.xlu0 %v1436
        %v1438 = vpop.xlane.xlu0 %1437
        %v1439 = vsel %vm469, %v1392, -inf
        %1440 = vmax.xlane.f32.xlu0 %v1439
        %v1441 = vpop.xlane.xlu0 %1440
        %v1442 = vsub.f32 %v1268, %v1396
        %v1443 = vsub.f32 %v1270, %v1399
        %v1444 = vsub.f32 %v1273, %v1402
        %v1445 = vsub.f32 %v1275, %v1405
        %v1446 = vsub.f32 %v1307, %v1408
        %v1447 = vsub.f32 %v1309, %v1411
        %v1448 = vsub.f32 %v1312, %v1414
        %v1449 = vsub.f32 %v1314, %v1417
        %v1450 = vsub.f32 %v1346, %v1420
        %v1451 = vsub.f32 %v1348, %v1423
        %v1452 = vsub.f32 %v1351, %v1426
        %v1453 = vsub.f32 %v1353, %v1429
        %v1454 = vsub.f32 %v1385, %v1432
        %v1455 = vsub.f32 %v1387, %v1435
        %v1456 = vsub.f32 %v1390, %v1438
        %v1457 = vsub.f32 %v1392, %v1441
        %v1458 = vmul.f32 %v1442, 1.442695
        %v1459 = vpow.pop %v1458
        %v1460 = vmul.f32 %v1443, 1.442695
        %v1461 = vpow.pop %v1460
        %v1462 = vmul.f32 %v1444, 1.442695
        %v1463 = vpow.pop %v1462
        %v1464 = vmul.f32 %v1445, 1.442695
        %v1465 = vpow.pop %v1464
        %v1466 = vmul.f32 %v1446, 1.442695
        %v1467 = vpow.pop %v1466
        %v1468 = vmul.f32 %v1447, 1.442695
        %v1469 = vpow.pop %v1468
        %v1470 = vmul.f32 %v1448, 1.442695
        %v1471 = vpow.pop %v1470
        %v1472 = vmul.f32 %v1449, 1.442695
        %v1473 = vpow.pop %v1472
        %v1474 = vmul.f32 %v1450, 1.442695
        %v1475 = vpow.pop %v1474
        %v1476 = vmul.f32 %v1451, 1.442695
        %v1477 = vpow.pop %v1476
        %v1478 = vmul.f32 %v1452, 1.442695
        %v1479 = vpow.pop %v1478
        %v1480 = vmul.f32 %v1453, 1.442695
        %v1481 = vpow.pop %v1480
        %v1482 = vmul.f32 %v1454, 1.442695
        %v1483 = vpow.pop %v1482
        %v1484 = vmul.f32 %v1455, 1.442695
        %v1485 = vpow.pop %v1484
        %v1486 = vmul.f32 %v1456, 1.442695
        %v1487 = vpow.pop %v1486
        %v1488 = vmul.f32 %v1457, 1.442695
        %v1489 = vpow.pop %v1488
        %v1490 = vsel %vm469, %v1459, 0.0
        %1491 = vadd.xlane.f32.xlu0 %v1490
        %v1492 = vpop.xlane.xlu0 %1491
        %v1493 = vsel %vm469, %v1461, 0.0
        %1494 = vadd.xlane.f32.xlu0 %v1493
        %v1495 = vpop.xlane.xlu0 %1494
        %v1496 = vsel %vm469, %v1463, 0.0
        %1497 = vadd.xlane.f32.xlu0 %v1496
        %v1498 = vpop.xlane.xlu0 %1497
        %v1499 = vsel %vm469, %v1465, 0.0
        %1500 = vadd.xlane.f32.xlu0 %v1499
        %v1501 = vpop.xlane.xlu0 %1500
        %v1502 = vsel %vm469, %v1467, 0.0
        %1503 = vadd.xlane.f32.xlu0 %v1502
        %v1504 = vpop.xlane.xlu0 %1503
        %v1505 = vsel %vm469, %v1469, 0.0
        %1506 = vadd.xlane.f32.xlu0 %v1505
        %v1507 = vpop.xlane.xlu0 %1506
        %v1508 = vsel %vm469, %v1471, 0.0
        %1509 = vadd.xlane.f32.xlu0 %v1508
        %v1510 = vpop.xlane.xlu0 %1509
        %v1511 = vsel %vm469, %v1473, 0.0
        %1512 = vadd.xlane.f32.xlu0 %v1511
        %v1513 = vpop.xlane.xlu0 %1512
        %v1514 = vsel %vm469, %v1475, 0.0
        %1515 = vadd.xlane.f32.xlu0 %v1514
        %v1516 = vpop.xlane.xlu0 %1515
        %v1517 = vsel %vm469, %v1477, 0.0
        %1518 = vadd.xlane.f32.xlu0 %v1517
        %v1519 = vpop.xlane.xlu0 %1518
        %v1520 = vsel %vm469, %v1479, 0.0
        %1521 = vadd.xlane.f32.xlu0 %v1520
        %v1522 = vpop.xlane.xlu0 %1521
        %v1523 = vsel %vm469, %v1481, 0.0
        %1524 = vadd.xlane.f32.xlu0 %v1523
        %v1525 = vpop.xlane.xlu0 %1524
        %v1526 = vsel %vm469, %v1483, 0.0
        %1527 = vadd.xlane.f32.xlu0 %v1526
        %v1528 = vpop.xlane.xlu0 %1527
        %v1529 = vsel %vm469, %v1485, 0.0
        %1530 = vadd.xlane.f32.xlu0 %v1529
        %v1531 = vpop.xlane.xlu0 %1530
        %v1532 = vsel %vm469, %v1487, 0.0
        %1533 = vadd.xlane.f32.xlu0 %v1532
        %v1534 = vpop.xlane.xlu0 %1533
        %v1535 = vsel %vm469, %v1489, 0.0
        %1536 = vadd.xlane.f32.xlu0 %v1535
        %v1537 = vpop.xlane.xlu0 %1536
        %v1538 = vrcp.pop %v1492
        %v1539 = vrcp.pop %v1495
        %v1540 = vrcp.pop %v1498
        %v1541 = vrcp.pop %v1501
        %v1542 = vrcp.pop %v1504
        %v1543 = vrcp.pop %v1507
        %v1544 = vrcp.pop %v1510
        %v1545 = vrcp.pop %v1513
        %v1546 = vrcp.pop %v1516
        %v1547 = vrcp.pop %v1519
        %v1548 = vrcp.pop %v1522
        %v1549 = vrcp.pop %v1525
        %v1550 = vrcp.pop %v1528
        %v1551 = vrcp.pop %v1531
        %v1552 = vrcp.pop %v1534
        %v1553 = vrcp.pop %v1537
        %v1554 = vmul.f32 %v1459, %v1538
        %v1555 = vmul.f32 %v1461, %v1539
        %v1556 = vmul.f32 %v1463, %v1540
        %v1557 = vmul.f32 %v1465, %v1541
        %v1558 = vmul.f32 %v1467, %v1542
        %v1559 = vmul.f32 %v1469, %v1543
        %v1560 = vmul.f32 %v1471, %v1544
        %v1561 = vmul.f32 %v1473, %v1545
        %v1562 = vmul.f32 %v1475, %v1546
        %v1563 = vmul.f32 %v1477, %v1547
        %v1564 = vmul.f32 %v1479, %v1548
        %v1565 = vmul.f32 %v1481, %v1549
        %v1566 = vmul.f32 %v1483, %v1550
        %v1567 = vmul.f32 %v1485, %v1551
        %v1568 = vmul.f32 %v1487, %v1552
        %v1569 = vmul.f32 %v1489, %v1553
        %v1570 = vpack.c.bf16 %v1554, %v1554
        %v1571 = vpack.c.bf16 %v1555, %v1555
        %v1572 = vpack.c.bf16 %v1556, %v1556
        %v1573 = vpack.c.bf16 %v1557, %v1557
        %v1574 = vpack.c.bf16 %v1558, %v1558
        %v1575 = vpack.c.bf16 %v1559, %v1559
        %v1576 = vpack.c.bf16 %v1560, %v1560
        %v1577 = vpack.c.bf16 %v1561, %v1561
        %v1578 = vpack.c.bf16 %v1562, %v1562
        %v1579 = vpack.c.bf16 %v1563, %v1563
        %v1580 = vpack.c.bf16 %v1564, %v1564
        %v1581 = vpack.c.bf16 %v1565, %v1565
        %v1582 = vpack.c.bf16 %v1566, %v1566
        %v1583 = vpack.c.bf16 %v1567, %v1567
        %v1584 = vpack.c.bf16 %v1568, %v1568
        %v1585 = vpack.c.bf16 %v1569, %v1569
        %v1590 = vunpack.c.l.b16 %v1570
        %v1591 = vunpack.c.l.b16 %v1571
        %v1592 = vunpack.c.l.b16 %v1572
        %v1593 = vunpack.c.l.b16 %v1573
        %v1594 = vpack.c.b16 %v1591, %v1590
        %v1595 = vpack.c.b16 %v1593, %v1592
        %1596 = vrot.lane.b32.xlu0 %v704, 56
        %v1597 = vpop.permute.xlu0 %1596
        %1598 = vrot.lane.b32.xlu0 %v705, 56
        %v1599 = vpop.permute.xlu0 %1598
        %v1603 = vsel %vm469, %v1594, 0
        %v1606 = vsel %vm469, %v1595, 0
        %1608 = vmatpush.bf16.msra.mxu0 0
        %1609 = vmatpush.bf16.msra.mxu0 0
        %1610 = vmatpush.bf16.msra.mxu0 0
        %1611 = vmatpush.bf16.msra.mxu0 0
        %1612 = vmatpush.bf16.msra.mxu0 0
        %1613 = vmatpush.bf16.msra.mxu0 0
        %1614 = vmatpush.bf16.msra.mxu0 %v1599
        %1615 = vmatpush.bf16.msra.mxu0 %v1597
        %1616 = vmatmul.bf16.gmra.mxu0 %v1603
        %v1617 = vpop.f32.mrf.mxu0
        %v1618 = vadd.f32 0.0, %v1617
        %v1619 = vpop.f32.mrf.mxu0
        %v1620 = vadd.f32 0.0, %v1619
        %1621 = vmatmul.bf16.gmra.mxu0 %v1606
        %v1622 = vpop.f32.mrf.mxu0
        %v1623 = vadd.f32 0.0, %v1622
        %v1624 = vpop.f32.mrf.mxu0
        %v1625 = vadd.f32 0.0, %v1624
        %1626 = vdwg.mxu0
        %v1631 = vunpack.c.l.b16 %v1574
        %v1632 = vunpack.c.l.b16 %v1575
        %v1633 = vunpack.c.l.b16 %v1576
        %v1634 = vunpack.c.l.b16 %v1577
        %v1635 = vpack.c.b16 %v1632, %v1631
        %v1636 = vpack.c.b16 %v1634, %v1633
        %1637 = vrot.lane.b32.xlu0 %v750, 56
        %v1638 = vpop.permute.xlu0 %1637
        %1639 = vrot.lane.b32.xlu0 %v751, 56
        %v1640 = vpop.permute.xlu0 %1639
        %v1644 = vsel %vm469, %v1635, 0
        %v1647 = vsel %vm469, %v1636, 0
        %1649 = vmatpush.bf16.msra.mxu0 0
        %1650 = vmatpush.bf16.msra.mxu0 0
        %1651 = vmatpush.bf16.msra.mxu0 0
        %1652 = vmatpush.bf16.msra.mxu0 0
        %1653 = vmatpush.bf16.msra.mxu0 0
        %1654 = vmatpush.bf16.msra.mxu0 0
        %1655 = vmatpush.bf16.msra.mxu0 %v1640
        %1656 = vmatpush.bf16.msra.mxu0 %v1638
        %1657 = vmatmul.bf16.gmra.mxu0 %v1644
        %v1658 = vpop.f32.mrf.mxu0
        %v1659 = vadd.f32 0.0, %v1658
        %v1660 = vpop.f32.mrf.mxu0
        %v1661 = vadd.f32 0.0, %v1660
        %1662 = vmatmul.bf16.gmra.mxu0 %v1647
        %v1663 = vpop.f32.mrf.mxu0
        %v1664 = vadd.f32 0.0, %v1663
        %v1665 = vpop.f32.mrf.mxu0
        %v1666 = vadd.f32 0.0, %v1665
        %1667 = vdwg.mxu0
        %v1672 = vunpack.c.l.b16 %v1578
        %v1673 = vunpack.c.l.b16 %v1579
        %v1674 = vunpack.c.l.b16 %v1580
        %v1675 = vunpack.c.l.b16 %v1581
        %v1676 = vpack.c.b16 %v1673, %v1672
        %v1677 = vpack.c.b16 %v1675, %v1674
        %1678 = vrot.lane.b32.xlu0 %v795, 56
        %v1679 = vpop.permute.xlu0 %1678
        %1680 = vrot.lane.b32.xlu0 %v796, 56
        %v1681 = vpop.permute.xlu0 %1680
        %v1685 = vsel %vm469, %v1676, 0
        %v1688 = vsel %vm469, %v1677, 0
        %1690 = vmatpush.bf16.msra.mxu0 0
        %1691 = vmatpush.bf16.msra.mxu0 0
        %1692 = vmatpush.bf16.msra.mxu0 0
        %1693 = vmatpush.bf16.msra.mxu0 0
        %1694 = vmatpush.bf16.msra.mxu0 0
        %1695 = vmatpush.bf16.msra.mxu0 0
        %1696 = vmatpush.bf16.msra.mxu0 %v1681
        %1697 = vmatpush.bf16.msra.mxu0 %v1679
        %1698 = vmatmul.bf16.gmra.mxu0 %v1685
        %v1699 = vpop.f32.mrf.mxu0
        %v1700 = vadd.f32 0.0, %v1699
        %v1701 = vpop.f32.mrf.mxu0
        %v1702 = vadd.f32 0.0, %v1701
        %1703 = vmatmul.bf16.gmra.mxu0 %v1688
        %v1704 = vpop.f32.mrf.mxu0
        %v1705 = vadd.f32 0.0, %v1704
        %v1706 = vpop.f32.mrf.mxu0
        %v1707 = vadd.f32 0.0, %v1706
        %1708 = vdwg.mxu0
        %v1713 = vunpack.c.l.b16 %v1582
        %v1714 = vunpack.c.l.b16 %v1583
        %v1715 = vunpack.c.l.b16 %v1584
        %v1716 = vunpack.c.l.b16 %v1585
        %v1717 = vpack.c.b16 %v1714, %v1713
        %v1718 = vpack.c.b16 %v1716, %v1715
        %1719 = vrot.lane.b32.xlu0 %v840, 56
        %v1720 = vpop.permute.xlu0 %1719
        %1721 = vrot.lane.b32.xlu0 %v841, 56
        %v1722 = vpop.permute.xlu0 %1721
        %v1726 = vsel %vm469, %v1717, 0
        %v1729 = vsel %vm469, %v1718, 0
        %1731 = vmatpush.bf16.msra.mxu0 0
        %1732 = vmatpush.bf16.msra.mxu0 0
        %1733 = vmatpush.bf16.msra.mxu0 0
        %1734 = vmatpush.bf16.msra.mxu0 0
        %1735 = vmatpush.bf16.msra.mxu0 0
        %1736 = vmatpush.bf16.msra.mxu0 0
        %1737 = vmatpush.bf16.msra.mxu0 %v1722
        %1738 = vmatpush.bf16.msra.mxu0 %v1720
        %1739 = vmatmul.bf16.gmra.mxu0 %v1726
        %v1740 = vpop.f32.mrf.mxu0
        %v1741 = vadd.f32 0.0, %v1740
        %v1742 = vpop.f32.mrf.mxu0
        %v1743 = vadd.f32 0.0, %v1742
        %1744 = vmatmul.bf16.gmra.mxu0 %v1729
        %v1745 = vpop.f32.mrf.mxu0
        %v1746 = vadd.f32 0.0, %v1745
        %v1747 = vpop.f32.mrf.mxu0
        %v1748 = vadd.f32 0.0, %v1747
        %1749 = vdwg.mxu0
        %s1750 = scalar_lea.vmem [#allocation5], 64
        %v1751 = vld [vmem:[%s1750] sm:$0xff]
        %v1752 = vld [vmem:[%s1750 + $0x8] sm:$0xff]
        %v1753 = vld [vmem:[%s1750 + $0x10] sm:$0xff]
        %v1754 = vld [vmem:[%s1750 + $0x18] sm:$0xff]
        %1755 = vrot.lane.b32.xlu0 %v704, 112
        %v1756 = vpop.permute.xlu0 %1755
        %1757 = vrot.lane.b32.xlu0 %v705, 112
        %v1758 = vpop.permute.xlu0 %1757
        %1759 = vrot.lane.b32.xlu0 %v704, 80
        %v1760 = vpop.permute.xlu0 %1759
        %1761 = vrot.lane.b32.xlu0 %v705, 80
        %v1762 = vpop.permute.xlu0 %1761
        %v1764 = vsel %vm710, %v1756, 0
        %v1767 = vsel %vm710, %v1758, 0
        %v1770 = vsel %vm710, %v1760, 0
        %v1773 = vsel %vm710, %v1762, 0
        %1775 = vmatpush.bf16.xpose.msra.mxu0 0
        %1776 = vmatpush.bf16.xpose.msra.mxu0 0
        %1777 = vmatpush.bf16.xpose.msra.mxu0 0
        %1778 = vmatpush.bf16.xpose.msra.mxu0 0
        %1779 = vmatpush.bf16.xpose.msra.mxu0 0
        %1780 = vmatpush.bf16.xpose.msra.mxu0 0
        %1781 = vmatpush.bf16.xpose.msra.mxu0 %v1773
        %1782 = vmatpush.bf16.xpose.msra.mxu0 %v1770
        %1783 = vmatmul.bf16.gmra.mxu0 %v1764
        %v1784 = vpop.f32.mrf.mxu0
        %v1785 = vadd.f32 %v1751, %v1784
        %v1786 = vpop.f32.mrf.mxu0
        %v1787 = vadd.f32 %v1752, %v1786
        %1788 = vmatmul.bf16.gmra.mxu0 %v1767
        %v1789 = vpop.f32.mrf.mxu0
        %v1790 = vadd.f32 %v1753, %v1789
        %v1791 = vpop.f32.mrf.mxu0
        %v1792 = vadd.f32 %v1754, %v1791
        %1793 = vdwg.mxu0
        %1794 = vrot.lane.b32.xlu0 %v750, 112
        %v1795 = vpop.permute.xlu0 %1794
        %1796 = vrot.lane.b32.xlu0 %v751, 112
        %v1797 = vpop.permute.xlu0 %1796
        %1798 = vrot.lane.b32.xlu0 %v750, 80
        %v1799 = vpop.permute.xlu0 %1798
        %1800 = vrot.lane.b32.xlu0 %v751, 80
        %v1801 = vpop.permute.xlu0 %1800
        %v1803 = vsel %vm710, %v1795, 0
        %v1806 = vsel %vm710, %v1797, 0
        %v1809 = vsel %vm710, %v1799, 0
        %v1812 = vsel %vm710, %v1801, 0
        %1814 = vmatpush.bf16.xpose.msra.mxu0 0
        %1815 = vmatpush.bf16.xpose.msra.mxu0 0
        %1816 = vmatpush.bf16.xpose.msra.mxu0 0
        %1817 = vmatpush.bf16.xpose.msra.mxu0 0
        %1818 = vmatpush.bf16.xpose.msra.mxu0 0
        %1819 = vmatpush.bf16.xpose.msra.mxu0 0
        %1820 = vmatpush.bf16.xpose.msra.mxu0 %v1812
        %1821 = vmatpush.bf16.xpose.msra.mxu0 %v1809
        %1822 = vmatmul.bf16.gmra.mxu0 %v1803
        %v1823 = vpop.f32.mrf.mxu0
        %v1824 = vadd.f32 %v1751, %v1823
        %v1825 = vpop.f32.mrf.mxu0
        %v1826 = vadd.f32 %v1752, %v1825
        %1827 = vmatmul.bf16.gmra.mxu0 %v1806
        %v1828 = vpop.f32.mrf.mxu0
        %v1829 = vadd.f32 %v1753, %v1828
        %v1830 = vpop.f32.mrf.mxu0
        %v1831 = vadd.f32 %v1754, %v1830
        %1832 = vdwg.mxu0
        %1833 = vrot.lane.b32.xlu0 %v795, 112
        %v1834 = vpop.permute.xlu0 %1833
        %1835 = vrot.lane.b32.xlu0 %v796, 112
        %v1836 = vpop.permute.xlu0 %1835
        %1837 = vrot.lane.b32.xlu0 %v795, 80
        %v1838 = vpop.permute.xlu0 %1837
        %1839 = vrot.lane.b32.xlu0 %v796, 80
        %v1840 = vpop.permute.xlu0 %1839
        %v1842 = vsel %vm710, %v1834, 0
        %v1845 = vsel %vm710, %v1836, 0
        %v1848 = vsel %vm710, %v1838, 0
        %v1851 = vsel %vm710, %v1840, 0
        %1853 = vmatpush.bf16.xpose.msra.mxu0 0
        %1854 = vmatpush.bf16.xpose.msra.mxu0 0
        %1855 = vmatpush.bf16.xpose.msra.mxu0 0
        %1856 = vmatpush.bf16.xpose.msra.mxu0 0
        %1857 = vmatpush.bf16.xpose.msra.mxu0 0
        %1858 = vmatpush.bf16.xpose.msra.mxu0 0
        %1859 = vmatpush.bf16.xpose.msra.mxu0 %v1851
        %1860 = vmatpush.bf16.xpose.msra.mxu0 %v1848
        %1861 = vmatmul.bf16.gmra.mxu0 %v1842
        %v1862 = vpop.f32.mrf.mxu0
        %v1863 = vadd.f32 %v1751, %v1862
        %v1864 = vpop.f32.mrf.mxu0
        %v1865 = vadd.f32 %v1752, %v1864
        %1866 = vmatmul.bf16.gmra.mxu0 %v1845
        %v1867 = vpop.f32.mrf.mxu0
        %v1868 = vadd.f32 %v1753, %v1867
        %v1869 = vpop.f32.mrf.mxu0
        %v1870 = vadd.f32 %v1754, %v1869
        %1871 = vdwg.mxu0
        %1872 = vrot.lane.b32.xlu0 %v840, 112
        %v1873 = vpop.permute.xlu0 %1872
        %1874 = vrot.lane.b32.xlu0 %v841, 112
        %v1875 = vpop.permute.xlu0 %1874
        %1876 = vrot.lane.b32.xlu0 %v840, 80
        %v1877 = vpop.permute.xlu0 %1876
        %1878 = vrot.lane.b32.xlu0 %v841, 80
        %v1879 = vpop.permute.xlu0 %1878
        %v1881 = vsel %vm710, %v1873, 0
        %v1884 = vsel %vm710, %v1875, 0
        %v1887 = vsel %vm710, %v1877, 0
        %v1890 = vsel %vm710, %v1879, 0
        %1892 = vmatpush.bf16.xpose.msra.mxu0 0
        %1893 = vmatpush.bf16.xpose.msra.mxu0 0
        %1894 = vmatpush.bf16.xpose.msra.mxu0 0
        %1895 = vmatpush.bf16.xpose.msra.mxu0 0
        %1896 = vmatpush.bf16.xpose.msra.mxu0 0
        %1897 = vmatpush.bf16.xpose.msra.mxu0 0
        %1898 = vmatpush.bf16.xpose.msra.mxu0 %v1890
        %1899 = vmatpush.bf16.xpose.msra.mxu0 %v1887
        %1900 = vmatmul.bf16.gmra.mxu0 %v1881
        %v1901 = vpop.f32.mrf.mxu0
        %v1902 = vadd.f32 %v1751, %v1901
        %v1903 = vpop.f32.mrf.mxu0
        %v1904 = vadd.f32 %v1752, %v1903
        %1905 = vmatmul.bf16.gmra.mxu0 %v1884
        %v1906 = vpop.f32.mrf.mxu0
        %v1907 = vadd.f32 %v1753, %v1906
        %v1908 = vpop.f32.mrf.mxu0
        %v1909 = vadd.f32 %v1754, %v1908
        %1910 = vdwg.mxu0
        %v1911 = vsel %vm469, %v1785, -inf
        %1912 = vmax.xlane.f32.xlu0 %v1911
        %v1913 = vpop.xlane.xlu0 %1912
        %v1914 = vsel %vm469, %v1787, -inf
        %1915 = vmax.xlane.f32.xlu0 %v1914
        %v1916 = vpop.xlane.xlu0 %1915
        %v1917 = vsel %vm469, %v1790, -inf
        %1918 = vmax.xlane.f32.xlu0 %v1917
        %v1919 = vpop.xlane.xlu0 %1918
        %v1920 = vsel %vm469, %v1792, -inf
        %1921 = vmax.xlane.f32.xlu0 %v1920
        %v1922 = vpop.xlane.xlu0 %1921
        %v1923 = vsel %vm469, %v1824, -inf
        %1924 = vmax.xlane.f32.xlu0 %v1923
        %v1925 = vpop.xlane.xlu0 %1924
        %v1926 = vsel %vm469, %v1826, -inf
        %1927 = vmax.xlane.f32.xlu0 %v1926
        %v1928 = vpop.xlane.xlu0 %1927
        %v1929 = vsel %vm469, %v1829, -inf
        %1930 = vmax.xlane.f32.xlu0 %v1929
        %v1931 = vpop.xlane.xlu0 %1930
        %v1932 = vsel %vm469, %v1831, -inf
        %1933 = vmax.xlane.f32.xlu0 %v1932
        %v1934 = vpop.xlane.xlu0 %1933
        %v1935 = vsel %vm469, %v1863, -inf
        %1936 = vmax.xlane.f32.xlu0 %v1935
        %v1937 = vpop.xlane.xlu0 %1936
        %v1938 = vsel %vm469, %v1865, -inf
        %1939 = vmax.xlane.f32.xlu0 %v1938
        %v1940 = vpop.xlane.xlu0 %1939
        %v1941 = vsel %vm469, %v1868, -inf
        %1942 = vmax.xlane.f32.xlu0 %v1941
        %v1943 = vpop.xlane.xlu0 %1942
        %v1944 = vsel %vm469, %v1870, -inf
        %1945 = vmax.xlane.f32.xlu0 %v1944
        %v1946 = vpop.xlane.xlu0 %1945
        %v1947 = vsel %vm469, %v1902, -inf
        %1948 = vmax.xlane.f32.xlu0 %v1947
        %v1949 = vpop.xlane.xlu0 %1948
        %v1950 = vsel %vm469, %v1904, -inf
        %1951 = vmax.xlane.f32.xlu0 %v1950
        %v1952 = vpop.xlane.xlu0 %1951
        %v1953 = vsel %vm469, %v1907, -inf
        %1954 = vmax.xlane.f32.xlu0 %v1953
        %v1955 = vpop.xlane.xlu0 %1954
        %v1956 = vsel %vm469, %v1909, -inf
        %1957 = vmax.xlane.f32.xlu0 %v1956
        %v1958 = vpop.xlane.xlu0 %1957
        %v1959 = vsub.f32 %v1785, %v1913
        %v1960 = vsub.f32 %v1787, %v1916
        %v1961 = vsub.f32 %v1790, %v1919
        %v1962 = vsub.f32 %v1792, %v1922
        %v1963 = vsub.f32 %v1824, %v1925
        %v1964 = vsub.f32 %v1826, %v1928
        %v1965 = vsub.f32 %v1829, %v1931
        %v1966 = vsub.f32 %v1831, %v1934
        %v1967 = vsub.f32 %v1863, %v1937
        %v1968 = vsub.f32 %v1865, %v1940
        %v1969 = vsub.f32 %v1868, %v1943
        %v1970 = vsub.f32 %v1870, %v1946
        %v1971 = vsub.f32 %v1902, %v1949
        %v1972 = vsub.f32 %v1904, %v1952
        %v1973 = vsub.f32 %v1907, %v1955
        %v1974 = vsub.f32 %v1909, %v1958
        %v1975 = vmul.f32 %v1959, 1.442695
        %v1976 = vpow.pop %v1975
        %v1977 = vmul.f32 %v1960, 1.442695
        %v1978 = vpow.pop %v1977
        %v1979 = vmul.f32 %v1961, 1.442695
        %v1980 = vpow.pop %v1979
        %v1981 = vmul.f32 %v1962, 1.442695
        %v1982 = vpow.pop %v1981
        %v1983 = vmul.f32 %v1963, 1.442695
        %v1984 = vpow.pop %v1983
        %v1985 = vmul.f32 %v1964, 1.442695
        %v1986 = vpow.pop %v1985
        %v1987 = vmul.f32 %v1965, 1.442695
        %v1988 = vpow.pop %v1987
        %v1989 = vmul.f32 %v1966, 1.442695
        %v1990 = vpow.pop %v1989
        %v1991 = vmul.f32 %v1967, 1.442695
        %v1992 = vpow.pop %v1991
        %v1993 = vmul.f32 %v1968, 1.442695
        %v1994 = vpow.pop %v1993
        %v1995 = vmul.f32 %v1969, 1.442695
        %v1996 = vpow.pop %v1995
        %v1997 = vmul.f32 %v1970, 1.442695
        %v1998 = vpow.pop %v1997
        %v1999 = vmul.f32 %v1971, 1.442695
        %v2000 = vpow.pop %v1999
        %v2001 = vmul.f32 %v1972, 1.442695
        %v2002 = vpow.pop %v2001
        %v2003 = vmul.f32 %v1973, 1.442695
        %v2004 = vpow.pop %v2003
        %v2005 = vmul.f32 %v1974, 1.442695
        %v2006 = vpow.pop %v2005
        %v2007 = vsel %vm469, %v1976, 0.0
        %2008 = vadd.xlane.f32.xlu0 %v2007
        %v2009 = vpop.xlane.xlu0 %2008
        %v2010 = vsel %vm469, %v1978, 0.0
        %2011 = vadd.xlane.f32.xlu0 %v2010
        %v2012 = vpop.xlane.xlu0 %2011
        %v2013 = vsel %vm469, %v1980, 0.0
        %2014 = vadd.xlane.f32.xlu0 %v2013
        %v2015 = vpop.xlane.xlu0 %2014
        %v2016 = vsel %vm469, %v1982, 0.0
        %2017 = vadd.xlane.f32.xlu0 %v2016
        %v2018 = vpop.xlane.xlu0 %2017
        %v2019 = vsel %vm469, %v1984, 0.0
        %2020 = vadd.xlane.f32.xlu0 %v2019
        %v2021 = vpop.xlane.xlu0 %2020
        %v2022 = vsel %vm469, %v1986, 0.0
        %2023 = vadd.xlane.f32.xlu0 %v2022
        %v2024 = vpop.xlane.xlu0 %2023
        %v2025 = vsel %vm469, %v1988, 0.0
        %2026 = vadd.xlane.f32.xlu0 %v2025
        %v2027 = vpop.xlane.xlu0 %2026
        %v2028 = vsel %vm469, %v1990, 0.0
        %2029 = vadd.xlane.f32.xlu0 %v2028
        %v2030 = vpop.xlane.xlu0 %2029
        %v2031 = vsel %vm469, %v1992, 0.0
        %2032 = vadd.xlane.f32.xlu0 %v2031
        %v2033 = vpop.xlane.xlu0 %2032
        %v2034 = vsel %vm469, %v1994, 0.0
        %2035 = vadd.xlane.f32.xlu0 %v2034
        %v2036 = vpop.xlane.xlu0 %2035
        %v2037 = vsel %vm469, %v1996, 0.0
        %2038 = vadd.xlane.f32.xlu0 %v2037
        %v2039 = vpop.xlane.xlu0 %2038
        %v2040 = vsel %vm469, %v1998, 0.0
        %2041 = vadd.xlane.f32.xlu0 %v2040
        %v2042 = vpop.xlane.xlu0 %2041
        %v2043 = vsel %vm469, %v2000, 0.0
        %2044 = vadd.xlane.f32.xlu0 %v2043
        %v2045 = vpop.xlane.xlu0 %2044
        %v2046 = vsel %vm469, %v2002, 0.0
        %2047 = vadd.xlane.f32.xlu0 %v2046
        %v2048 = vpop.xlane.xlu0 %2047
        %v2049 = vsel %vm469, %v2004, 0.0
        %2050 = vadd.xlane.f32.xlu0 %v2049
        %v2051 = vpop.xlane.xlu0 %2050
        %v2052 = vsel %vm469, %v2006, 0.0
        %2053 = vadd.xlane.f32.xlu0 %v2052
        %v2054 = vpop.xlane.xlu0 %2053
        %v2055 = vrcp.pop %v2009
        %v2056 = vrcp.pop %v2012
        %v2057 = vrcp.pop %v2015
        %v2058 = vrcp.pop %v2018
        %v2059 = vrcp.pop %v2021
        %v2060 = vrcp.pop %v2024
        %v2061 = vrcp.pop %v2027
        %v2062 = vrcp.pop %v2030
        %v2063 = vrcp.pop %v2033
        %v2064 = vrcp.pop %v2036
        %v2065 = vrcp.pop %v2039
        %v2066 = vrcp.pop %v2042
        %v2067 = vrcp.pop %v2045
        %v2068 = vrcp.pop %v2048
        %v2069 = vrcp.pop %v2051
        %v2070 = vrcp.pop %v2054
        %v2071 = vmul.f32 %v1976, %v2055
        %v2072 = vmul.f32 %v1978, %v2056
        %v2073 = vmul.f32 %v1980, %v2057
        %v2074 = vmul.f32 %v1982, %v2058
        %v2075 = vmul.f32 %v1984, %v2059
        %v2076 = vmul.f32 %v1986, %v2060
        %v2077 = vmul.f32 %v1988, %v2061
        %v2078 = vmul.f32 %v1990, %v2062
        %v2079 = vmul.f32 %v1992, %v2063
        %v2080 = vmul.f32 %v1994, %v2064
        %v2081 = vmul.f32 %v1996, %v2065
        %v2082 = vmul.f32 %v1998, %v2066
        %v2083 = vmul.f32 %v2000, %v2067
        %v2084 = vmul.f32 %v2002, %v2068
        %v2085 = vmul.f32 %v2004, %v2069
        %v2086 = vmul.f32 %v2006, %v2070
        %v2087 = vpack.c.bf16 %v2071, %v2071
        %v2088 = vpack.c.bf16 %v2072, %v2072
        %v2089 = vpack.c.bf16 %v2073, %v2073
        %v2090 = vpack.c.bf16 %v2074, %v2074
        %v2091 = vpack.c.bf16 %v2075, %v2075
        %v2092 = vpack.c.bf16 %v2076, %v2076
        %v2093 = vpack.c.bf16 %v2077, %v2077
        %v2094 = vpack.c.bf16 %v2078, %v2078
        %v2095 = vpack.c.bf16 %v2079, %v2079
        %v2096 = vpack.c.bf16 %v2080, %v2080
        %v2097 = vpack.c.bf16 %v2081, %v2081
        %v2098 = vpack.c.bf16 %v2082, %v2082
        %v2099 = vpack.c.bf16 %v2083, %v2083
        %v2100 = vpack.c.bf16 %v2084, %v2084
        %v2101 = vpack.c.bf16 %v2085, %v2085
        %v2102 = vpack.c.bf16 %v2086, %v2086
        %v2107 = vunpack.c.l.b16 %v2087
        %v2108 = vunpack.c.l.b16 %v2088
        %v2109 = vunpack.c.l.b16 %v2089
        %v2110 = vunpack.c.l.b16 %v2090
        %v2111 = vpack.c.b16 %v2108, %v2107
        %v2112 = vpack.c.b16 %v2110, %v2109
        %2113 = vrot.lane.b32.xlu0 %v704, 48
        %v2114 = vpop.permute.xlu0 %2113
        %2115 = vrot.lane.b32.xlu0 %v705, 48
        %v2116 = vpop.permute.xlu0 %2115
        %v2120 = vsel %vm469, %v2111, 0
        %v2123 = vsel %vm469, %v2112, 0
        %2125 = vmatpush.bf16.msra.mxu0 0
        %2126 = vmatpush.bf16.msra.mxu0 0
        %2127 = vmatpush.bf16.msra.mxu0 0
        %2128 = vmatpush.bf16.msra.mxu0 0
        %2129 = vmatpush.bf16.msra.mxu0 0
        %2130 = vmatpush.bf16.msra.mxu0 0
        %2131 = vmatpush.bf16.msra.mxu0 %v2116
        %2132 = vmatpush.bf16.msra.mxu0 %v2114
        %2133 = vmatmul.bf16.gmra.mxu0 %v2120
        %v2134 = vpop.f32.mrf.mxu0
        %v2135 = vadd.f32 0.0, %v2134
        %v2136 = vpop.f32.mrf.mxu0
        %v2137 = vadd.f32 0.0, %v2136
        %2138 = vmatmul.bf16.gmra.mxu0 %v2123
        %v2139 = vpop.f32.mrf.mxu0
        %v2140 = vadd.f32 0.0, %v2139
        %v2141 = vpop.f32.mrf.mxu0
        %v2142 = vadd.f32 0.0, %v2141
        %2143 = vdwg.mxu0
        %v2148 = vunpack.c.l.b16 %v2091
        %v2149 = vunpack.c.l.b16 %v2092
        %v2150 = vunpack.c.l.b16 %v2093
        %v2151 = vunpack.c.l.b16 %v2094
        %v2152 = vpack.c.b16 %v2149, %v2148
        %v2153 = vpack.c.b16 %v2151, %v2150
        %2154 = vrot.lane.b32.xlu0 %v750, 48
        %v2155 = vpop.permute.xlu0 %2154
        %2156 = vrot.lane.b32.xlu0 %v751, 48
        %v2157 = vpop.permute.xlu0 %2156
        %v2161 = vsel %vm469, %v2152, 0
        %v2164 = vsel %vm469, %v2153, 0
        %2166 = vmatpush.bf16.msra.mxu0 0
        %2167 = vmatpush.bf16.msra.mxu0 0
        %2168 = vmatpush.bf16.msra.mxu0 0
        %2169 = vmatpush.bf16.msra.mxu0 0
        %2170 = vmatpush.bf16.msra.mxu0 0
        %2171 = vmatpush.bf16.msra.mxu0 0
        %2172 = vmatpush.bf16.msra.mxu0 %v2157
        %2173 = vmatpush.bf16.msra.mxu0 %v2155
        %2174 = vmatmul.bf16.gmra.mxu0 %v2161
        %v2175 = vpop.f32.mrf.mxu0
        %v2176 = vadd.f32 0.0, %v2175
        %v2177 = vpop.f32.mrf.mxu0
        %v2178 = vadd.f32 0.0, %v2177
        %2179 = vmatmul.bf16.gmra.mxu0 %v2164
        %v2180 = vpop.f32.mrf.mxu0
        %v2181 = vadd.f32 0.0, %v2180
        %v2182 = vpop.f32.mrf.mxu0
        %v2183 = vadd.f32 0.0, %v2182
        %2184 = vdwg.mxu0
        %v2189 = vunpack.c.l.b16 %v2095
        %v2190 = vunpack.c.l.b16 %v2096
        %v2191 = vunpack.c.l.b16 %v2097
        %v2192 = vunpack.c.l.b16 %v2098
        %v2193 = vpack.c.b16 %v2190, %v2189
        %v2194 = vpack.c.b16 %v2192, %v2191
        %2195 = vrot.lane.b32.xlu0 %v795, 48
        %v2196 = vpop.permute.xlu0 %2195
        %2197 = vrot.lane.b32.xlu0 %v796, 48
        %v2198 = vpop.permute.xlu0 %2197
        %v2202 = vsel %vm469, %v2193, 0
        %v2205 = vsel %vm469, %v2194, 0
        %2207 = vmatpush.bf16.msra.mxu0 0
        %2208 = vmatpush.bf16.msra.mxu0 0
        %2209 = vmatpush.bf16.msra.mxu0 0
        %2210 = vmatpush.bf16.msra.mxu0 0
        %2211 = vmatpush.bf16.msra.mxu0 0
        %2212 = vmatpush.bf16.msra.mxu0 0
        %2213 = vmatpush.bf16.msra.mxu0 %v2198
        %2214 = vmatpush.bf16.msra.mxu0 %v2196
        %2215 = vmatmul.bf16.gmra.mxu0 %v2202
        %v2216 = vpop.f32.mrf.mxu0
        %v2217 = vadd.f32 0.0, %v2216
        %v2218 = vpop.f32.mrf.mxu0
        %v2219 = vadd.f32 0.0, %v2218
        %2220 = vmatmul.bf16.gmra.mxu0 %v2205
        %v2221 = vpop.f32.mrf.mxu0
        %v2222 = vadd.f32 0.0, %v2221
        %v2223 = vpop.f32.mrf.mxu0
        %v2224 = vadd.f32 0.0, %v2223
        %2225 = vdwg.mxu0
        %v2230 = vunpack.c.l.b16 %v2099
        %v2231 = vunpack.c.l.b16 %v2100
        %v2232 = vunpack.c.l.b16 %v2101
        %v2233 = vunpack.c.l.b16 %v2102
        %v2234 = vpack.c.b16 %v2231, %v2230
        %v2235 = vpack.c.b16 %v2233, %v2232
        %2236 = vrot.lane.b32.xlu0 %v840, 48
        %v2237 = vpop.permute.xlu0 %2236
        %2238 = vrot.lane.b32.xlu0 %v841, 48
        %v2239 = vpop.permute.xlu0 %2238
        %v2243 = vsel %vm469, %v2234, 0
        %v2246 = vsel %vm469, %v2235, 0
        %2248 = vmatpush.bf16.msra.mxu0 0
        %2249 = vmatpush.bf16.msra.mxu0 0
        %2250 = vmatpush.bf16.msra.mxu0 0
        %2251 = vmatpush.bf16.msra.mxu0 0
        %2252 = vmatpush.bf16.msra.mxu0 0
        %2253 = vmatpush.bf16.msra.mxu0 0
        %2254 = vmatpush.bf16.msra.mxu0 %v2239
        %2255 = vmatpush.bf16.msra.mxu0 %v2237
        %2256 = vmatmul.bf16.gmra.mxu0 %v2243
        %v2257 = vpop.f32.mrf.mxu0
        %v2258 = vadd.f32 0.0, %v2257
        %v2259 = vpop.f32.mrf.mxu0
        %v2260 = vadd.f32 0.0, %v2259
        %2261 = vmatmul.bf16.gmra.mxu0 %v2246
        %v2262 = vpop.f32.mrf.mxu0
        %v2263 = vadd.f32 0.0, %v2262
        %v2264 = vpop.f32.mrf.mxu0
        %v2265 = vadd.f32 0.0, %v2264
        %2266 = vdwg.mxu0
        %s2267 = scalar_lea.vmem [#allocation5], 96
        %v2268 = vld [vmem:[%s2267] sm:$0xff]
        %v2269 = vld [vmem:[%s2267 + $0x8] sm:$0xff]
        %v2270 = vld [vmem:[%s2267 + $0x10] sm:$0xff]
        %v2271 = vld [vmem:[%s2267 + $0x18] sm:$0xff]
        %2272 = vrot.lane.b32.xlu0 %v704, 104
        %v2273 = vpop.permute.xlu0 %2272
        %2274 = vrot.lane.b32.xlu0 %v705, 104
        %v2275 = vpop.permute.xlu0 %2274
        %2276 = vrot.lane.b32.xlu0 %v704, 72
        %v2277 = vpop.permute.xlu0 %2276
        %2278 = vrot.lane.b32.xlu0 %v705, 72
        %v2279 = vpop.permute.xlu0 %2278
        %v2281 = vsel %vm710, %v2273, 0
        %v2284 = vsel %vm710, %v2275, 0
        %v2287 = vsel %vm710, %v2277, 0
        %v2290 = vsel %vm710, %v2279, 0
        %2292 = vmatpush.bf16.xpose.msra.mxu0 0
        %2293 = vmatpush.bf16.xpose.msra.mxu0 0
        %2294 = vmatpush.bf16.xpose.msra.mxu0 0
        %2295 = vmatpush.bf16.xpose.msra.mxu0 0
        %2296 = vmatpush.bf16.xpose.msra.mxu0 0
        %2297 = vmatpush.bf16.xpose.msra.mxu0 0
        %2298 = vmatpush.bf16.xpose.msra.mxu0 %v2290
        %2299 = vmatpush.bf16.xpose.msra.mxu0 %v2287
        %2300 = vmatmul.bf16.gmra.mxu0 %v2281
        %v2301 = vpop.f32.mrf.mxu0
        %v2302 = vadd.f32 %v2268, %v2301
        %v2303 = vpop.f32.mrf.mxu0
        %v2304 = vadd.f32 %v2269, %v2303
        %2305 = vmatmul.bf16.gmra.mxu0 %v2284
        %v2306 = vpop.f32.mrf.mxu0
        %v2307 = vadd.f32 %v2270, %v2306
        %v2308 = vpop.f32.mrf.mxu0
        %v2309 = vadd.f32 %v2271, %v2308
        %2310 = vdwg.mxu0
        %2311 = vrot.lane.b32.xlu0 %v750, 104
        %v2312 = vpop.permute.xlu0 %2311
        %2313 = vrot.lane.b32.xlu0 %v751, 104
        %v2314 = vpop.permute.xlu0 %2313
        %2315 = vrot.lane.b32.xlu0 %v750, 72
        %v2316 = vpop.permute.xlu0 %2315
        %2317 = vrot.lane.b32.xlu0 %v751, 72
        %v2318 = vpop.permute.xlu0 %2317
        %v2320 = vsel %vm710, %v2312, 0
        %v2323 = vsel %vm710, %v2314, 0
        %v2326 = vsel %vm710, %v2316, 0
        %v2329 = vsel %vm710, %v2318, 0
        %2331 = vmatpush.bf16.xpose.msra.mxu0 0
        %2332 = vmatpush.bf16.xpose.msra.mxu0 0
        %2333 = vmatpush.bf16.xpose.msra.mxu0 0
        %2334 = vmatpush.bf16.xpose.msra.mxu0 0
        %2335 = vmatpush.bf16.xpose.msra.mxu0 0
        %2336 = vmatpush.bf16.xpose.msra.mxu0 0
        %2337 = vmatpush.bf16.xpose.msra.mxu0 %v2329
        %2338 = vmatpush.bf16.xpose.msra.mxu0 %v2326
        %2339 = vmatmul.bf16.gmra.mxu0 %v2320
        %v2340 = vpop.f32.mrf.mxu0
        %v2341 = vadd.f32 %v2268, %v2340
        %v2342 = vpop.f32.mrf.mxu0
        %v2343 = vadd.f32 %v2269, %v2342
        %2344 = vmatmul.bf16.gmra.mxu0 %v2323
        %v2345 = vpop.f32.mrf.mxu0
        %v2346 = vadd.f32 %v2270, %v2345
        %v2347 = vpop.f32.mrf.mxu0
        %v2348 = vadd.f32 %v2271, %v2347
        %2349 = vdwg.mxu0
        %2350 = vrot.lane.b32.xlu0 %v795, 104
        %v2351 = vpop.permute.xlu0 %2350
        %2352 = vrot.lane.b32.xlu0 %v796, 104
        %v2353 = vpop.permute.xlu0 %2352
        %2354 = vrot.lane.b32.xlu0 %v795, 72
        %v2355 = vpop.permute.xlu0 %2354
        %2356 = vrot.lane.b32.xlu0 %v796, 72
        %v2357 = vpop.permute.xlu0 %2356
        %v2359 = vsel %vm710, %v2351, 0
        %v2362 = vsel %vm710, %v2353, 0
        %v2365 = vsel %vm710, %v2355, 0
        %v2368 = vsel %vm710, %v2357, 0
        %2370 = vmatpush.bf16.xpose.msra.mxu0 0
        %2371 = vmatpush.bf16.xpose.msra.mxu0 0
        %2372 = vmatpush.bf16.xpose.msra.mxu0 0
        %2373 = vmatpush.bf16.xpose.msra.mxu0 0
        %2374 = vmatpush.bf16.xpose.msra.mxu0 0
        %2375 = vmatpush.bf16.xpose.msra.mxu0 0
        %2376 = vmatpush.bf16.xpose.msra.mxu0 %v2368
        %2377 = vmatpush.bf16.xpose.msra.mxu0 %v2365
        %2378 = vmatmul.bf16.gmra.mxu0 %v2359
        %v2379 = vpop.f32.mrf.mxu0
        %v2380 = vadd.f32 %v2268, %v2379
        %v2381 = vpop.f32.mrf.mxu0
        %v2382 = vadd.f32 %v2269, %v2381
        %2383 = vmatmul.bf16.gmra.mxu0 %v2362
        %v2384 = vpop.f32.mrf.mxu0
        %v2385 = vadd.f32 %v2270, %v2384
        %v2386 = vpop.f32.mrf.mxu0
        %v2387 = vadd.f32 %v2271, %v2386
        %2388 = vdwg.mxu0
        %2389 = vrot.lane.b32.xlu0 %v840, 104
        %v2390 = vpop.permute.xlu0 %2389
        %2391 = vrot.lane.b32.xlu0 %v841, 104
        %v2392 = vpop.permute.xlu0 %2391
        %2393 = vrot.lane.b32.xlu0 %v840, 72
        %v2394 = vpop.permute.xlu0 %2393
        %2395 = vrot.lane.b32.xlu0 %v841, 72
        %v2396 = vpop.permute.xlu0 %2395
        %v2398 = vsel %vm710, %v2390, 0
        %v2401 = vsel %vm710, %v2392, 0
        %v2404 = vsel %vm710, %v2394, 0
        %v2407 = vsel %vm710, %v2396, 0
        %2409 = vmatpush.bf16.xpose.msra.mxu0 0
        %2410 = vmatpush.bf16.xpose.msra.mxu0 0
        %2411 = vmatpush.bf16.xpose.msra.mxu0 0
        %2412 = vmatpush.bf16.xpose.msra.mxu0 0
        %2413 = vmatpush.bf16.xpose.msra.mxu0 0
        %2414 = vmatpush.bf16.xpose.msra.mxu0 0
        %2415 = vmatpush.bf16.xpose.msra.mxu0 %v2407
        %2416 = vmatpush.bf16.xpose.msra.mxu0 %v2404
        %2417 = vmatmul.bf16.gmra.mxu0 %v2398
        %v2418 = vpop.f32.mrf.mxu0
        %v2419 = vadd.f32 %v2268, %v2418
        %v2420 = vpop.f32.mrf.mxu0
        %v2421 = vadd.f32 %v2269, %v2420
        %2422 = vmatmul.bf16.gmra.mxu0 %v2401
        %v2423 = vpop.f32.mrf.mxu0
        %v2424 = vadd.f32 %v2270, %v2423
        %v2425 = vpop.f32.mrf.mxu0
        %v2426 = vadd.f32 %v2271, %v2425
        %2427 = vdwg.mxu0
        %v2428 = vsel %vm469, %v2302, -inf
        %2429 = vmax.xlane.f32.xlu0 %v2428
        %v2430 = vpop.xlane.xlu0 %2429
        %v2431 = vsel %vm469, %v2304, -inf
        %2432 = vmax.xlane.f32.xlu0 %v2431
        %v2433 = vpop.xlane.xlu0 %2432
        %v2434 = vsel %vm469, %v2307, -inf
        %2435 = vmax.xlane.f32.xlu0 %v2434
        %v2436 = vpop.xlane.xlu0 %2435
        %v2437 = vsel %vm469, %v2309, -inf
        %2438 = vmax.xlane.f32.xlu0 %v2437
        %v2439 = vpop.xlane.xlu0 %2438
        %v2440 = vsel %vm469, %v2341, -inf
        %2441 = vmax.xlane.f32.xlu0 %v2440
        %v2442 = vpop.xlane.xlu0 %2441
        %v2443 = vsel %vm469, %v2343, -inf
        %2444 = vmax.xlane.f32.xlu0 %v2443
        %v2445 = vpop.xlane.xlu0 %2444
        %v2446 = vsel %vm469, %v2346, -inf
        %2447 = vmax.xlane.f32.xlu0 %v2446
        %v2448 = vpop.xlane.xlu0 %2447
        %v2449 = vsel %vm469, %v2348, -inf
        %2450 = vmax.xlane.f32.xlu0 %v2449
        %v2451 = vpop.xlane.xlu0 %2450
        %v2452 = vsel %vm469, %v2380, -inf
        %2453 = vmax.xlane.f32.xlu0 %v2452
        %v2454 = vpop.xlane.xlu0 %2453
        %v2455 = vsel %vm469, %v2382, -inf
        %2456 = vmax.xlane.f32.xlu0 %v2455
        %v2457 = vpop.xlane.xlu0 %2456
        %v2458 = vsel %vm469, %v2385, -inf
        %2459 = vmax.xlane.f32.xlu0 %v2458
        %v2460 = vpop.xlane.xlu0 %2459
        %v2461 = vsel %vm469, %v2387, -inf
        %2462 = vmax.xlane.f32.xlu0 %v2461
        %v2463 = vpop.xlane.xlu0 %2462
        %v2464 = vsel %vm469, %v2419, -inf
        %2465 = vmax.xlane.f32.xlu0 %v2464
        %v2466 = vpop.xlane.xlu0 %2465
        %v2467 = vsel %vm469, %v2421, -inf
        %2468 = vmax.xlane.f32.xlu0 %v2467
        %v2469 = vpop.xlane.xlu0 %2468
        %v2470 = vsel %vm469, %v2424, -inf
        %2471 = vmax.xlane.f32.xlu0 %v2470
        %v2472 = vpop.xlane.xlu0 %2471
        %v2473 = vsel %vm469, %v2426, -inf
        %2474 = vmax.xlane.f32.xlu0 %v2473
        %v2475 = vpop.xlane.xlu0 %2474
        %v2476 = vsub.f32 %v2302, %v2430
        %v2477 = vsub.f32 %v2304, %v2433
        %v2478 = vsub.f32 %v2307, %v2436
        %v2479 = vsub.f32 %v2309, %v2439
        %v2480 = vsub.f32 %v2341, %v2442
        %v2481 = vsub.f32 %v2343, %v2445
        %v2482 = vsub.f32 %v2346, %v2448
        %v2483 = vsub.f32 %v2348, %v2451
        %v2484 = vsub.f32 %v2380, %v2454
        %v2485 = vsub.f32 %v2382, %v2457
        %v2486 = vsub.f32 %v2385, %v2460
        %v2487 = vsub.f32 %v2387, %v2463
        %v2488 = vsub.f32 %v2419, %v2466
        %v2489 = vsub.f32 %v2421, %v2469
        %v2490 = vsub.f32 %v2424, %v2472
        %v2491 = vsub.f32 %v2426, %v2475
        %v2492 = vmul.f32 %v2476, 1.442695
        %v2493 = vpow.pop %v2492
        %v2494 = vmul.f32 %v2477, 1.442695
        %v2495 = vpow.pop %v2494
        %v2496 = vmul.f32 %v2478, 1.442695
        %v2497 = vpow.pop %v2496
        %v2498 = vmul.f32 %v2479, 1.442695
        %v2499 = vpow.pop %v2498
        %v2500 = vmul.f32 %v2480, 1.442695
        %v2501 = vpow.pop %v2500
        %v2502 = vmul.f32 %v2481, 1.442695
        %v2503 = vpow.pop %v2502
        %v2504 = vmul.f32 %v2482, 1.442695
        %v2505 = vpow.pop %v2504
        %v2506 = vmul.f32 %v2483, 1.442695
        %v2507 = vpow.pop %v2506
        %v2508 = vmul.f32 %v2484, 1.442695
        %v2509 = vpow.pop %v2508
        %v2510 = vmul.f32 %v2485, 1.442695
        %v2511 = vpow.pop %v2510
        %v2512 = vmul.f32 %v2486, 1.442695
        %v2513 = vpow.pop %v2512
        %v2514 = vmul.f32 %v2487, 1.442695
        %v2515 = vpow.pop %v2514
        %v2516 = vmul.f32 %v2488, 1.442695
        %v2517 = vpow.pop %v2516
        %v2518 = vmul.f32 %v2489, 1.442695
        %v2519 = vpow.pop %v2518
        %v2520 = vmul.f32 %v2490, 1.442695
        %v2521 = vpow.pop %v2520
        %v2522 = vmul.f32 %v2491, 1.442695
        %v2523 = vpow.pop %v2522
        %v2524 = vsel %vm469, %v2493, 0.0
        %2525 = vadd.xlane.f32.xlu0 %v2524
        %v2526 = vpop.xlane.xlu0 %2525
        %v2527 = vsel %vm469, %v2495, 0.0
        %2528 = vadd.xlane.f32.xlu0 %v2527
        %v2529 = vpop.xlane.xlu0 %2528
        %v2530 = vsel %vm469, %v2497, 0.0
        %2531 = vadd.xlane.f32.xlu0 %v2530
        %v2532 = vpop.xlane.xlu0 %2531
        %v2533 = vsel %vm469, %v2499, 0.0
        %2534 = vadd.xlane.f32.xlu0 %v2533
        %v2535 = vpop.xlane.xlu0 %2534
        %v2536 = vsel %vm469, %v2501, 0.0
        %2537 = vadd.xlane.f32.xlu0 %v2536
        %v2538 = vpop.xlane.xlu0 %2537
        %v2539 = vsel %vm469, %v2503, 0.0
        %2540 = vadd.xlane.f32.xlu0 %v2539
        %v2541 = vpop.xlane.xlu0 %2540
        %v2542 = vsel %vm469, %v2505, 0.0
        %2543 = vadd.xlane.f32.xlu0 %v2542
        %v2544 = vpop.xlane.xlu0 %2543
        %v2545 = vsel %vm469, %v2507, 0.0
        %2546 = vadd.xlane.f32.xlu0 %v2545
        %v2547 = vpop.xlane.xlu0 %2546
        %v2548 = vsel %vm469, %v2509, 0.0
        %2549 = vadd.xlane.f32.xlu0 %v2548
        %v2550 = vpop.xlane.xlu0 %2549
        %v2551 = vsel %vm469, %v2511, 0.0
        %2552 = vadd.xlane.f32.xlu0 %v2551
        %v2553 = vpop.xlane.xlu0 %2552
        %v2554 = vsel %vm469, %v2513, 0.0
        %2555 = vadd.xlane.f32.xlu0 %v2554
        %v2556 = vpop.xlane.xlu0 %2555
        %v2557 = vsel %vm469, %v2515, 0.0
        %2558 = vadd.xlane.f32.xlu0 %v2557
        %v2559 = vpop.xlane.xlu0 %2558
        %v2560 = vsel %vm469, %v2517, 0.0
        %2561 = vadd.xlane.f32.xlu0 %v2560
        %v2562 = vpop.xlane.xlu0 %2561
        %v2563 = vsel %vm469, %v2519, 0.0
        %2564 = vadd.xlane.f32.xlu0 %v2563
        %v2565 = vpop.xlane.xlu0 %2564
        %v2566 = vsel %vm469, %v2521, 0.0
        %2567 = vadd.xlane.f32.xlu0 %v2566
        %v2568 = vpop.xlane.xlu0 %2567
        %v2569 = vsel %vm469, %v2523, 0.0
        %2570 = vadd.xlane.f32.xlu0 %v2569
        %v2571 = vpop.xlane.xlu0 %2570
        %v2572 = vrcp.pop %v2526
        %v2573 = vrcp.pop %v2529
        %v2574 = vrcp.pop %v2532
        %v2575 = vrcp.pop %v2535
        %v2576 = vrcp.pop %v2538
        %v2577 = vrcp.pop %v2541
        %v2578 = vrcp.pop %v2544
        %v2579 = vrcp.pop %v2547
        %v2580 = vrcp.pop %v2550
        %v2581 = vrcp.pop %v2553
        %v2582 = vrcp.pop %v2556
        %v2583 = vrcp.pop %v2559
        %v2584 = vrcp.pop %v2562
        %v2585 = vrcp.pop %v2565
        %v2586 = vrcp.pop %v2568
        %v2587 = vrcp.pop %v2571
        %v2588 = vmul.f32 %v2493, %v2572
        %v2589 = vmul.f32 %v2495, %v2573
        %v2590 = vmul.f32 %v2497, %v2574
        %v2591 = vmul.f32 %v2499, %v2575
        %v2592 = vmul.f32 %v2501, %v2576
        %v2593 = vmul.f32 %v2503, %v2577
        %v2594 = vmul.f32 %v2505, %v2578
        %v2595 = vmul.f32 %v2507, %v2579
        %v2596 = vmul.f32 %v2509, %v2580
        %v2597 = vmul.f32 %v2511, %v2581
        %v2598 = vmul.f32 %v2513, %v2582
        %v2599 = vmul.f32 %v2515, %v2583
        %v2600 = vmul.f32 %v2517, %v2584
        %v2601 = vmul.f32 %v2519, %v2585
        %v2602 = vmul.f32 %v2521, %v2586
        %v2603 = vmul.f32 %v2523, %v2587
        %v2604 = vpack.c.bf16 %v2588, %v2588
        %v2605 = vpack.c.bf16 %v2589, %v2589
        %v2606 = vpack.c.bf16 %v2590, %v2590
        %v2607 = vpack.c.bf16 %v2591, %v2591
        %v2608 = vpack.c.bf16 %v2592, %v2592
        %v2609 = vpack.c.bf16 %v2593, %v2593
        %v2610 = vpack.c.bf16 %v2594, %v2594
        %v2611 = vpack.c.bf16 %v2595, %v2595
        %v2612 = vpack.c.bf16 %v2596, %v2596
        %v2613 = vpack.c.bf16 %v2597, %v2597
        %v2614 = vpack.c.bf16 %v2598, %v2598
        %v2615 = vpack.c.bf16 %v2599, %v2599
        %v2616 = vpack.c.bf16 %v2600, %v2600
        %v2617 = vpack.c.bf16 %v2601, %v2601
        %v2618 = vpack.c.bf16 %v2602, %v2602
        %v2619 = vpack.c.bf16 %v2603, %v2603
        %v2624 = vunpack.c.l.b16 %v2604
        %v2625 = vunpack.c.l.b16 %v2605
        %v2626 = vunpack.c.l.b16 %v2606
        %v2627 = vunpack.c.l.b16 %v2607
        %v2628 = vpack.c.b16 %v2625, %v2624
        %v2629 = vpack.c.b16 %v2627, %v2626
        %2630 = vrot.lane.b32.xlu0 %v704, 40
        %v2631 = vpop.permute.xlu0 %2630
        %2632 = vrot.lane.b32.xlu0 %v705, 40
        %v2633 = vpop.permute.xlu0 %2632
        %v2637 = vsel %vm469, %v2628, 0
        %v2640 = vsel %vm469, %v2629, 0
        %2642 = vmatpush.bf16.msra.mxu0 0
        %2643 = vmatpush.bf16.msra.mxu0 0
        %2644 = vmatpush.bf16.msra.mxu0 0
        %2645 = vmatpush.bf16.msra.mxu0 0
        %2646 = vmatpush.bf16.msra.mxu0 0
        %2647 = vmatpush.bf16.msra.mxu0 0
        %2648 = vmatpush.bf16.msra.mxu0 %v2633
        %2649 = vmatpush.bf16.msra.mxu0 %v2631
        %2650 = vmatmul.bf16.gmra.mxu0 %v2637
        %v2651 = vpop.f32.mrf.mxu0
        %v2652 = vadd.f32 0.0, %v2651
        %v2653 = vpop.f32.mrf.mxu0
        %v2654 = vadd.f32 0.0, %v2653
        %2655 = vmatmul.bf16.gmra.mxu0 %v2640
        %v2656 = vpop.f32.mrf.mxu0
        %v2657 = vadd.f32 0.0, %v2656
        %v2658 = vpop.f32.mrf.mxu0
        %v2659 = vadd.f32 0.0, %v2658
        %2660 = vdwg.mxu0
        %v2665 = vunpack.c.l.b16 %v2608
        %v2666 = vunpack.c.l.b16 %v2609
        %v2667 = vunpack.c.l.b16 %v2610
        %v2668 = vunpack.c.l.b16 %v2611
        %v2669 = vpack.c.b16 %v2666, %v2665
        %v2670 = vpack.c.b16 %v2668, %v2667
        %2671 = vrot.lane.b32.xlu0 %v750, 40
        %v2672 = vpop.permute.xlu0 %2671
        %2673 = vrot.lane.b32.xlu0 %v751, 40
        %v2674 = vpop.permute.xlu0 %2673
        %v2678 = vsel %vm469, %v2669, 0
        %v2681 = vsel %vm469, %v2670, 0
        %2683 = vmatpush.bf16.msra.mxu0 0
        %2684 = vmatpush.bf16.msra.mxu0 0
        %2685 = vmatpush.bf16.msra.mxu0 0
        %2686 = vmatpush.bf16.msra.mxu0 0
        %2687 = vmatpush.bf16.msra.mxu0 0
        %2688 = vmatpush.bf16.msra.mxu0 0
        %2689 = vmatpush.bf16.msra.mxu0 %v2674
        %2690 = vmatpush.bf16.msra.mxu0 %v2672
        %2691 = vmatmul.bf16.gmra.mxu0 %v2678
        %v2692 = vpop.f32.mrf.mxu0
        %v2693 = vadd.f32 0.0, %v2692
        %v2694 = vpop.f32.mrf.mxu0
        %v2695 = vadd.f32 0.0, %v2694
        %2696 = vmatmul.bf16.gmra.mxu0 %v2681
        %v2697 = vpop.f32.mrf.mxu0
        %v2698 = vadd.f32 0.0, %v2697
        %v2699 = vpop.f32.mrf.mxu0
        %v2700 = vadd.f32 0.0, %v2699
        %2701 = vdwg.mxu0
        %v2706 = vunpack.c.l.b16 %v2612
        %v2707 = vunpack.c.l.b16 %v2613
        %v2708 = vunpack.c.l.b16 %v2614
        %v2709 = vunpack.c.l.b16 %v2615
        %v2710 = vpack.c.b16 %v2707, %v2706
        %v2711 = vpack.c.b16 %v2709, %v2708
        %2712 = vrot.lane.b32.xlu0 %v795, 40
        %v2713 = vpop.permute.xlu0 %2712
        %2714 = vrot.lane.b32.xlu0 %v796, 40
        %v2715 = vpop.permute.xlu0 %2714
        %v2719 = vsel %vm469, %v2710, 0
        %v2722 = vsel %vm469, %v2711, 0
        %2724 = vmatpush.bf16.msra.mxu0 0
        %2725 = vmatpush.bf16.msra.mxu0 0
        %2726 = vmatpush.bf16.msra.mxu0 0
        %2727 = vmatpush.bf16.msra.mxu0 0
        %2728 = vmatpush.bf16.msra.mxu0 0
        %2729 = vmatpush.bf16.msra.mxu0 0
        %2730 = vmatpush.bf16.msra.mxu0 %v2715
        %2731 = vmatpush.bf16.msra.mxu0 %v2713
        %2732 = vmatmul.bf16.gmra.mxu0 %v2719
        %v2733 = vpop.f32.mrf.mxu0
        %v2734 = vadd.f32 0.0, %v2733
        %v2735 = vpop.f32.mrf.mxu0
        %v2736 = vadd.f32 0.0, %v2735
        %2737 = vmatmul.bf16.gmra.mxu0 %v2722
        %v2738 = vpop.f32.mrf.mxu0
        %v2739 = vadd.f32 0.0, %v2738
        %v2740 = vpop.f32.mrf.mxu0
        %v2741 = vadd.f32 0.0, %v2740
        %2742 = vdwg.mxu0
        %v2747 = vunpack.c.l.b16 %v2616
        %v2748 = vunpack.c.l.b16 %v2617
        %v2749 = vunpack.c.l.b16 %v2618
        %v2750 = vunpack.c.l.b16 %v2619
        %v2751 = vpack.c.b16 %v2748, %v2747
        %v2752 = vpack.c.b16 %v2750, %v2749
        %2753 = vrot.lane.b32.xlu0 %v840, 40
        %v2754 = vpop.permute.xlu0 %2753
        %2755 = vrot.lane.b32.xlu0 %v841, 40
        %v2756 = vpop.permute.xlu0 %2755
        %v2760 = vsel %vm469, %v2751, 0
        %v2763 = vsel %vm469, %v2752, 0
        %2765 = vmatpush.bf16.msra.mxu0 0
        %2766 = vmatpush.bf16.msra.mxu0 0
        %2767 = vmatpush.bf16.msra.mxu0 0
        %2768 = vmatpush.bf16.msra.mxu0 0
        %2769 = vmatpush.bf16.msra.mxu0 0
        %2770 = vmatpush.bf16.msra.mxu0 0
        %2771 = vmatpush.bf16.msra.mxu0 %v2756
        %2772 = vmatpush.bf16.msra.mxu0 %v2754
        %2773 = vmatmul.bf16.gmra.mxu0 %v2760
        %v2774 = vpop.f32.mrf.mxu0
        %v2775 = vadd.f32 0.0, %v2774
        %v2776 = vpop.f32.mrf.mxu0
        %v2777 = vadd.f32 0.0, %v2776
        %2778 = vmatmul.bf16.gmra.mxu0 %v2763
        %v2779 = vpop.f32.mrf.mxu0
        %v2780 = vadd.f32 0.0, %v2779
        %v2781 = vpop.f32.mrf.mxu0
        %v2782 = vadd.f32 0.0, %v2781
        %2783 = vdwg.mxu0
        %2800 = vrot.lane.b32.xlu0 %v1618, 8
        %v2801 = vpop.permute.xlu0 %2800
        %2802 = vrot.lane.b32.xlu0 %v1620, 8
        %v2803 = vpop.permute.xlu0 %2802
        %2804 = vrot.lane.b32.xlu0 %v1623, 8
        %v2805 = vpop.permute.xlu0 %2804
        %2806 = vrot.lane.b32.xlu0 %v1625, 8
        %v2807 = vpop.permute.xlu0 %2806
        %2808 = vrot.lane.b32.xlu0 %v1659, 8
        %v2809 = vpop.permute.xlu0 %2808
        %2810 = vrot.lane.b32.xlu0 %v1661, 8
        %v2811 = vpop.permute.xlu0 %2810
        %2812 = vrot.lane.b32.xlu0 %v1664, 8
        %v2813 = vpop.permute.xlu0 %2812
        %2814 = vrot.lane.b32.xlu0 %v1666, 8
        %v2815 = vpop.permute.xlu0 %2814
        %2816 = vrot.lane.b32.xlu0 %v1700, 8
        %v2817 = vpop.permute.xlu0 %2816
        %2818 = vrot.lane.b32.xlu0 %v1702, 8
        %v2819 = vpop.permute.xlu0 %2818
        %2820 = vrot.lane.b32.xlu0 %v1705, 8
        %v2821 = vpop.permute.xlu0 %2820
        %2822 = vrot.lane.b32.xlu0 %v1707, 8
        %v2823 = vpop.permute.xlu0 %2822
        %2824 = vrot.lane.b32.xlu0 %v1741, 8
        %v2825 = vpop.permute.xlu0 %2824
        %2826 = vrot.lane.b32.xlu0 %v1743, 8
        %v2827 = vpop.permute.xlu0 %2826
        %2828 = vrot.lane.b32.xlu0 %v1746, 8
        %v2829 = vpop.permute.xlu0 %2828
        %2830 = vrot.lane.b32.xlu0 %v1748, 8
        %v2831 = vpop.permute.xlu0 %2830
        %2864 = vrot.lane.b32.xlu0 %v2135, 16
        %v2865 = vpop.permute.xlu0 %2864
        %2866 = vrot.lane.b32.xlu0 %v2137, 16
        %v2867 = vpop.permute.xlu0 %2866
        %2868 = vrot.lane.b32.xlu0 %v2140, 16
        %v2869 = vpop.permute.xlu0 %2868
        %2870 = vrot.lane.b32.xlu0 %v2142, 16
        %v2871 = vpop.permute.xlu0 %2870
        %2872 = vrot.lane.b32.xlu0 %v2176, 16
        %v2873 = vpop.permute.xlu0 %2872
        %2874 = vrot.lane.b32.xlu0 %v2178, 16
        %v2875 = vpop.permute.xlu0 %2874
        %2876 = vrot.lane.b32.xlu0 %v2181, 16
        %v2877 = vpop.permute.xlu0 %2876
        %2878 = vrot.lane.b32.xlu0 %v2183, 16
        %v2879 = vpop.permute.xlu0 %2878
        %2880 = vrot.lane.b32.xlu0 %v2217, 16
        %v2881 = vpop.permute.xlu0 %2880
        %2882 = vrot.lane.b32.xlu0 %v2219, 16
        %v2883 = vpop.permute.xlu0 %2882
        %2884 = vrot.lane.b32.xlu0 %v2222, 16
        %v2885 = vpop.permute.xlu0 %2884
        %2886 = vrot.lane.b32.xlu0 %v2224, 16
        %v2887 = vpop.permute.xlu0 %2886
        %2888 = vrot.lane.b32.xlu0 %v2258, 16
        %v2889 = vpop.permute.xlu0 %2888
        %2890 = vrot.lane.b32.xlu0 %v2260, 16
        %v2891 = vpop.permute.xlu0 %2890
        %2892 = vrot.lane.b32.xlu0 %v2263, 16
        %v2893 = vpop.permute.xlu0 %2892
        %2894 = vrot.lane.b32.xlu0 %v2265, 16
        %v2895 = vpop.permute.xlu0 %2894
        %2928 = vrot.lane.b32.xlu0 %v2652, 24
        %v2929 = vpop.permute.xlu0 %2928
        %2930 = vrot.lane.b32.xlu0 %v2654, 24
        %v2931 = vpop.permute.xlu0 %2930
        %2932 = vrot.lane.b32.xlu0 %v2657, 24
        %v2933 = vpop.permute.xlu0 %2932
        %2934 = vrot.lane.b32.xlu0 %v2659, 24
        %v2935 = vpop.permute.xlu0 %2934
        %2936 = vrot.lane.b32.xlu0 %v2693, 24
        %v2937 = vpop.permute.xlu0 %2936
        %2938 = vrot.lane.b32.xlu0 %v2695, 24
        %v2939 = vpop.permute.xlu0 %2938
        %2940 = vrot.lane.b32.xlu0 %v2698, 24
        %v2941 = vpop.permute.xlu0 %2940
        %2942 = vrot.lane.b32.xlu0 %v2700, 24
        %v2943 = vpop.permute.xlu0 %2942
        %2944 = vrot.lane.b32.xlu0 %v2734, 24
        %v2945 = vpop.permute.xlu0 %2944
        %2946 = vrot.lane.b32.xlu0 %v2736, 24
        %v2947 = vpop.permute.xlu0 %2946
        %2948 = vrot.lane.b32.xlu0 %v2739, 24
        %v2949 = vpop.permute.xlu0 %2948
        %2950 = vrot.lane.b32.xlu0 %v2741, 24
        %v2951 = vpop.permute.xlu0 %2950
        %2952 = vrot.lane.b32.xlu0 %v2775, 24
        %v2953 = vpop.permute.xlu0 %2952
        %2954 = vrot.lane.b32.xlu0 %v2777, 24
        %v2955 = vpop.permute.xlu0 %2954
        %2956 = vrot.lane.b32.xlu0 %v2780, 24
        %v2957 = vpop.permute.xlu0 %2956
        %2958 = vrot.lane.b32.xlu0 %v2782, 24
        %v2959 = vpop.permute.xlu0 %2958
        %v2976 = vsel %vm710, %v1101, %v2801
        %v2977 = vsel %vm710, %v1103, %v2803
        %v2978 = vsel %vm710, %v1106, %v2805
        %v2979 = vsel %vm710, %v1108, %v2807
        %v2980 = vsel %vm710, %v1142, %v2809
        %v2981 = vsel %vm710, %v1144, %v2811
        %v2982 = vsel %vm710, %v1147, %v2813
        %v2983 = vsel %vm710, %v1149, %v2815
        %v2984 = vsel %vm710, %v1183, %v2817
        %v2985 = vsel %vm710, %v1185, %v2819
        %v2986 = vsel %vm710, %v1188, %v2821
        %v2987 = vsel %vm710, %v1190, %v2823
        %v2988 = vsel %vm710, %v1224, %v2825
        %v2989 = vsel %vm710, %v1226, %v2827
        %v2990 = vsel %vm710, %v1229, %v2829
        %v2991 = vsel %vm710, %v1231, %v2831
        %vm2992 = vcmask 130048
        %v2993 = vsel %vm2992, %v2976, %v2865
        %v2994 = vsel %vm2992, %v2977, %v2867
        %v2995 = vsel %vm2992, %v2978, %v2869
        %v2996 = vsel %vm2992, %v2979, %v2871
        %v2997 = vsel %vm2992, %v2980, %v2873
        %v2998 = vsel %vm2992, %v2981, %v2875
        %v2999 = vsel %vm2992, %v2982, %v2877
        %v3000 = vsel %vm2992, %v2983, %v2879
        %v3001 = vsel %vm2992, %v2984, %v2881
        %v3002 = vsel %vm2992, %v2985, %v2883
        %v3003 = vsel %vm2992, %v2986, %v2885
        %v3004 = vsel %vm2992, %v2987, %v2887
        %v3005 = vsel %vm2992, %v2988, %v2889
        %v3006 = vsel %vm2992, %v2989, %v2891
        %v3007 = vsel %vm2992, %v2990, %v2893
        %v3008 = vsel %vm2992, %v2991, %v2895
        %vm3009 = vcmask 195584
        %v3010 = vsel %vm3009, %v2993, %v2929
        %v3011 = vsel %vm3009, %v2994, %v2931
        %v3012 = vsel %vm3009, %v2995, %v2933
        %v3013 = vsel %vm3009, %v2996, %v2935
        %v3014 = vsel %vm3009, %v2997, %v2937
        %v3015 = vsel %vm3009, %v2998, %v2939
        %v3016 = vsel %vm3009, %v2999, %v2941
        %v3017 = vsel %vm3009, %v3000, %v2943
        %v3018 = vsel %vm3009, %v3001, %v2945
        %v3019 = vsel %vm3009, %v3002, %v2947
        %v3020 = vsel %vm3009, %v3003, %v2949
        %v3021 = vsel %vm3009, %v3004, %v2951
        %v3022 = vsel %vm3009, %v3005, %v2953
        %v3023 = vsel %vm3009, %v3006, %v2955
        %v3024 = vsel %vm3009, %v3007, %v2957
        %v3025 = vsel %vm3009, %v3008, %v2959
        %v3026 = vpack.c.bf16 %v3011, %v3010
        %v3027 = vpack.c.bf16 %v3013, %v3012
        %v3028 = vpack.c.bf16 %v3015, %v3014
        %v3029 = vpack.c.bf16 %v3017, %v3016
        %v3030 = vpack.c.bf16 %v3019, %v3018
        %v3031 = vpack.c.bf16 %v3021, %v3020
        %v3032 = vpack.c.bf16 %v3023, %v3022
        %v3033 = vpack.c.bf16 %v3025, %v3024
        %v3034 = vld [vmem:[#allocation8] sm:$0xf]
        %v3035 = vld [vmem:[#allocation8 + $0x4] sm:$0xf]
        %v3036 = vld [vmem:[#allocation8 + $0x8] sm:$0xf]
        %v3037 = vld [vmem:[#allocation8 + $0xc] sm:$0xf]
        %v3042 = vunpack.c.l.b16 %v3034
        %v3043 = vunpack.c.l.b16 %v3035
        %v3044 = vunpack.c.l.b16 %v3036
        %v3045 = vunpack.c.l.b16 %v3037
        %v3046 = vpack.c.b16 %v3043, %v3042
        %v3047 = vpack.c.b16 %v3045, %v3044
        %v3051 = vsel %vm469, %v3026, 0
        %v3054 = vsel %vm469, %v3027, 0
        %v3057 = vsel %vm469, %v3028, 0
        %v3060 = vsel %vm469, %v3029, 0
        %v3063 = vsel %vm469, %v3030, 0
        %v3066 = vsel %vm469, %v3031, 0
        %v3069 = vsel %vm469, %v3032, 0
        %v3072 = vsel %vm469, %v3033, 0
        %3074 = vmatpush.bf16.msra.mxu0 0
        %3075 = vmatpush.bf16.msra.mxu0 0
        %3076 = vmatpush.bf16.msra.mxu0 0
        %3077 = vmatpush.bf16.msra.mxu0 0
        %3078 = vmatpush.bf16.msra.mxu0 0
        %3079 = vmatpush.bf16.msra.mxu0 0
        %3080 = vmatpush.bf16.msra.mxu0 %v3047
        %3081 = vmatpush.bf16.msra.mxu0 %v3046
        %3082 = vmatmul.bf16.gmra.mxu0 %v3051
        %v3083 = vpop.f32.mrf.mxu0
        %v3084 = vadd.f32 0.0, %v3083
        %v3085 = vpop.f32.mrf.mxu0
        %v3086 = vadd.f32 0.0, %v3085
        %3087 = vmatmul.bf16.gmra.mxu0 %v3054
        %v3088 = vpop.f32.mrf.mxu0
        %v3089 = vadd.f32 0.0, %v3088
        %v3090 = vpop.f32.mrf.mxu0
        %v3091 = vadd.f32 0.0, %v3090
        %3092 = vmatmul.bf16.gmra.mxu0 %v3057
        %v3093 = vpop.f32.mrf.mxu0
        %v3094 = vadd.f32 0.0, %v3093
        %v3095 = vpop.f32.mrf.mxu0
        %v3096 = vadd.f32 0.0, %v3095
        %3097 = vmatmul.bf16.gmra.mxu0 %v3060
        %v3098 = vpop.f32.mrf.mxu0
        %v3099 = vadd.f32 0.0, %v3098
        %v3100 = vpop.f32.mrf.mxu0
        %v3101 = vadd.f32 0.0, %v3100
        %3102 = vmatmul.bf16.gmra.mxu0 %v3063
        %v3103 = vpop.f32.mrf.mxu0
        %v3104 = vadd.f32 0.0, %v3103
        %v3105 = vpop.f32.mrf.mxu0
        %v3106 = vadd.f32 0.0, %v3105
        %3107 = vmatmul.bf16.gmra.mxu0 %v3066
        %v3108 = vpop.f32.mrf.mxu0
        %v3109 = vadd.f32 0.0, %v3108
        %v3110 = vpop.f32.mrf.mxu0
        %v3111 = vadd.f32 0.0, %v3110
        %3112 = vmatmul.bf16.gmra.mxu0 %v3069
        %v3113 = vpop.f32.mrf.mxu0
        %v3114 = vadd.f32 0.0, %v3113
        %v3115 = vpop.f32.mrf.mxu0
        %v3116 = vadd.f32 0.0, %v3115
        %3117 = vmatmul.bf16.gmra.mxu0 %v3072
        %v3118 = vpop.f32.mrf.mxu0
        %v3119 = vadd.f32 0.0, %v3118
        %v3120 = vpop.f32.mrf.mxu0
        %v3121 = vadd.f32 0.0, %v3120
        %3122 = vdwg.mxu0
        %v3125 = vunpack.c.l.b16 %v678
        %v3126 = vunpack.c.l.b16 %v679
        %v3127 = vpack.c.b16 %v3126, %v3125
        %v3130 = vunpack.c.l.b16 %v676
        %v3131 = vunpack.c.l.b16 %v677
        %v3132 = vpack.c.b16 %v3131, %v3130
        %3133 = vrot.lane.b32.xlu0 %v3132, 96
        %v3134 = vpop.permute.xlu0 %3133
        %v3136 = vsel %vm710, %v3127, 0
        %v3139 = vsel %vm710, %v3134, 0
        %3141 = vmatpush.bf16.xpose.msra.mxu0 0
        %3142 = vmatpush.bf16.xpose.msra.mxu0 0
        %3143 = vmatpush.bf16.xpose.msra.mxu0 0
        %3144 = vmatpush.bf16.xpose.msra.mxu0 0
        %3145 = vmatpush.bf16.xpose.msra.mxu0 0
        %3146 = vmatpush.bf16.xpose.msra.mxu0 0
        %3147 = vmatpush.bf16.xpose.msra.mxu0 0
        %3148 = vmatpush.bf16.xpose.msra.mxu0 %v3139
        %3149 = vmatmul.bf16.gmra.mxu0 %v3136
        %v3150 = vpop.f32.mrf.mxu0
        %v3151 = vadd.f32 0.0, %v3150
        %v3152 = vpop.f32.mrf.mxu0
        %v3153 = vadd.f32 0.0, %v3152
        %3154 = vdwg.mxu0
        %v3157 = vunpack.c.l.b16 %v682
        %v3158 = vunpack.c.l.b16 %v683
        %v3159 = vpack.c.b16 %v3158, %v3157
        %v3162 = vunpack.c.l.b16 %v680
        %v3163 = vunpack.c.l.b16 %v681
        %v3164 = vpack.c.b16 %v3163, %v3162
        %3165 = vrot.lane.b32.xlu0 %v3164, 96
        %v3166 = vpop.permute.xlu0 %3165
        %v3168 = vsel %vm710, %v3159, 0
        %v3171 = vsel %vm710, %v3166, 0
        %3173 = vmatpush.bf16.xpose.msra.mxu0 0
        %3174 = vmatpush.bf16.xpose.msra.mxu0 0
        %3175 = vmatpush.bf16.xpose.msra.mxu0 0
        %3176 = vmatpush.bf16.xpose.msra.mxu0 0
        %3177 = vmatpush.bf16.xpose.msra.mxu0 0
        %3178 = vmatpush.bf16.xpose.msra.mxu0 0
        %3179 = vmatpush.bf16.xpose.msra.mxu0 0
        %3180 = vmatpush.bf16.xpose.msra.mxu0 %v3171
        %3181 = vmatmul.bf16.gmra.mxu0 %v3168
        %v3182 = vpop.f32.mrf.mxu0
        %v3183 = vadd.f32 0.0, %v3182
        %v3184 = vpop.f32.mrf.mxu0
        %v3185 = vadd.f32 0.0, %v3184
        %3186 = vdwg.mxu0
        %v3189 = vunpack.c.l.b16 %v686
        %v3190 = vunpack.c.l.b16 %v687
        %v3191 = vpack.c.b16 %v3190, %v3189
        %v3194 = vunpack.c.l.b16 %v684
        %v3195 = vunpack.c.l.b16 %v685
        %v3196 = vpack.c.b16 %v3195, %v3194
        %3197 = vrot.lane.b32.xlu0 %v3196, 96
        %v3198 = vpop.permute.xlu0 %3197
        %v3200 = vsel %vm710, %v3191, 0
        %v3203 = vsel %vm710, %v3198, 0
        %3205 = vmatpush.bf16.xpose.msra.mxu0 0
        %3206 = vmatpush.bf16.xpose.msra.mxu0 0
        %3207 = vmatpush.bf16.xpose.msra.mxu0 0
        %3208 = vmatpush.bf16.xpose.msra.mxu0 0
        %3209 = vmatpush.bf16.xpose.msra.mxu0 0
        %3210 = vmatpush.bf16.xpose.msra.mxu0 0
        %3211 = vmatpush.bf16.xpose.msra.mxu0 0
        %3212 = vmatpush.bf16.xpose.msra.mxu0 %v3203
        %3213 = vmatmul.bf16.gmra.mxu0 %v3200
        %v3214 = vpop.f32.mrf.mxu0
        %v3215 = vadd.f32 0.0, %v3214
        %v3216 = vpop.f32.mrf.mxu0
        %v3217 = vadd.f32 0.0, %v3216
        %3218 = vdwg.mxu0
        %v3221 = vunpack.c.l.b16 %v690
        %v3222 = vunpack.c.l.b16 %v691
        %v3223 = vpack.c.b16 %v3222, %v3221
        %v3226 = vunpack.c.l.b16 %v688
        %v3227 = vunpack.c.l.b16 %v689
        %v3228 = vpack.c.b16 %v3227, %v3226
        %3229 = vrot.lane.b32.xlu0 %v3228, 96
        %v3230 = vpop.permute.xlu0 %3229
        %v3232 = vsel %vm710, %v3223, 0
        %v3235 = vsel %vm710, %v3230, 0
        %3237 = vmatpush.bf16.xpose.msra.mxu0 0
        %3238 = vmatpush.bf16.xpose.msra.mxu0 0
        %3239 = vmatpush.bf16.xpose.msra.mxu0 0
        %3240 = vmatpush.bf16.xpose.msra.mxu0 0
        %3241 = vmatpush.bf16.xpose.msra.mxu0 0
        %3242 = vmatpush.bf16.xpose.msra.mxu0 0
        %3243 = vmatpush.bf16.xpose.msra.mxu0 0
        %3244 = vmatpush.bf16.xpose.msra.mxu0 %v3235
        %3245 = vmatmul.bf16.gmra.mxu0 %v3232
        %v3246 = vpop.f32.mrf.mxu0
        %v3247 = vadd.f32 0.0, %v3246
        %v3248 = vpop.f32.mrf.mxu0
        %v3249 = vadd.f32 0.0, %v3248
        %3250 = vdwg.mxu0
        %v3251 = vsel %vm2992, %v3151, -inf
        %3252 = vmax.xlane.f32.xlu0 %v3251
        %v3253 = vpop.xlane.xlu0 %3252
        %v3254 = vsel %vm2992, %v3153, -inf
        %3255 = vmax.xlane.f32.xlu0 %v3254
        %v3256 = vpop.xlane.xlu0 %3255
        %v3257 = vsel %vm2992, %v3183, -inf
        %3258 = vmax.xlane.f32.xlu0 %v3257
        %v3259 = vpop.xlane.xlu0 %3258
        %v3260 = vsel %vm2992, %v3185, -inf
        %3261 = vmax.xlane.f32.xlu0 %v3260
        %v3262 = vpop.xlane.xlu0 %3261
        %v3263 = vsel %vm2992, %v3215, -inf
        %3264 = vmax.xlane.f32.xlu0 %v3263
        %v3265 = vpop.xlane.xlu0 %3264
        %v3266 = vsel %vm2992, %v3217, -inf
        %3267 = vmax.xlane.f32.xlu0 %v3266
        %v3268 = vpop.xlane.xlu0 %3267
        %v3269 = vsel %vm2992, %v3247, -inf
        %3270 = vmax.xlane.f32.xlu0 %v3269
        %v3271 = vpop.xlane.xlu0 %3270
        %v3272 = vsel %vm2992, %v3249, -inf
        %3273 = vmax.xlane.f32.xlu0 %v3272
        %v3274 = vpop.xlane.xlu0 %3273
        %v3275 = vsub.f32 %v3151, %v3253
        %v3276 = vsub.f32 %v3153, %v3256
        %v3277 = vsub.f32 %v3183, %v3259
        %v3278 = vsub.f32 %v3185, %v3262
        %v3279 = vsub.f32 %v3215, %v3265
        %v3280 = vsub.f32 %v3217, %v3268
        %v3281 = vsub.f32 %v3247, %v3271
        %v3282 = vsub.f32 %v3249, %v3274
        %v3283 = vmul.f32 %v3275, 1.442695
        %v3284 = vpow.pop %v3283
        %v3285 = vmul.f32 %v3276, 1.442695
        %v3286 = vpow.pop %v3285
        %v3287 = vmul.f32 %v3277, 1.442695
        %v3288 = vpow.pop %v3287
        %v3289 = vmul.f32 %v3278, 1.442695
        %v3290 = vpow.pop %v3289
        %v3291 = vmul.f32 %v3279, 1.442695
        %v3292 = vpow.pop %v3291
        %v3293 = vmul.f32 %v3280, 1.442695
        %v3294 = vpow.pop %v3293
        %v3295 = vmul.f32 %v3281, 1.442695
        %v3296 = vpow.pop %v3295
        %v3297 = vmul.f32 %v3282, 1.442695
        %v3298 = vpow.pop %v3297
        %v3299 = vsel %vm2992, %v3284, 0.0
        %3300 = vadd.xlane.f32.xlu0 %v3299
        %v3301 = vpop.xlane.xlu0 %3300
        %v3302 = vsel %vm2992, %v3286, 0.0
        %3303 = vadd.xlane.f32.xlu0 %v3302
        %v3304 = vpop.xlane.xlu0 %3303
        %v3305 = vsel %vm2992, %v3288, 0.0
        %3306 = vadd.xlane.f32.xlu0 %v3305
        %v3307 = vpop.xlane.xlu0 %3306
        %v3308 = vsel %vm2992, %v3290, 0.0
        %3309 = vadd.xlane.f32.xlu0 %v3308
        %v3310 = vpop.xlane.xlu0 %3309
        %v3311 = vsel %vm2992, %v3292, 0.0
        %3312 = vadd.xlane.f32.xlu0 %v3311
        %v3313 = vpop.xlane.xlu0 %3312
        %v3314 = vsel %vm2992, %v3294, 0.0
        %3315 = vadd.xlane.f32.xlu0 %v3314
        %v3316 = vpop.xlane.xlu0 %3315
        %v3317 = vsel %vm2992, %v3296, 0.0
        %3318 = vadd.xlane.f32.xlu0 %v3317
        %v3319 = vpop.xlane.xlu0 %3318
        %v3320 = vsel %vm2992, %v3298, 0.0
        %3321 = vadd.xlane.f32.xlu0 %v3320
        %v3322 = vpop.xlane.xlu0 %3321
        %v3323 = vrcp.pop %v3301
        %v3324 = vrcp.pop %v3304
        %v3325 = vrcp.pop %v3307
        %v3326 = vrcp.pop %v3310
        %v3327 = vrcp.pop %v3313
        %v3328 = vrcp.pop %v3316
        %v3329 = vrcp.pop %v3319
        %v3330 = vrcp.pop %v3322
        %v3331 = vmul.f32 %v3284, %v3323
        %v3332 = vmul.f32 %v3286, %v3324
        %v3333 = vmul.f32 %v3288, %v3325
        %v3334 = vmul.f32 %v3290, %v3326
        %v3335 = vmul.f32 %v3292, %v3327
        %v3336 = vmul.f32 %v3294, %v3328
        %v3337 = vmul.f32 %v3296, %v3329
        %v3338 = vmul.f32 %v3298, %v3330
        %v3339 = vpack.c.bf16 %v3331, %v3331
        %v3340 = vpack.c.bf16 %v3332, %v3332
        %v3341 = vpack.c.bf16 %v3333, %v3333
        %v3342 = vpack.c.bf16 %v3334, %v3334
        %v3343 = vpack.c.bf16 %v3335, %v3335
        %v3344 = vpack.c.bf16 %v3336, %v3336
        %v3345 = vpack.c.bf16 %v3337, %v3337
        %v3346 = vpack.c.bf16 %v3338, %v3338
        %v3349 = vunpack.c.l.b16 %v3339
        %v3350 = vunpack.c.l.b16 %v3340
        %v3351 = vpack.c.b16 %v3350, %v3349
        %3352 = vrot.lane.b32.xlu0 %v3132, 64
        %v3353 = vpop.permute.xlu0 %3352
        %v3356 = vsel %vm2992, %v3351, 0
        %3358 = vmatpush.bf16.msra.mxu0 0
        %3359 = vmatpush.bf16.msra.mxu0 0
        %3360 = vmatpush.bf16.msra.mxu0 0
        %3361 = vmatpush.bf16.msra.mxu0 0
        %3362 = vmatpush.bf16.msra.mxu0 0
        %3363 = vmatpush.bf16.msra.mxu0 0
        %3364 = vmatpush.bf16.msra.mxu0 0
        %3365 = vmatpush.bf16.msra.mxu0 %v3353
        %3366 = vmatmul.bf16.gmra.mxu0 %v3356
        %v3367 = vpop.f32.mrf.mxu0
        %v3368 = vadd.f32 0.0, %v3367
        %v3369 = vpop.f32.mrf.mxu0
        %v3370 = vadd.f32 0.0, %v3369
        %3371 = vdwg.mxu0
        %v3374 = vunpack.c.l.b16 %v3341
        %v3375 = vunpack.c.l.b16 %v3342
        %v3376 = vpack.c.b16 %v3375, %v3374
        %3377 = vrot.lane.b32.xlu0 %v3164, 64
        %v3378 = vpop.permute.xlu0 %3377
        %v3381 = vsel %vm2992, %v3376, 0
        %3383 = vmatpush.bf16.msra.mxu0 0
        %3384 = vmatpush.bf16.msra.mxu0 0
        %3385 = vmatpush.bf16.msra.mxu0 0
        %3386 = vmatpush.bf16.msra.mxu0 0
        %3387 = vmatpush.bf16.msra.mxu0 0
        %3388 = vmatpush.bf16.msra.mxu0 0
        %3389 = vmatpush.bf16.msra.mxu0 0
        %3390 = vmatpush.bf16.msra.mxu0 %v3378
        %3391 = vmatmul.bf16.gmra.mxu0 %v3381
        %v3392 = vpop.f32.mrf.mxu0
        %v3393 = vadd.f32 0.0, %v3392
        %v3394 = vpop.f32.mrf.mxu0
        %v3395 = vadd.f32 0.0, %v3394
        %3396 = vdwg.mxu0
        %v3399 = vunpack.c.l.b16 %v3343
        %v3400 = vunpack.c.l.b16 %v3344
        %v3401 = vpack.c.b16 %v3400, %v3399
        %3402 = vrot.lane.b32.xlu0 %v3196, 64
        %v3403 = vpop.permute.xlu0 %3402
        %v3406 = vsel %vm2992, %v3401, 0
        %3408 = vmatpush.bf16.msra.mxu0 0
        %3409 = vmatpush.bf16.msra.mxu0 0
        %3410 = vmatpush.bf16.msra.mxu0 0
        %3411 = vmatpush.bf16.msra.mxu0 0
        %3412 = vmatpush.bf16.msra.mxu0 0
        %3413 = vmatpush.bf16.msra.mxu0 0
        %3414 = vmatpush.bf16.msra.mxu0 0
        %3415 = vmatpush.bf16.msra.mxu0 %v3403
        %3416 = vmatmul.bf16.gmra.mxu0 %v3406
        %v3417 = vpop.f32.mrf.mxu0
        %v3418 = vadd.f32 0.0, %v3417
        %v3419 = vpop.f32.mrf.mxu0
        %v3420 = vadd.f32 0.0, %v3419
        %3421 = vdwg.mxu0
        %v3424 = vunpack.c.l.b16 %v3345
        %v3425 = vunpack.c.l.b16 %v3346
        %v3426 = vpack.c.b16 %v3425, %v3424
        %3427 = vrot.lane.b32.xlu0 %v3228, 64
        %v3428 = vpop.permute.xlu0 %3427
        %v3431 = vsel %vm2992, %v3426, 0
        %3433 = vmatpush.bf16.msra.mxu0 0
        %3434 = vmatpush.bf16.msra.mxu0 0
        %3435 = vmatpush.bf16.msra.mxu0 0
        %3436 = vmatpush.bf16.msra.mxu0 0
        %3437 = vmatpush.bf16.msra.mxu0 0
        %3438 = vmatpush.bf16.msra.mxu0 0
        %3439 = vmatpush.bf16.msra.mxu0 0
        %3440 = vmatpush.bf16.msra.mxu0 %v3428
        %3441 = vmatmul.bf16.gmra.mxu0 %v3431
        %v3442 = vpop.f32.mrf.mxu0
        %v3443 = vadd.f32 0.0, %v3442
        %v3444 = vpop.f32.mrf.mxu0
        %v3445 = vadd.f32 0.0, %v3444
        %3446 = vdwg.mxu0
        %3447 = vrot.lane.b32.xlu0 %v3127, 96
        %v3448 = vpop.permute.xlu0 %3447
        %v3450 = vsel %vm710, %v3132, 0
        %v3453 = vsel %vm710, %v3448, 0
        %3455 = vmatpush.bf16.xpose.msra.mxu0 0
        %3456 = vmatpush.bf16.xpose.msra.mxu0 0
        %3457 = vmatpush.bf16.xpose.msra.mxu0 0
        %3458 = vmatpush.bf16.xpose.msra.mxu0 0
        %3459 = vmatpush.bf16.xpose.msra.mxu0 0
        %3460 = vmatpush.bf16.xpose.msra.mxu0 0
        %3461 = vmatpush.bf16.xpose.msra.mxu0 0
        %3462 = vmatpush.bf16.xpose.msra.mxu0 %v3453
        %3463 = vmatmul.bf16.gmra.mxu0 %v3450
        %v3464 = vpop.f32.mrf.mxu0
        %v3465 = vadd.f32 0.0, %v3464
        %v3466 = vpop.f32.mrf.mxu0
        %v3467 = vadd.f32 0.0, %v3466
        %3468 = vdwg.mxu0
        %3469 = vrot.lane.b32.xlu0 %v3159, 96
        %v3470 = vpop.permute.xlu0 %3469
        %v3472 = vsel %vm710, %v3164, 0
        %v3475 = vsel %vm710, %v3470, 0
        %3477 = vmatpush.bf16.xpose.msra.mxu0 0
        %3478 = vmatpush.bf16.xpose.msra.mxu0 0
        %3479 = vmatpush.bf16.xpose.msra.mxu0 0
        %3480 = vmatpush.bf16.xpose.msra.mxu0 0
        %3481 = vmatpush.bf16.xpose.msra.mxu0 0
        %3482 = vmatpush.bf16.xpose.msra.mxu0 0
        %3483 = vmatpush.bf16.xpose.msra.mxu0 0
        %3484 = vmatpush.bf16.xpose.msra.mxu0 %v3475
        %3485 = vmatmul.bf16.gmra.mxu0 %v3472
        %v3486 = vpop.f32.mrf.mxu0
        %v3487 = vadd.f32 0.0, %v3486
        %v3488 = vpop.f32.mrf.mxu0
        %v3489 = vadd.f32 0.0, %v3488
        %3490 = vdwg.mxu0
        %3491 = vrot.lane.b32.xlu0 %v3191, 96
        %v3492 = vpop.permute.xlu0 %3491
        %v3494 = vsel %vm710, %v3196, 0
        %v3497 = vsel %vm710, %v3492, 0
        %3499 = vmatpush.bf16.xpose.msra.mxu0 0
        %3500 = vmatpush.bf16.xpose.msra.mxu0 0
        %3501 = vmatpush.bf16.xpose.msra.mxu0 0
        %3502 = vmatpush.bf16.xpose.msra.mxu0 0
        %3503 = vmatpush.bf16.xpose.msra.mxu0 0
        %3504 = vmatpush.bf16.xpose.msra.mxu0 0
        %3505 = vmatpush.bf16.xpose.msra.mxu0 0
        %3506 = vmatpush.bf16.xpose.msra.mxu0 %v3497
        %3507 = vmatmul.bf16.gmra.mxu0 %v3494
        %v3508 = vpop.f32.mrf.mxu0
        %v3509 = vadd.f32 0.0, %v3508
        %v3510 = vpop.f32.mrf.mxu0
        %v3511 = vadd.f32 0.0, %v3510
        %3512 = vdwg.mxu0
        %3513 = vrot.lane.b32.xlu0 %v3223, 96
        %v3514 = vpop.permute.xlu0 %3513
        %v3516 = vsel %vm710, %v3228, 0
        %v3519 = vsel %vm710, %v3514, 0
        %3521 = vmatpush.bf16.xpose.msra.mxu0 0
        %3522 = vmatpush.bf16.xpose.msra.mxu0 0
        %3523 = vmatpush.bf16.xpose.msra.mxu0 0
        %3524 = vmatpush.bf16.xpose.msra.mxu0 0
        %3525 = vmatpush.bf16.xpose.msra.mxu0 0
        %3526 = vmatpush.bf16.xpose.msra.mxu0 0
        %3527 = vmatpush.bf16.xpose.msra.mxu0 0
        %3528 = vmatpush.bf16.xpose.msra.mxu0 %v3519
        %3529 = vmatmul.bf16.gmra.mxu0 %v3516
        %v3530 = vpop.f32.mrf.mxu0
        %v3531 = vadd.f32 0.0, %v3530
        %v3532 = vpop.f32.mrf.mxu0
        %v3533 = vadd.f32 0.0, %v3532
        %3534 = vdwg.mxu0
        %v3535 = vsel %vm2992, %v3465, -inf
        %3536 = vmax.xlane.f32.xlu0 %v3535
        %v3537 = vpop.xlane.xlu0 %3536
        %v3538 = vsel %vm2992, %v3467, -inf
        %3539 = vmax.xlane.f32.xlu0 %v3538
        %v3540 = vpop.xlane.xlu0 %3539
        %v3541 = vsel %vm2992, %v3487, -inf
        %3542 = vmax.xlane.f32.xlu0 %v3541
        %v3543 = vpop.xlane.xlu0 %3542
        %v3544 = vsel %vm2992, %v3489, -inf
        %3545 = vmax.xlane.f32.xlu0 %v3544
        %v3546 = vpop.xlane.xlu0 %3545
        %v3547 = vsel %vm2992, %v3509, -inf
        %3548 = vmax.xlane.f32.xlu0 %v3547
        %v3549 = vpop.xlane.xlu0 %3548
        %v3550 = vsel %vm2992, %v3511, -inf
        %3551 = vmax.xlane.f32.xlu0 %v3550
        %v3552 = vpop.xlane.xlu0 %3551
        %v3553 = vsel %vm2992, %v3531, -inf
        %3554 = vmax.xlane.f32.xlu0 %v3553
        %v3555 = vpop.xlane.xlu0 %3554
        %v3556 = vsel %vm2992, %v3533, -inf
        %3557 = vmax.xlane.f32.xlu0 %v3556
        %v3558 = vpop.xlane.xlu0 %3557
        %v3559 = vsub.f32 %v3465, %v3537
        %v3560 = vsub.f32 %v3467, %v3540
        %v3561 = vsub.f32 %v3487, %v3543
        %v3562 = vsub.f32 %v3489, %v3546
        %v3563 = vsub.f32 %v3509, %v3549
        %v3564 = vsub.f32 %v3511, %v3552
        %v3565 = vsub.f32 %v3531, %v3555
        %v3566 = vsub.f32 %v3533, %v3558
        %v3567 = vmul.f32 %v3559, 1.442695
        %v3568 = vpow.pop %v3567
        %v3569 = vmul.f32 %v3560, 1.442695
        %v3570 = vpow.pop %v3569
        %v3571 = vmul.f32 %v3561, 1.442695
        %v3572 = vpow.pop %v3571
        %v3573 = vmul.f32 %v3562, 1.442695
        %v3574 = vpow.pop %v3573
        %v3575 = vmul.f32 %v3563, 1.442695
        %v3576 = vpow.pop %v3575
        %v3577 = vmul.f32 %v3564, 1.442695
        %v3578 = vpow.pop %v3577
        %v3579 = vmul.f32 %v3565, 1.442695
        %v3580 = vpow.pop %v3579
        %v3581 = vmul.f32 %v3566, 1.442695
        %v3582 = vpow.pop %v3581
        %v3583 = vsel %vm2992, %v3568, 0.0
        %3584 = vadd.xlane.f32.xlu0 %v3583
        %v3585 = vpop.xlane.xlu0 %3584
        %v3586 = vsel %vm2992, %v3570, 0.0
        %3587 = vadd.xlane.f32.xlu0 %v3586
        %v3588 = vpop.xlane.xlu0 %3587
        %v3589 = vsel %vm2992, %v3572, 0.0
        %3590 = vadd.xlane.f32.xlu0 %v3589
        %v3591 = vpop.xlane.xlu0 %3590
        %v3592 = vsel %vm2992, %v3574, 0.0
        %3593 = vadd.xlane.f32.xlu0 %v3592
        %v3594 = vpop.xlane.xlu0 %3593
        %v3595 = vsel %vm2992, %v3576, 0.0
        %3596 = vadd.xlane.f32.xlu0 %v3595
        %v3597 = vpop.xlane.xlu0 %3596
        %v3598 = vsel %vm2992, %v3578, 0.0
        %3599 = vadd.xlane.f32.xlu0 %v3598
        %v3600 = vpop.xlane.xlu0 %3599
        %v3601 = vsel %vm2992, %v3580, 0.0
        %3602 = vadd.xlane.f32.xlu0 %v3601
        %v3603 = vpop.xlane.xlu0 %3602
        %v3604 = vsel %vm2992, %v3582, 0.0
        %3605 = vadd.xlane.f32.xlu0 %v3604
        %v3606 = vpop.xlane.xlu0 %3605
        %v3607 = vrcp.pop %v3585
        %v3608 = vrcp.pop %v3588
        %v3609 = vrcp.pop %v3591
        %v3610 = vrcp.pop %v3594
        %v3611 = vrcp.pop %v3597
        %v3612 = vrcp.pop %v3600
        %v3613 = vrcp.pop %v3603
        %v3614 = vrcp.pop %v3606
        %v3615 = vmul.f32 %v3568, %v3607
        %v3616 = vmul.f32 %v3570, %v3608
        %v3617 = vmul.f32 %v3572, %v3609
        %v3618 = vmul.f32 %v3574, %v3610
        %v3619 = vmul.f32 %v3576, %v3611
        %v3620 = vmul.f32 %v3578, %v3612
        %v3621 = vmul.f32 %v3580, %v3613
        %v3622 = vmul.f32 %v3582, %v3614
        %v3623 = vpack.c.bf16 %v3615, %v3615
        %v3624 = vpack.c.bf16 %v3616, %v3616
        %v3625 = vpack.c.bf16 %v3617, %v3617
        %v3626 = vpack.c.bf16 %v3618, %v3618
        %v3627 = vpack.c.bf16 %v3619, %v3619
        %v3628 = vpack.c.bf16 %v3620, %v3620
        %v3629 = vpack.c.bf16 %v3621, %v3621
        %v3630 = vpack.c.bf16 %v3622, %v3622
        %v3633 = vunpack.c.l.b16 %v3623
        %v3634 = vunpack.c.l.b16 %v3624
        %v3635 = vpack.c.b16 %v3634, %v3633
        %3636 = vrot.lane.b32.xlu0 %v3127, 64
        %v3637 = vpop.permute.xlu0 %3636
        %v3640 = vsel %vm2992, %v3635, 0
        %3642 = vmatpush.bf16.msra.mxu0 0
        %3643 = vmatpush.bf16.msra.mxu0 0
        %3644 = vmatpush.bf16.msra.mxu0 0
        %3645 = vmatpush.bf16.msra.mxu0 0
        %3646 = vmatpush.bf16.msra.mxu0 0
        %3647 = vmatpush.bf16.msra.mxu0 0
        %3648 = vmatpush.bf16.msra.mxu0 0
        %3649 = vmatpush.bf16.msra.mxu0 %v3637
        %3650 = vmatmul.bf16.gmra.mxu0 %v3640
        %v3651 = vpop.f32.mrf.mxu0
        %v3652 = vadd.f32 0.0, %v3651
        %v3653 = vpop.f32.mrf.mxu0
        %v3654 = vadd.f32 0.0, %v3653
        %3655 = vdwg.mxu0
        %v3658 = vunpack.c.l.b16 %v3625
        %v3659 = vunpack.c.l.b16 %v3626
        %v3660 = vpack.c.b16 %v3659, %v3658
        %3661 = vrot.lane.b32.xlu0 %v3159, 64
        %v3662 = vpop.permute.xlu0 %3661
        %v3665 = vsel %vm2992, %v3660, 0
        %3667 = vmatpush.bf16.msra.mxu0 0
        %3668 = vmatpush.bf16.msra.mxu0 0
        %3669 = vmatpush.bf16.msra.mxu0 0
        %3670 = vmatpush.bf16.msra.mxu0 0
        %3671 = vmatpush.bf16.msra.mxu0 0
        %3672 = vmatpush.bf16.msra.mxu0 0
        %3673 = vmatpush.bf16.msra.mxu0 0
        %3674 = vmatpush.bf16.msra.mxu0 %v3662
        %3675 = vmatmul.bf16.gmra.mxu0 %v3665
        %v3676 = vpop.f32.mrf.mxu0
        %v3677 = vadd.f32 0.0, %v3676
        %v3678 = vpop.f32.mrf.mxu0
        %v3679 = vadd.f32 0.0, %v3678
        %3680 = vdwg.mxu0
        %v3683 = vunpack.c.l.b16 %v3627
        %v3684 = vunpack.c.l.b16 %v3628
        %v3685 = vpack.c.b16 %v3684, %v3683
        %3686 = vrot.lane.b32.xlu0 %v3191, 64
        %v3687 = vpop.permute.xlu0 %3686
        %v3690 = vsel %vm2992, %v3685, 0
        %3692 = vmatpush.bf16.msra.mxu0 0
        %3693 = vmatpush.bf16.msra.mxu0 0
        %3694 = vmatpush.bf16.msra.mxu0 0
        %3695 = vmatpush.bf16.msra.mxu0 0
        %3696 = vmatpush.bf16.msra.mxu0 0
        %3697 = vmatpush.bf16.msra.mxu0 0
        %3698 = vmatpush.bf16.msra.mxu0 0
        %3699 = vmatpush.bf16.msra.mxu0 %v3687
        %3700 = vmatmul.bf16.gmra.mxu0 %v3690
        %v3701 = vpop.f32.mrf.mxu0
        %v3702 = vadd.f32 0.0, %v3701
        %v3703 = vpop.f32.mrf.mxu0
        %v3704 = vadd.f32 0.0, %v3703
        %3705 = vdwg.mxu0
        %v3708 = vunpack.c.l.b16 %v3629
        %v3709 = vunpack.c.l.b16 %v3630
        %v3710 = vpack.c.b16 %v3709, %v3708
        %3711 = vrot.lane.b32.xlu0 %v3223, 64
        %v3712 = vpop.permute.xlu0 %3711
        %v3715 = vsel %vm2992, %v3710, 0
        %3717 = vmatpush.bf16.msra.mxu0 0
        %3718 = vmatpush.bf16.msra.mxu0 0
        %3719 = vmatpush.bf16.msra.mxu0 0
        %3720 = vmatpush.bf16.msra.mxu0 0
        %3721 = vmatpush.bf16.msra.mxu0 0
        %3722 = vmatpush.bf16.msra.mxu0 0
        %3723 = vmatpush.bf16.msra.mxu0 0
        %3724 = vmatpush.bf16.msra.mxu0 %v3712
        %3725 = vmatmul.bf16.gmra.mxu0 %v3715
        %v3726 = vpop.f32.mrf.mxu0
        %v3727 = vadd.f32 0.0, %v3726
        %v3728 = vpop.f32.mrf.mxu0
        %v3729 = vadd.f32 0.0, %v3728
        %3730 = vdwg.mxu0
        %3731 = vrot.lane.b32.xlu0 %v3127, 120
        %v3732 = vpop.permute.xlu0 %3731
        %3733 = vrot.lane.b32.xlu0 %v3132, 88
        %v3734 = vpop.permute.xlu0 %3733
        %v3736 = vsel %vm710, %v3732, 0
        %v3739 = vsel %vm710, %v3734, 0
        %3741 = vmatpush.bf16.xpose.msra.mxu0 0
        %3742 = vmatpush.bf16.xpose.msra.mxu0 0
        %3743 = vmatpush.bf16.xpose.msra.mxu0 0
        %3744 = vmatpush.bf16.xpose.msra.mxu0 0
        %3745 = vmatpush.bf16.xpose.msra.mxu0 0
        %3746 = vmatpush.bf16.xpose.msra.mxu0 0
        %3747 = vmatpush.bf16.xpose.msra.mxu0 0
        %3748 = vmatpush.bf16.xpose.msra.mxu0 %v3739
        %3749 = vmatmul.bf16.gmra.mxu0 %v3736
        %v3750 = vpop.f32.mrf.mxu0
        %v3751 = vadd.f32 0.0, %v3750
        %v3752 = vpop.f32.mrf.mxu0
        %v3753 = vadd.f32 0.0, %v3752
        %3754 = vdwg.mxu0
        %3755 = vrot.lane.b32.xlu0 %v3159, 120
        %v3756 = vpop.permute.xlu0 %3755
        %3757 = vrot.lane.b32.xlu0 %v3164, 88
        %v3758 = vpop.permute.xlu0 %3757
        %v3760 = vsel %vm710, %v3756, 0
        %v3763 = vsel %vm710, %v3758, 0
        %3765 = vmatpush.bf16.xpose.msra.mxu0 0
        %3766 = vmatpush.bf16.xpose.msra.mxu0 0
        %3767 = vmatpush.bf16.xpose.msra.mxu0 0
        %3768 = vmatpush.bf16.xpose.msra.mxu0 0
        %3769 = vmatpush.bf16.xpose.msra.mxu0 0
        %3770 = vmatpush.bf16.xpose.msra.mxu0 0
        %3771 = vmatpush.bf16.xpose.msra.mxu0 0
        %3772 = vmatpush.bf16.xpose.msra.mxu0 %v3763
        %3773 = vmatmul.bf16.gmra.mxu0 %v3760
        %v3774 = vpop.f32.mrf.mxu0
        %v3775 = vadd.f32 0.0, %v3774
        %v3776 = vpop.f32.mrf.mxu0
        %v3777 = vadd.f32 0.0, %v3776
        %3778 = vdwg.mxu0
        %3779 = vrot.lane.b32.xlu0 %v3191, 120
        %v3780 = vpop.permute.xlu0 %3779
        %3781 = vrot.lane.b32.xlu0 %v3196, 88
        %v3782 = vpop.permute.xlu0 %3781
        %v3784 = vsel %vm710, %v3780, 0
        %v3787 = vsel %vm710, %v3782, 0
        %3789 = vmatpush.bf16.xpose.msra.mxu0 0
        %3790 = vmatpush.bf16.xpose.msra.mxu0 0
        %3791 = vmatpush.bf16.xpose.msra.mxu0 0
        %3792 = vmatpush.bf16.xpose.msra.mxu0 0
        %3793 = vmatpush.bf16.xpose.msra.mxu0 0
        %3794 = vmatpush.bf16.xpose.msra.mxu0 0
        %3795 = vmatpush.bf16.xpose.msra.mxu0 0
        %3796 = vmatpush.bf16.xpose.msra.mxu0 %v3787
        %3797 = vmatmul.bf16.gmra.mxu0 %v3784
        %v3798 = vpop.f32.mrf.mxu0
        %v3799 = vadd.f32 0.0, %v3798
        %v3800 = vpop.f32.mrf.mxu0
        %v3801 = vadd.f32 0.0, %v3800
        %3802 = vdwg.mxu0
        %3803 = vrot.lane.b32.xlu0 %v3223, 120
        %v3804 = vpop.permute.xlu0 %3803
        %3805 = vrot.lane.b32.xlu0 %v3228, 88
        %v3806 = vpop.permute.xlu0 %3805
        %v3808 = vsel %vm710, %v3804, 0
        %v3811 = vsel %vm710, %v3806, 0
        %3813 = vmatpush.bf16.xpose.msra.mxu0 0
        %3814 = vmatpush.bf16.xpose.msra.mxu0 0
        %3815 = vmatpush.bf16.xpose.msra.mxu0 0
        %3816 = vmatpush.bf16.xpose.msra.mxu0 0
        %3817 = vmatpush.bf16.xpose.msra.mxu0 0
        %3818 = vmatpush.bf16.xpose.msra.mxu0 0
        %3819 = vmatpush.bf16.xpose.msra.mxu0 0
        %3820 = vmatpush.bf16.xpose.msra.mxu0 %v3811
        %3821 = vmatmul.bf16.gmra.mxu0 %v3808
        %v3822 = vpop.f32.mrf.mxu0
        %v3823 = vadd.f32 0.0, %v3822
        %v3824 = vpop.f32.mrf.mxu0
        %v3825 = vadd.f32 0.0, %v3824
        %3826 = vdwg.mxu0
        %v3827 = vsel %vm2992, %v3751, -inf
        %3828 = vmax.xlane.f32.xlu0 %v3827
        %v3829 = vpop.xlane.xlu0 %3828
        %v3830 = vsel %vm2992, %v3753, -inf
        %3831 = vmax.xlane.f32.xlu0 %v3830
        %v3832 = vpop.xlane.xlu0 %3831
        %v3833 = vsel %vm2992, %v3775, -inf
        %3834 = vmax.xlane.f32.xlu0 %v3833
        %v3835 = vpop.xlane.xlu0 %3834
        %v3836 = vsel %vm2992, %v3777, -inf
        %3837 = vmax.xlane.f32.xlu0 %v3836
        %v3838 = vpop.xlane.xlu0 %3837
        %v3839 = vsel %vm2992, %v3799, -inf
        %3840 = vmax.xlane.f32.xlu0 %v3839
        %v3841 = vpop.xlane.xlu0 %3840
        %v3842 = vsel %vm2992, %v3801, -inf
        %3843 = vmax.xlane.f32.xlu0 %v3842
        %v3844 = vpop.xlane.xlu0 %3843
        %v3845 = vsel %vm2992, %v3823, -inf
        %3846 = vmax.xlane.f32.xlu0 %v3845
        %v3847 = vpop.xlane.xlu0 %3846
        %v3848 = vsel %vm2992, %v3825, -inf
        %3849 = vmax.xlane.f32.xlu0 %v3848
        %v3850 = vpop.xlane.xlu0 %3849
        %v3851 = vsub.f32 %v3751, %v3829
        %v3852 = vsub.f32 %v3753, %v3832
        %v3853 = vsub.f32 %v3775, %v3835
        %v3854 = vsub.f32 %v3777, %v3838
        %v3855 = vsub.f32 %v3799, %v3841
        %v3856 = vsub.f32 %v3801, %v3844
        %v3857 = vsub.f32 %v3823, %v3847
        %v3858 = vsub.f32 %v3825, %v3850
        %v3859 = vmul.f32 %v3851, 1.442695
        %v3860 = vpow.pop %v3859
        %v3861 = vmul.f32 %v3852, 1.442695
        %v3862 = vpow.pop %v3861
        %v3863 = vmul.f32 %v3853, 1.442695
        %v3864 = vpow.pop %v3863
        %v3865 = vmul.f32 %v3854, 1.442695
        %v3866 = vpow.pop %v3865
        %v3867 = vmul.f32 %v3855, 1.442695
        %v3868 = vpow.pop %v3867
        %v3869 = vmul.f32 %v3856, 1.442695
        %v3870 = vpow.pop %v3869
        %v3871 = vmul.f32 %v3857, 1.442695
        %v3872 = vpow.pop %v3871
        %v3873 = vmul.f32 %v3858, 1.442695
        %v3874 = vpow.pop %v3873
        %v3875 = vsel %vm2992, %v3860, 0.0
        %3876 = vadd.xlane.f32.xlu0 %v3875
        %v3877 = vpop.xlane.xlu0 %3876
        %v3878 = vsel %vm2992, %v3862, 0.0
        %3879 = vadd.xlane.f32.xlu0 %v3878
        %v3880 = vpop.xlane.xlu0 %3879
        %v3881 = vsel %vm2992, %v3864, 0.0
        %3882 = vadd.xlane.f32.xlu0 %v3881
        %v3883 = vpop.xlane.xlu0 %3882
        %v3884 = vsel %vm2992, %v3866, 0.0
        %3885 = vadd.xlane.f32.xlu0 %v3884
        %v3886 = vpop.xlane.xlu0 %3885
        %v3887 = vsel %vm2992, %v3868, 0.0
        %3888 = vadd.xlane.f32.xlu0 %v3887
        %v3889 = vpop.xlane.xlu0 %3888
        %v3890 = vsel %vm2992, %v3870, 0.0
        %3891 = vadd.xlane.f32.xlu0 %v3890
        %v3892 = vpop.xlane.xlu0 %3891
        %v3893 = vsel %vm2992, %v3872, 0.0
        %3894 = vadd.xlane.f32.xlu0 %v3893
        %v3895 = vpop.xlane.xlu0 %3894
        %v3896 = vsel %vm2992, %v3874, 0.0
        %3897 = vadd.xlane.f32.xlu0 %v3896
        %v3898 = vpop.xlane.xlu0 %3897
        %v3899 = vrcp.pop %v3877
        %v3900 = vrcp.pop %v3880
        %v3901 = vrcp.pop %v3883
        %v3902 = vrcp.pop %v3886
        %v3903 = vrcp.pop %v3889
        %v3904 = vrcp.pop %v3892
        %v3905 = vrcp.pop %v3895
        %v3906 = vrcp.pop %v3898
        %v3907 = vmul.f32 %v3860, %v3899
        %v3908 = vmul.f32 %v3862, %v3900
        %v3909 = vmul.f32 %v3864, %v3901
        %v3910 = vmul.f32 %v3866, %v3902
        %v3911 = vmul.f32 %v3868, %v3903
        %v3912 = vmul.f32 %v3870, %v3904
        %v3913 = vmul.f32 %v3872, %v3905
        %v3914 = vmul.f32 %v3874, %v3906
        %v3915 = vpack.c.bf16 %v3907, %v3907
        %v3916 = vpack.c.bf16 %v3908, %v3908
        %v3917 = vpack.c.bf16 %v3909, %v3909
        %v3918 = vpack.c.bf16 %v3910, %v3910
        %v3919 = vpack.c.bf16 %v3911, %v3911
        %v3920 = vpack.c.bf16 %v3912, %v3912
        %v3921 = vpack.c.bf16 %v3913, %v3913
        %v3922 = vpack.c.bf16 %v3914, %v3914
        %v3925 = vunpack.c.l.b16 %v3915
        %v3926 = vunpack.c.l.b16 %v3916
        %v3927 = vpack.c.b16 %v3926, %v3925
        %3928 = vrot.lane.b32.xlu0 %v3132, 56
        %v3929 = vpop.permute.xlu0 %3928
        %v3932 = vsel %vm2992, %v3927, 0
        %3934 = vmatpush.bf16.msra.mxu0 0
        %3935 = vmatpush.bf16.msra.mxu0 0
        %3936 = vmatpush.bf16.msra.mxu0 0
        %3937 = vmatpush.bf16.msra.mxu0 0
        %3938 = vmatpush.bf16.msra.mxu0 0
        %3939 = vmatpush.bf16.msra.mxu0 0
        %3940 = vmatpush.bf16.msra.mxu0 0
        %3941 = vmatpush.bf16.msra.mxu0 %v3929
        %3942 = vmatmul.bf16.gmra.mxu0 %v3932
        %v3943 = vpop.f32.mrf.mxu0
        %v3944 = vadd.f32 0.0, %v3943
        %v3945 = vpop.f32.mrf.mxu0
        %v3946 = vadd.f32 0.0, %v3945
        %3947 = vdwg.mxu0
        %v3950 = vunpack.c.l.b16 %v3917
        %v3951 = vunpack.c.l.b16 %v3918
        %v3952 = vpack.c.b16 %v3951, %v3950
        %3953 = vrot.lane.b32.xlu0 %v3164, 56
        %v3954 = vpop.permute.xlu0 %3953
        %v3957 = vsel %vm2992, %v3952, 0
        %3959 = vmatpush.bf16.msra.mxu0 0
        %3960 = vmatpush.bf16.msra.mxu0 0
        %3961 = vmatpush.bf16.msra.mxu0 0
        %3962 = vmatpush.bf16.msra.mxu0 0
        %3963 = vmatpush.bf16.msra.mxu0 0
        %3964 = vmatpush.bf16.msra.mxu0 0
        %3965 = vmatpush.bf16.msra.mxu0 0
        %3966 = vmatpush.bf16.msra.mxu0 %v3954
        %3967 = vmatmul.bf16.gmra.mxu0 %v3957
        %v3968 = vpop.f32.mrf.mxu0
        %v3969 = vadd.f32 0.0, %v3968
        %v3970 = vpop.f32.mrf.mxu0
        %v3971 = vadd.f32 0.0, %v3970
        %3972 = vdwg.mxu0
        %v3975 = vunpack.c.l.b16 %v3919
        %v3976 = vunpack.c.l.b16 %v3920
        %v3977 = vpack.c.b16 %v3976, %v3975
        %3978 = vrot.lane.b32.xlu0 %v3196, 56
        %v3979 = vpop.permute.xlu0 %3978
        %v3982 = vsel %vm2992, %v3977, 0
        %3984 = vmatpush.bf16.msra.mxu0 0
        %3985 = vmatpush.bf16.msra.mxu0 0
        %3986 = vmatpush.bf16.msra.mxu0 0
        %3987 = vmatpush.bf16.msra.mxu0 0
        %3988 = vmatpush.bf16.msra.mxu0 0
        %3989 = vmatpush.bf16.msra.mxu0 0
        %3990 = vmatpush.bf16.msra.mxu0 0
        %3991 = vmatpush.bf16.msra.mxu0 %v3979
        %3992 = vmatmul.bf16.gmra.mxu0 %v3982
        %v3993 = vpop.f32.mrf.mxu0
        %v3994 = vadd.f32 0.0, %v3993
        %v3995 = vpop.f32.mrf.mxu0
        %v3996 = vadd.f32 0.0, %v3995
        %3997 = vdwg.mxu0
        %v4000 = vunpack.c.l.b16 %v3921
        %v4001 = vunpack.c.l.b16 %v3922
        %v4002 = vpack.c.b16 %v4001, %v4000
        %4003 = vrot.lane.b32.xlu0 %v3228, 56
        %v4004 = vpop.permute.xlu0 %4003
        %v4007 = vsel %vm2992, %v4002, 0
        %4009 = vmatpush.bf16.msra.mxu0 0
        %4010 = vmatpush.bf16.msra.mxu0 0
        %4011 = vmatpush.bf16.msra.mxu0 0
        %4012 = vmatpush.bf16.msra.mxu0 0
        %4013 = vmatpush.bf16.msra.mxu0 0
        %4014 = vmatpush.bf16.msra.mxu0 0
        %4015 = vmatpush.bf16.msra.mxu0 0
        %4016 = vmatpush.bf16.msra.mxu0 %v4004
        %4017 = vmatmul.bf16.gmra.mxu0 %v4007
        %v4018 = vpop.f32.mrf.mxu0
        %v4019 = vadd.f32 0.0, %v4018
        %v4020 = vpop.f32.mrf.mxu0
        %v4021 = vadd.f32 0.0, %v4020
        %4022 = vdwg.mxu0
        %4023 = vrot.lane.b32.xlu0 %v3132, 120
        %v4024 = vpop.permute.xlu0 %4023
        %4025 = vrot.lane.b32.xlu0 %v3127, 88
        %v4026 = vpop.permute.xlu0 %4025
        %v4028 = vsel %vm710, %v4024, 0
        %v4031 = vsel %vm710, %v4026, 0
        %4033 = vmatpush.bf16.xpose.msra.mxu0 0
        %4034 = vmatpush.bf16.xpose.msra.mxu0 0
        %4035 = vmatpush.bf16.xpose.msra.mxu0 0
        %4036 = vmatpush.bf16.xpose.msra.mxu0 0
        %4037 = vmatpush.bf16.xpose.msra.mxu0 0
        %4038 = vmatpush.bf16.xpose.msra.mxu0 0
        %4039 = vmatpush.bf16.xpose.msra.mxu0 0
        %4040 = vmatpush.bf16.xpose.msra.mxu0 %v4031
        %4041 = vmatmul.bf16.gmra.mxu0 %v4028
        %v4042 = vpop.f32.mrf.mxu0
        %v4043 = vadd.f32 0.0, %v4042
        %v4044 = vpop.f32.mrf.mxu0
        %v4045 = vadd.f32 0.0, %v4044
        %4046 = vdwg.mxu0
        %4047 = vrot.lane.b32.xlu0 %v3164, 120
        %v4048 = vpop.permute.xlu0 %4047
        %4049 = vrot.lane.b32.xlu0 %v3159, 88
        %v4050 = vpop.permute.xlu0 %4049
        %v4052 = vsel %vm710, %v4048, 0
        %v4055 = vsel %vm710, %v4050, 0
        %4057 = vmatpush.bf16.xpose.msra.mxu0 0
        %4058 = vmatpush.bf16.xpose.msra.mxu0 0
        %4059 = vmatpush.bf16.xpose.msra.mxu0 0
        %4060 = vmatpush.bf16.xpose.msra.mxu0 0
        %4061 = vmatpush.bf16.xpose.msra.mxu0 0
        %4062 = vmatpush.bf16.xpose.msra.mxu0 0
        %4063 = vmatpush.bf16.xpose.msra.mxu0 0
        %4064 = vmatpush.bf16.xpose.msra.mxu0 %v4055
        %4065 = vmatmul.bf16.gmra.mxu0 %v4052
        %v4066 = vpop.f32.mrf.mxu0
        %v4067 = vadd.f32 0.0, %v4066
        %v4068 = vpop.f32.mrf.mxu0
        %v4069 = vadd.f32 0.0, %v4068
        %4070 = vdwg.mxu0
        %4071 = vrot.lane.b32.xlu0 %v3196, 120
        %v4072 = vpop.permute.xlu0 %4071
        %4073 = vrot.lane.b32.xlu0 %v3191, 88
        %v4074 = vpop.permute.xlu0 %4073
        %v4076 = vsel %vm710, %v4072, 0
        %v4079 = vsel %vm710, %v4074, 0
        %4081 = vmatpush.bf16.xpose.msra.mxu0 0
        %4082 = vmatpush.bf16.xpose.msra.mxu0 0
        %4083 = vmatpush.bf16.xpose.msra.mxu0 0
        %4084 = vmatpush.bf16.xpose.msra.mxu0 0
        %4085 = vmatpush.bf16.xpose.msra.mxu0 0
        %4086 = vmatpush.bf16.xpose.msra.mxu0 0
        %4087 = vmatpush.bf16.xpose.msra.mxu0 0
        %4088 = vmatpush.bf16.xpose.msra.mxu0 %v4079
        %4089 = vmatmul.bf16.gmra.mxu0 %v4076
        %v4090 = vpop.f32.mrf.mxu0
        %v4091 = vadd.f32 0.0, %v4090
        %v4092 = vpop.f32.mrf.mxu0
        %v4093 = vadd.f32 0.0, %v4092
        %4094 = vdwg.mxu0
        %4095 = vrot.lane.b32.xlu0 %v3228, 120
        %v4096 = vpop.permute.xlu0 %4095
        %4097 = vrot.lane.b32.xlu0 %v3223, 88
        %v4098 = vpop.permute.xlu0 %4097
        %v4100 = vsel %vm710, %v4096, 0
        %v4103 = vsel %vm710, %v4098, 0
        %4105 = vmatpush.bf16.xpose.msra.mxu0 0
        %4106 = vmatpush.bf16.xpose.msra.mxu0 0
        %4107 = vmatpush.bf16.xpose.msra.mxu0 0
        %4108 = vmatpush.bf16.xpose.msra.mxu0 0
        %4109 = vmatpush.bf16.xpose.msra.mxu0 0
        %4110 = vmatpush.bf16.xpose.msra.mxu0 0
        %4111 = vmatpush.bf16.xpose.msra.mxu0 0
        %4112 = vmatpush.bf16.xpose.msra.mxu0 %v4103
        %4113 = vmatmul.bf16.gmra.mxu0 %v4100
        %v4114 = vpop.f32.mrf.mxu0
        %v4115 = vadd.f32 0.0, %v4114
        %v4116 = vpop.f32.mrf.mxu0
        %v4117 = vadd.f32 0.0, %v4116
        %4118 = vdwg.mxu0
        %v4119 = vsel %vm2992, %v4043, -inf
        %4120 = vmax.xlane.f32.xlu0 %v4119
        %v4121 = vpop.xlane.xlu0 %4120
        %v4122 = vsel %vm2992, %v4045, -inf
        %4123 = vmax.xlane.f32.xlu0 %v4122
        %v4124 = vpop.xlane.xlu0 %4123
        %v4125 = vsel %vm2992, %v4067, -inf
        %4126 = vmax.xlane.f32.xlu0 %v4125
        %v4127 = vpop.xlane.xlu0 %4126
        %v4128 = vsel %vm2992, %v4069, -inf
        %4129 = vmax.xlane.f32.xlu0 %v4128
        %v4130 = vpop.xlane.xlu0 %4129
        %v4131 = vsel %vm2992, %v4091, -inf
        %4132 = vmax.xlane.f32.xlu0 %v4131
        %v4133 = vpop.xlane.xlu0 %4132
        %v4134 = vsel %vm2992, %v4093, -inf
        %4135 = vmax.xlane.f32.xlu0 %v4134
        %v4136 = vpop.xlane.xlu0 %4135
        %v4137 = vsel %vm2992, %v4115, -inf
        %4138 = vmax.xlane.f32.xlu0 %v4137
        %v4139 = vpop.xlane.xlu0 %4138
        %v4140 = vsel %vm2992, %v4117, -inf
        %4141 = vmax.xlane.f32.xlu0 %v4140
        %v4142 = vpop.xlane.xlu0 %4141
        %v4143 = vsub.f32 %v4043, %v4121
        %v4144 = vsub.f32 %v4045, %v4124
        %v4145 = vsub.f32 %v4067, %v4127
        %v4146 = vsub.f32 %v4069, %v4130
        %v4147 = vsub.f32 %v4091, %v4133
        %v4148 = vsub.f32 %v4093, %v4136
        %v4149 = vsub.f32 %v4115, %v4139
        %v4150 = vsub.f32 %v4117, %v4142
        %v4151 = vmul.f32 %v4143, 1.442695
        %v4152 = vpow.pop %v4151
        %v4153 = vmul.f32 %v4144, 1.442695
        %v4154 = vpow.pop %v4153
        %v4155 = vmul.f32 %v4145, 1.442695
        %v4156 = vpow.pop %v4155
        %v4157 = vmul.f32 %v4146, 1.442695
        %v4158 = vpow.pop %v4157
        %v4159 = vmul.f32 %v4147, 1.442695
        %v4160 = vpow.pop %v4159
        %v4161 = vmul.f32 %v4148, 1.442695
        %v4162 = vpow.pop %v4161
        %v4163 = vmul.f32 %v4149, 1.442695
        %v4164 = vpow.pop %v4163
        %v4165 = vmul.f32 %v4150, 1.442695
        %v4166 = vpow.pop %v4165
        %v4167 = vsel %vm2992, %v4152, 0.0
        %4168 = vadd.xlane.f32.xlu0 %v4167
        %v4169 = vpop.xlane.xlu0 %4168
        %v4170 = vsel %vm2992, %v4154, 0.0
        %4171 = vadd.xlane.f32.xlu0 %v4170
        %v4172 = vpop.xlane.xlu0 %4171
        %v4173 = vsel %vm2992, %v4156, 0.0
        %4174 = vadd.xlane.f32.xlu0 %v4173
        %v4175 = vpop.xlane.xlu0 %4174
        %v4176 = vsel %vm2992, %v4158, 0.0
        %4177 = vadd.xlane.f32.xlu0 %v4176
        %v4178 = vpop.xlane.xlu0 %4177
        %v4179 = vsel %vm2992, %v4160, 0.0
        %4180 = vadd.xlane.f32.xlu0 %v4179
        %v4181 = vpop.xlane.xlu0 %4180
        %v4182 = vsel %vm2992, %v4162, 0.0
        %4183 = vadd.xlane.f32.xlu0 %v4182
        %v4184 = vpop.xlane.xlu0 %4183
        %v4185 = vsel %vm2992, %v4164, 0.0
        %4186 = vadd.xlane.f32.xlu0 %v4185
        %v4187 = vpop.xlane.xlu0 %4186
        %v4188 = vsel %vm2992, %v4166, 0.0
        %4189 = vadd.xlane.f32.xlu0 %v4188
        %v4190 = vpop.xlane.xlu0 %4189
        %v4191 = vrcp.pop %v4169
        %v4192 = vrcp.pop %v4172
        %v4193 = vrcp.pop %v4175
        %v4194 = vrcp.pop %v4178
        %v4195 = vrcp.pop %v4181
        %v4196 = vrcp.pop %v4184
        %v4197 = vrcp.pop %v4187
        %v4198 = vrcp.pop %v4190
        %v4199 = vmul.f32 %v4152, %v4191
        %v4200 = vmul.f32 %v4154, %v4192
        %v4201 = vmul.f32 %v4156, %v4193
        %v4202 = vmul.f32 %v4158, %v4194
        %v4203 = vmul.f32 %v4160, %v4195
        %v4204 = vmul.f32 %v4162, %v4196
        %v4205 = vmul.f32 %v4164, %v4197
        %v4206 = vmul.f32 %v4166, %v4198
        %v4207 = vpack.c.bf16 %v4199, %v4199
        %v4208 = vpack.c.bf16 %v4200, %v4200
        %v4209 = vpack.c.bf16 %v4201, %v4201
        %v4210 = vpack.c.bf16 %v4202, %v4202
        %v4211 = vpack.c.bf16 %v4203, %v4203
        %v4212 = vpack.c.bf16 %v4204, %v4204
        %v4213 = vpack.c.bf16 %v4205, %v4205
        %v4214 = vpack.c.bf16 %v4206, %v4206
        %v4217 = vunpack.c.l.b16 %v4207
        %v4218 = vunpack.c.l.b16 %v4208
        %v4219 = vpack.c.b16 %v4218, %v4217
        %4220 = vrot.lane.b32.xlu0 %v3127, 56
        %v4221 = vpop.permute.xlu0 %4220
        %v4224 = vsel %vm2992, %v4219, 0
        %4226 = vmatpush.bf16.msra.mxu0 0
        %4227 = vmatpush.bf16.msra.mxu0 0
        %4228 = vmatpush.bf16.msra.mxu0 0
        %4229 = vmatpush.bf16.msra.mxu0 0
        %4230 = vmatpush.bf16.msra.mxu0 0
        %4231 = vmatpush.bf16.msra.mxu0 0
        %4232 = vmatpush.bf16.msra.mxu0 0
        %4233 = vmatpush.bf16.msra.mxu0 %v4221
        %4234 = vmatmul.bf16.gmra.mxu0 %v4224
        %v4235 = vpop.f32.mrf.mxu0
        %v4236 = vadd.f32 0.0, %v4235
        %v4237 = vpop.f32.mrf.mxu0
        %v4238 = vadd.f32 0.0, %v4237
        %4239 = vdwg.mxu0
        %v4242 = vunpack.c.l.b16 %v4209
        %v4243 = vunpack.c.l.b16 %v4210
        %v4244 = vpack.c.b16 %v4243, %v4242
        %4245 = vrot.lane.b32.xlu0 %v3159, 56
        %v4246 = vpop.permute.xlu0 %4245
        %v4249 = vsel %vm2992, %v4244, 0
        %4251 = vmatpush.bf16.msra.mxu0 0
        %4252 = vmatpush.bf16.msra.mxu0 0
        %4253 = vmatpush.bf16.msra.mxu0 0
        %4254 = vmatpush.bf16.msra.mxu0 0
        %4255 = vmatpush.bf16.msra.mxu0 0
        %4256 = vmatpush.bf16.msra.mxu0 0
        %4257 = vmatpush.bf16.msra.mxu0 0
        %4258 = vmatpush.bf16.msra.mxu0 %v4246
        %4259 = vmatmul.bf16.gmra.mxu0 %v4249
        %v4260 = vpop.f32.mrf.mxu0
        %v4261 = vadd.f32 0.0, %v4260
        %v4262 = vpop.f32.mrf.mxu0
        %v4263 = vadd.f32 0.0, %v4262
        %4264 = vdwg.mxu0
        %v4267 = vunpack.c.l.b16 %v4211
        %v4268 = vunpack.c.l.b16 %v4212
        %v4269 = vpack.c.b16 %v4268, %v4267
        %4270 = vrot.lane.b32.xlu0 %v3191, 56
        %v4271 = vpop.permute.xlu0 %4270
        %v4274 = vsel %vm2992, %v4269, 0
        %4276 = vmatpush.bf16.msra.mxu0 0
        %4277 = vmatpush.bf16.msra.mxu0 0
        %4278 = vmatpush.bf16.msra.mxu0 0
        %4279 = vmatpush.bf16.msra.mxu0 0
        %4280 = vmatpush.bf16.msra.mxu0 0
        %4281 = vmatpush.bf16.msra.mxu0 0
        %4282 = vmatpush.bf16.msra.mxu0 0
        %4283 = vmatpush.bf16.msra.mxu0 %v4271
        %4284 = vmatmul.bf16.gmra.mxu0 %v4274
        %v4285 = vpop.f32.mrf.mxu0
        %v4286 = vadd.f32 0.0, %v4285
        %v4287 = vpop.f32.mrf.mxu0
        %v4288 = vadd.f32 0.0, %v4287
        %4289 = vdwg.mxu0
        %v4292 = vunpack.c.l.b16 %v4213
        %v4293 = vunpack.c.l.b16 %v4214
        %v4294 = vpack.c.b16 %v4293, %v4292
        %4295 = vrot.lane.b32.xlu0 %v3223, 56
        %v4296 = vpop.permute.xlu0 %4295
        %v4299 = vsel %vm2992, %v4294, 0
        %4301 = vmatpush.bf16.msra.mxu0 0
        %4302 = vmatpush.bf16.msra.mxu0 0
        %4303 = vmatpush.bf16.msra.mxu0 0
        %4304 = vmatpush.bf16.msra.mxu0 0
        %4305 = vmatpush.bf16.msra.mxu0 0
        %4306 = vmatpush.bf16.msra.mxu0 0
        %4307 = vmatpush.bf16.msra.mxu0 0
        %4308 = vmatpush.bf16.msra.mxu0 %v4296
        %4309 = vmatmul.bf16.gmra.mxu0 %v4299
        %v4310 = vpop.f32.mrf.mxu0
        %v4311 = vadd.f32 0.0, %v4310
        %v4312 = vpop.f32.mrf.mxu0
        %v4313 = vadd.f32 0.0, %v4312
        %4314 = vdwg.mxu0
        %4315 = vrot.lane.b32.xlu0 %v3127, 112
        %v4316 = vpop.permute.xlu0 %4315
        %4317 = vrot.lane.b32.xlu0 %v3132, 80
        %v4318 = vpop.permute.xlu0 %4317
        %v4320 = vsel %vm710, %v4316, 0
        %v4323 = vsel %vm710, %v4318, 0
        %4325 = vmatpush.bf16.xpose.msra.mxu0 0
        %4326 = vmatpush.bf16.xpose.msra.mxu0 0
        %4327 = vmatpush.bf16.xpose.msra.mxu0 0
        %4328 = vmatpush.bf16.xpose.msra.mxu0 0
        %4329 = vmatpush.bf16.xpose.msra.mxu0 0
        %4330 = vmatpush.bf16.xpose.msra.mxu0 0
        %4331 = vmatpush.bf16.xpose.msra.mxu0 0
        %4332 = vmatpush.bf16.xpose.msra.mxu0 %v4323
        %4333 = vmatmul.bf16.gmra.mxu0 %v4320
        %v4334 = vpop.f32.mrf.mxu0
        %v4335 = vadd.f32 0.0, %v4334
        %v4336 = vpop.f32.mrf.mxu0
        %v4337 = vadd.f32 0.0, %v4336
        %4338 = vdwg.mxu0
        %4339 = vrot.lane.b32.xlu0 %v3159, 112
        %v4340 = vpop.permute.xlu0 %4339
        %4341 = vrot.lane.b32.xlu0 %v3164, 80
        %v4342 = vpop.permute.xlu0 %4341
        %v4344 = vsel %vm710, %v4340, 0
        %v4347 = vsel %vm710, %v4342, 0
        %4349 = vmatpush.bf16.xpose.msra.mxu0 0
        %4350 = vmatpush.bf16.xpose.msra.mxu0 0
        %4351 = vmatpush.bf16.xpose.msra.mxu0 0
        %4352 = vmatpush.bf16.xpose.msra.mxu0 0
        %4353 = vmatpush.bf16.xpose.msra.mxu0 0
        %4354 = vmatpush.bf16.xpose.msra.mxu0 0
        %4355 = vmatpush.bf16.xpose.msra.mxu0 0
        %4356 = vmatpush.bf16.xpose.msra.mxu0 %v4347
        %4357 = vmatmul.bf16.gmra.mxu0 %v4344
        %v4358 = vpop.f32.mrf.mxu0
        %v4359 = vadd.f32 0.0, %v4358
        %v4360 = vpop.f32.mrf.mxu0
        %v4361 = vadd.f32 0.0, %v4360
        %4362 = vdwg.mxu0
        %4363 = vrot.lane.b32.xlu0 %v3191, 112
        %v4364 = vpop.permute.xlu0 %4363
        %4365 = vrot.lane.b32.xlu0 %v3196, 80
        %v4366 = vpop.permute.xlu0 %4365
        %v4368 = vsel %vm710, %v4364, 0
        %v4371 = vsel %vm710, %v4366, 0
        %4373 = vmatpush.bf16.xpose.msra.mxu0 0
        %4374 = vmatpush.bf16.xpose.msra.mxu0 0
        %4375 = vmatpush.bf16.xpose.msra.mxu0 0
        %4376 = vmatpush.bf16.xpose.msra.mxu0 0
        %4377 = vmatpush.bf16.xpose.msra.mxu0 0
        %4378 = vmatpush.bf16.xpose.msra.mxu0 0
        %4379 = vmatpush.bf16.xpose.msra.mxu0 0
        %4380 = vmatpush.bf16.xpose.msra.mxu0 %v4371
        %4381 = vmatmul.bf16.gmra.mxu0 %v4368
        %v4382 = vpop.f32.mrf.mxu0
        %v4383 = vadd.f32 0.0, %v4382
        %v4384 = vpop.f32.mrf.mxu0
        %v4385 = vadd.f32 0.0, %v4384
        %4386 = vdwg.mxu0
        %4387 = vrot.lane.b32.xlu0 %v3223, 112
        %v4388 = vpop.permute.xlu0 %4387
        %4389 = vrot.lane.b32.xlu0 %v3228, 80
        %v4390 = vpop.permute.xlu0 %4389
        %v4392 = vsel %vm710, %v4388, 0
        %v4395 = vsel %vm710, %v4390, 0
        %4397 = vmatpush.bf16.xpose.msra.mxu0 0
        %4398 = vmatpush.bf16.xpose.msra.mxu0 0
        %4399 = vmatpush.bf16.xpose.msra.mxu0 0
        %4400 = vmatpush.bf16.xpose.msra.mxu0 0
        %4401 = vmatpush.bf16.xpose.msra.mxu0 0
        %4402 = vmatpush.bf16.xpose.msra.mxu0 0
        %4403 = vmatpush.bf16.xpose.msra.mxu0 0
        %4404 = vmatpush.bf16.xpose.msra.mxu0 %v4395
        %4405 = vmatmul.bf16.gmra.mxu0 %v4392
        %v4406 = vpop.f32.mrf.mxu0
        %v4407 = vadd.f32 0.0, %v4406
        %v4408 = vpop.f32.mrf.mxu0
        %v4409 = vadd.f32 0.0, %v4408
        %4410 = vdwg.mxu0
        %v4411 = vsel %vm2992, %v4335, -inf
        %4412 = vmax.xlane.f32.xlu0 %v4411
        %v4413 = vpop.xlane.xlu0 %4412
        %v4414 = vsel %vm2992, %v4337, -inf
        %4415 = vmax.xlane.f32.xlu0 %v4414
        %v4416 = vpop.xlane.xlu0 %4415
        %v4417 = vsel %vm2992, %v4359, -inf
        %4418 = vmax.xlane.f32.xlu0 %v4417
        %v4419 = vpop.xlane.xlu0 %4418
        %v4420 = vsel %vm2992, %v4361, -inf
        %4421 = vmax.xlane.f32.xlu0 %v4420
        %v4422 = vpop.xlane.xlu0 %4421
        %v4423 = vsel %vm2992, %v4383, -inf
        %4424 = vmax.xlane.f32.xlu0 %v4423
        %v4425 = vpop.xlane.xlu0 %4424
        %v4426 = vsel %vm2992, %v4385, -inf
        %4427 = vmax.xlane.f32.xlu0 %v4426
        %v4428 = vpop.xlane.xlu0 %4427
        %v4429 = vsel %vm2992, %v4407, -inf
        %4430 = vmax.xlane.f32.xlu0 %v4429
        %v4431 = vpop.xlane.xlu0 %4430
        %v4432 = vsel %vm2992, %v4409, -inf
        %4433 = vmax.xlane.f32.xlu0 %v4432
        %v4434 = vpop.xlane.xlu0 %4433
        %v4435 = vsub.f32 %v4335, %v4413
        %v4436 = vsub.f32 %v4337, %v4416
        %v4437 = vsub.f32 %v4359, %v4419
        %v4438 = vsub.f32 %v4361, %v4422
        %v4439 = vsub.f32 %v4383, %v4425
        %v4440 = vsub.f32 %v4385, %v4428
        %v4441 = vsub.f32 %v4407, %v4431
        %v4442 = vsub.f32 %v4409, %v4434
        %v4443 = vmul.f32 %v4435, 1.442695
        %v4444 = vpow.pop %v4443
        %v4445 = vmul.f32 %v4436, 1.442695
        %v4446 = vpow.pop %v4445
        %v4447 = vmul.f32 %v4437, 1.442695
        %v4448 = vpow.pop %v4447
        %v4449 = vmul.f32 %v4438, 1.442695
        %v4450 = vpow.pop %v4449
        %v4451 = vmul.f32 %v4439, 1.442695
        %v4452 = vpow.pop %v4451
        %v4453 = vmul.f32 %v4440, 1.442695
        %v4454 = vpow.pop %v4453
        %v4455 = vmul.f32 %v4441, 1.442695
        %v4456 = vpow.pop %v4455
        %v4457 = vmul.f32 %v4442, 1.442695
        %v4458 = vpow.pop %v4457
        %v4459 = vsel %vm2992, %v4444, 0.0
        %4460 = vadd.xlane.f32.xlu0 %v4459
        %v4461 = vpop.xlane.xlu0 %4460
        %v4462 = vsel %vm2992, %v4446, 0.0
        %4463 = vadd.xlane.f32.xlu0 %v4462
        %v4464 = vpop.xlane.xlu0 %4463
        %v4465 = vsel %vm2992, %v4448, 0.0
        %4466 = vadd.xlane.f32.xlu0 %v4465
        %v4467 = vpop.xlane.xlu0 %4466
        %v4468 = vsel %vm2992, %v4450, 0.0
        %4469 = vadd.xlane.f32.xlu0 %v4468
        %v4470 = vpop.xlane.xlu0 %4469
        %v4471 = vsel %vm2992, %v4452, 0.0
        %4472 = vadd.xlane.f32.xlu0 %v4471
        %v4473 = vpop.xlane.xlu0 %4472
        %v4474 = vsel %vm2992, %v4454, 0.0
        %4475 = vadd.xlane.f32.xlu0 %v4474
        %v4476 = vpop.xlane.xlu0 %4475
        %v4477 = vsel %vm2992, %v4456, 0.0
        %4478 = vadd.xlane.f32.xlu0 %v4477
        %v4479 = vpop.xlane.xlu0 %4478
        %v4480 = vsel %vm2992, %v4458, 0.0
        %4481 = vadd.xlane.f32.xlu0 %v4480
        %v4482 = vpop.xlane.xlu0 %4481
        %v4483 = vrcp.pop %v4461
        %v4484 = vrcp.pop %v4464
        %v4485 = vrcp.pop %v4467
        %v4486 = vrcp.pop %v4470
        %v4487 = vrcp.pop %v4473
        %v4488 = vrcp.pop %v4476
        %v4489 = vrcp.pop %v4479
        %v4490 = vrcp.pop %v4482
        %v4491 = vmul.f32 %v4444, %v4483
        %v4492 = vmul.f32 %v4446, %v4484
        %v4493 = vmul.f32 %v4448, %v4485
        %v4494 = vmul.f32 %v4450, %v4486
        %v4495 = vmul.f32 %v4452, %v4487
        %v4496 = vmul.f32 %v4454, %v4488
        %v4497 = vmul.f32 %v4456, %v4489
        %v4498 = vmul.f32 %v4458, %v4490
        %v4499 = vpack.c.bf16 %v4491, %v4491
        %v4500 = vpack.c.bf16 %v4492, %v4492
        %v4501 = vpack.c.bf16 %v4493, %v4493
        %v4502 = vpack.c.bf16 %v4494, %v4494
        %v4503 = vpack.c.bf16 %v4495, %v4495
        %v4504 = vpack.c.bf16 %v4496, %v4496
        %v4505 = vpack.c.bf16 %v4497, %v4497
        %v4506 = vpack.c.bf16 %v4498, %v4498
        %v4509 = vunpack.c.l.b16 %v4499
        %v4510 = vunpack.c.l.b16 %v4500
        %v4511 = vpack.c.b16 %v4510, %v4509
        %4512 = vrot.lane.b32.xlu0 %v3132, 48
        %v4513 = vpop.permute.xlu0 %4512
        %v4516 = vsel %vm2992, %v4511, 0
        %4518 = vmatpush.bf16.msra.mxu0 0
        %4519 = vmatpush.bf16.msra.mxu0 0
        %4520 = vmatpush.bf16.msra.mxu0 0
        %4521 = vmatpush.bf16.msra.mxu0 0
        %4522 = vmatpush.bf16.msra.mxu0 0
        %4523 = vmatpush.bf16.msra.mxu0 0
        %4524 = vmatpush.bf16.msra.mxu0 0
        %4525 = vmatpush.bf16.msra.mxu0 %v4513
        %4526 = vmatmul.bf16.gmra.mxu0 %v4516
        %v4527 = vpop.f32.mrf.mxu0
        %v4528 = vadd.f32 0.0, %v4527
        %v4529 = vpop.f32.mrf.mxu0
        %v4530 = vadd.f32 0.0, %v4529
        %4531 = vdwg.mxu0
        %v4534 = vunpack.c.l.b16 %v4501
        %v4535 = vunpack.c.l.b16 %v4502
        %v4536 = vpack.c.b16 %v4535, %v4534
        %4537 = vrot.lane.b32.xlu0 %v3164, 48
        %v4538 = vpop.permute.xlu0 %4537
        %v4541 = vsel %vm2992, %v4536, 0
        %4543 = vmatpush.bf16.msra.mxu0 0
        %4544 = vmatpush.bf16.msra.mxu0 0
        %4545 = vmatpush.bf16.msra.mxu0 0
        %4546 = vmatpush.bf16.msra.mxu0 0
        %4547 = vmatpush.bf16.msra.mxu0 0
        %4548 = vmatpush.bf16.msra.mxu0 0
        %4549 = vmatpush.bf16.msra.mxu0 0
        %4550 = vmatpush.bf16.msra.mxu0 %v4538
        %4551 = vmatmul.bf16.gmra.mxu0 %v4541
        %v4552 = vpop.f32.mrf.mxu0
        %v4553 = vadd.f32 0.0, %v4552
        %v4554 = vpop.f32.mrf.mxu0
        %v4555 = vadd.f32 0.0, %v4554
        %4556 = vdwg.mxu0
        %v4559 = vunpack.c.l.b16 %v4503
        %v4560 = vunpack.c.l.b16 %v4504
        %v4561 = vpack.c.b16 %v4560, %v4559
        %4562 = vrot.lane.b32.xlu0 %v3196, 48
        %v4563 = vpop.permute.xlu0 %4562
        %v4566 = vsel %vm2992, %v4561, 0
        %4568 = vmatpush.bf16.msra.mxu0 0
        %4569 = vmatpush.bf16.msra.mxu0 0
        %4570 = vmatpush.bf16.msra.mxu0 0
        %4571 = vmatpush.bf16.msra.mxu0 0
        %4572 = vmatpush.bf16.msra.mxu0 0
        %4573 = vmatpush.bf16.msra.mxu0 0
        %4574 = vmatpush.bf16.msra.mxu0 0
        %4575 = vmatpush.bf16.msra.mxu0 %v4563
        %4576 = vmatmul.bf16.gmra.mxu0 %v4566
        %v4577 = vpop.f32.mrf.mxu0
        %v4578 = vadd.f32 0.0, %v4577
        %v4579 = vpop.f32.mrf.mxu0
        %v4580 = vadd.f32 0.0, %v4579
        %4581 = vdwg.mxu0
        %v4584 = vunpack.c.l.b16 %v4505
        %v4585 = vunpack.c.l.b16 %v4506
        %v4586 = vpack.c.b16 %v4585, %v4584
        %4587 = vrot.lane.b32.xlu0 %v3228, 48
        %v4588 = vpop.permute.xlu0 %4587
        %v4591 = vsel %vm2992, %v4586, 0
        %4593 = vmatpush.bf16.msra.mxu0 0
        %4594 = vmatpush.bf16.msra.mxu0 0
        %4595 = vmatpush.bf16.msra.mxu0 0
        %4596 = vmatpush.bf16.msra.mxu0 0
        %4597 = vmatpush.bf16.msra.mxu0 0
        %4598 = vmatpush.bf16.msra.mxu0 0
        %4599 = vmatpush.bf16.msra.mxu0 0
        %4600 = vmatpush.bf16.msra.mxu0 %v4588
        %4601 = vmatmul.bf16.gmra.mxu0 %v4591
        %v4602 = vpop.f32.mrf.mxu0
        %v4603 = vadd.f32 0.0, %v4602
        %v4604 = vpop.f32.mrf.mxu0
        %v4605 = vadd.f32 0.0, %v4604
        %4606 = vdwg.mxu0
        %4607 = vrot.lane.b32.xlu0 %v3132, 112
        %v4608 = vpop.permute.xlu0 %4607
        %4609 = vrot.lane.b32.xlu0 %v3127, 80
        %v4610 = vpop.permute.xlu0 %4609
        %v4612 = vsel %vm710, %v4608, 0
        %v4615 = vsel %vm710, %v4610, 0
        %4617 = vmatpush.bf16.xpose.msra.mxu0 0
        %4618 = vmatpush.bf16.xpose.msra.mxu0 0
        %4619 = vmatpush.bf16.xpose.msra.mxu0 0
        %4620 = vmatpush.bf16.xpose.msra.mxu0 0
        %4621 = vmatpush.bf16.xpose.msra.mxu0 0
        %4622 = vmatpush.bf16.xpose.msra.mxu0 0
        %4623 = vmatpush.bf16.xpose.msra.mxu0 0
        %4624 = vmatpush.bf16.xpose.msra.mxu0 %v4615
        %4625 = vmatmul.bf16.gmra.mxu0 %v4612
        %v4626 = vpop.f32.mrf.mxu0
        %v4627 = vadd.f32 0.0, %v4626
        %v4628 = vpop.f32.mrf.mxu0
        %v4629 = vadd.f32 0.0, %v4628
        %4630 = vdwg.mxu0
        %4631 = vrot.lane.b32.xlu0 %v3164, 112
        %v4632 = vpop.permute.xlu0 %4631
        %4633 = vrot.lane.b32.xlu0 %v3159, 80
        %v4634 = vpop.permute.xlu0 %4633
        %v4636 = vsel %vm710, %v4632, 0
        %v4639 = vsel %vm710, %v4634, 0
        %4641 = vmatpush.bf16.xpose.msra.mxu0 0
        %4642 = vmatpush.bf16.xpose.msra.mxu0 0
        %4643 = vmatpush.bf16.xpose.msra.mxu0 0
        %4644 = vmatpush.bf16.xpose.msra.mxu0 0
        %4645 = vmatpush.bf16.xpose.msra.mxu0 0
        %4646 = vmatpush.bf16.xpose.msra.mxu0 0
        %4647 = vmatpush.bf16.xpose.msra.mxu0 0
        %4648 = vmatpush.bf16.xpose.msra.mxu0 %v4639
        %4649 = vmatmul.bf16.gmra.mxu0 %v4636
        %v4650 = vpop.f32.mrf.mxu0
        %v4651 = vadd.f32 0.0, %v4650
        %v4652 = vpop.f32.mrf.mxu0
        %v4653 = vadd.f32 0.0, %v4652
        %4654 = vdwg.mxu0
        %4655 = vrot.lane.b32.xlu0 %v3196, 112
        %v4656 = vpop.permute.xlu0 %4655
        %4657 = vrot.lane.b32.xlu0 %v3191, 80
        %v4658 = vpop.permute.xlu0 %4657
        %v4660 = vsel %vm710, %v4656, 0
        %v4663 = vsel %vm710, %v4658, 0
        %4665 = vmatpush.bf16.xpose.msra.mxu0 0
        %4666 = vmatpush.bf16.xpose.msra.mxu0 0
        %4667 = vmatpush.bf16.xpose.msra.mxu0 0
        %4668 = vmatpush.bf16.xpose.msra.mxu0 0
        %4669 = vmatpush.bf16.xpose.msra.mxu0 0
        %4670 = vmatpush.bf16.xpose.msra.mxu0 0
        %4671 = vmatpush.bf16.xpose.msra.mxu0 0
        %4672 = vmatpush.bf16.xpose.msra.mxu0 %v4663
        %4673 = vmatmul.bf16.gmra.mxu0 %v4660
        %v4674 = vpop.f32.mrf.mxu0
        %v4675 = vadd.f32 0.0, %v4674
        %v4676 = vpop.f32.mrf.mxu0
        %v4677 = vadd.f32 0.0, %v4676
        %4678 = vdwg.mxu0
        %4679 = vrot.lane.b32.xlu0 %v3228, 112
        %v4680 = vpop.permute.xlu0 %4679
        %4681 = vrot.lane.b32.xlu0 %v3223, 80
        %v4682 = vpop.permute.xlu0 %4681
        %v4684 = vsel %vm710, %v4680, 0
        %v4687 = vsel %vm710, %v4682, 0
        %4689 = vmatpush.bf16.xpose.msra.mxu0 0
        %4690 = vmatpush.bf16.xpose.msra.mxu0 0
        %4691 = vmatpush.bf16.xpose.msra.mxu0 0
        %4692 = vmatpush.bf16.xpose.msra.mxu0 0
        %4693 = vmatpush.bf16.xpose.msra.mxu0 0
        %4694 = vmatpush.bf16.xpose.msra.mxu0 0
        %4695 = vmatpush.bf16.xpose.msra.mxu0 0
        %4696 = vmatpush.bf16.xpose.msra.mxu0 %v4687
        %4697 = vmatmul.bf16.gmra.mxu0 %v4684
        %v4698 = vpop.f32.mrf.mxu0
        %v4699 = vadd.f32 0.0, %v4698
        %v4700 = vpop.f32.mrf.mxu0
        %v4701 = vadd.f32 0.0, %v4700
        %4702 = vdwg.mxu0
        %v4703 = vsel %vm2992, %v4627, -inf
        %4704 = vmax.xlane.f32.xlu0 %v4703
        %v4705 = vpop.xlane.xlu0 %4704
        %v4706 = vsel %vm2992, %v4629, -inf
        %4707 = vmax.xlane.f32.xlu0 %v4706
        %v4708 = vpop.xlane.xlu0 %4707
        %v4709 = vsel %vm2992, %v4651, -inf
        %4710 = vmax.xlane.f32.xlu0 %v4709
        %v4711 = vpop.xlane.xlu0 %4710
        %v4712 = vsel %vm2992, %v4653, -inf
        %4713 = vmax.xlane.f32.xlu0 %v4712
        %v4714 = vpop.xlane.xlu0 %4713
        %v4715 = vsel %vm2992, %v4675, -inf
        %4716 = vmax.xlane.f32.xlu0 %v4715
        %v4717 = vpop.xlane.xlu0 %4716
        %v4718 = vsel %vm2992, %v4677, -inf
        %4719 = vmax.xlane.f32.xlu0 %v4718
        %v4720 = vpop.xlane.xlu0 %4719
        %v4721 = vsel %vm2992, %v4699, -inf
        %4722 = vmax.xlane.f32.xlu0 %v4721
        %v4723 = vpop.xlane.xlu0 %4722
        %v4724 = vsel %vm2992, %v4701, -inf
        %4725 = vmax.xlane.f32.xlu0 %v4724
        %v4726 = vpop.xlane.xlu0 %4725
        %v4727 = vsub.f32 %v4627, %v4705
        %v4728 = vsub.f32 %v4629, %v4708
        %v4729 = vsub.f32 %v4651, %v4711
        %v4730 = vsub.f32 %v4653, %v4714
        %v4731 = vsub.f32 %v4675, %v4717
        %v4732 = vsub.f32 %v4677, %v4720
        %v4733 = vsub.f32 %v4699, %v4723
        %v4734 = vsub.f32 %v4701, %v4726
        %v4735 = vmul.f32 %v4727, 1.442695
        %v4736 = vpow.pop %v4735
        %v4737 = vmul.f32 %v4728, 1.442695
        %v4738 = vpow.pop %v4737
        %v4739 = vmul.f32 %v4729, 1.442695
        %v4740 = vpow.pop %v4739
        %v4741 = vmul.f32 %v4730, 1.442695
        %v4742 = vpow.pop %v4741
        %v4743 = vmul.f32 %v4731, 1.442695
        %v4744 = vpow.pop %v4743
        %v4745 = vmul.f32 %v4732, 1.442695
        %v4746 = vpow.pop %v4745
        %v4747 = vmul.f32 %v4733, 1.442695
        %v4748 = vpow.pop %v4747
        %v4749 = vmul.f32 %v4734, 1.442695
        %v4750 = vpow.pop %v4749
        %v4751 = vsel %vm2992, %v4736, 0.0
        %4752 = vadd.xlane.f32.xlu0 %v4751
        %v4753 = vpop.xlane.xlu0 %4752
        %v4754 = vsel %vm2992, %v4738, 0.0
        %4755 = vadd.xlane.f32.xlu0 %v4754
        %v4756 = vpop.xlane.xlu0 %4755
        %v4757 = vsel %vm2992, %v4740, 0.0
        %4758 = vadd.xlane.f32.xlu0 %v4757
        %v4759 = vpop.xlane.xlu0 %4758
        %v4760 = vsel %vm2992, %v4742, 0.0
        %4761 = vadd.xlane.f32.xlu0 %v4760
        %v4762 = vpop.xlane.xlu0 %4761
        %v4763 = vsel %vm2992, %v4744, 0.0
        %4764 = vadd.xlane.f32.xlu0 %v4763
        %v4765 = vpop.xlane.xlu0 %4764
        %v4766 = vsel %vm2992, %v4746, 0.0
        %4767 = vadd.xlane.f32.xlu0 %v4766
        %v4768 = vpop.xlane.xlu0 %4767
        %v4769 = vsel %vm2992, %v4748, 0.0
        %4770 = vadd.xlane.f32.xlu0 %v4769
        %v4771 = vpop.xlane.xlu0 %4770
        %v4772 = vsel %vm2992, %v4750, 0.0
        %4773 = vadd.xlane.f32.xlu0 %v4772
        %v4774 = vpop.xlane.xlu0 %4773
        %v4775 = vrcp.pop %v4753
        %v4776 = vrcp.pop %v4756
        %v4777 = vrcp.pop %v4759
        %v4778 = vrcp.pop %v4762
        %v4779 = vrcp.pop %v4765
        %v4780 = vrcp.pop %v4768
        %v4781 = vrcp.pop %v4771
        %v4782 = vrcp.pop %v4774
        %v4783 = vmul.f32 %v4736, %v4775
        %v4784 = vmul.f32 %v4738, %v4776
        %v4785 = vmul.f32 %v4740, %v4777
        %v4786 = vmul.f32 %v4742, %v4778
        %v4787 = vmul.f32 %v4744, %v4779
        %v4788 = vmul.f32 %v4746, %v4780
        %v4789 = vmul.f32 %v4748, %v4781
        %v4790 = vmul.f32 %v4750, %v4782
        %v4791 = vpack.c.bf16 %v4783, %v4783
        %v4792 = vpack.c.bf16 %v4784, %v4784
        %v4793 = vpack.c.bf16 %v4785, %v4785
        %v4794 = vpack.c.bf16 %v4786, %v4786
        %v4795 = vpack.c.bf16 %v4787, %v4787
        %v4796 = vpack.c.bf16 %v4788, %v4788
        %v4797 = vpack.c.bf16 %v4789, %v4789
        %v4798 = vpack.c.bf16 %v4790, %v4790
        %v4801 = vunpack.c.l.b16 %v4791
        %v4802 = vunpack.c.l.b16 %v4792
        %v4803 = vpack.c.b16 %v4802, %v4801
        %4804 = vrot.lane.b32.xlu0 %v3127, 48
        %v4805 = vpop.permute.xlu0 %4804
        %v4808 = vsel %vm2992, %v4803, 0
        %4810 = vmatpush.bf16.msra.mxu0 0
        %4811 = vmatpush.bf16.msra.mxu0 0
        %4812 = vmatpush.bf16.msra.mxu0 0
        %4813 = vmatpush.bf16.msra.mxu0 0
        %4814 = vmatpush.bf16.msra.mxu0 0
        %4815 = vmatpush.bf16.msra.mxu0 0
        %4816 = vmatpush.bf16.msra.mxu0 0
        %4817 = vmatpush.bf16.msra.mxu0 %v4805
        %4818 = vmatmul.bf16.gmra.mxu0 %v4808
        %v4819 = vpop.f32.mrf.mxu0
        %v4820 = vadd.f32 0.0, %v4819
        %v4821 = vpop.f32.mrf.mxu0
        %v4822 = vadd.f32 0.0, %v4821
        %4823 = vdwg.mxu0
        %v4826 = vunpack.c.l.b16 %v4793
        %v4827 = vunpack.c.l.b16 %v4794
        %v4828 = vpack.c.b16 %v4827, %v4826
        %4829 = vrot.lane.b32.xlu0 %v3159, 48
        %v4830 = vpop.permute.xlu0 %4829
        %v4833 = vsel %vm2992, %v4828, 0
        %4835 = vmatpush.bf16.msra.mxu0 0
        %4836 = vmatpush.bf16.msra.mxu0 0
        %4837 = vmatpush.bf16.msra.mxu0 0
        %4838 = vmatpush.bf16.msra.mxu0 0
        %4839 = vmatpush.bf16.msra.mxu0 0
        %4840 = vmatpush.bf16.msra.mxu0 0
        %4841 = vmatpush.bf16.msra.mxu0 0
        %4842 = vmatpush.bf16.msra.mxu0 %v4830
        %4843 = vmatmul.bf16.gmra.mxu0 %v4833
        %v4844 = vpop.f32.mrf.mxu0
        %v4845 = vadd.f32 0.0, %v4844
        %v4846 = vpop.f32.mrf.mxu0
        %v4847 = vadd.f32 0.0, %v4846
        %4848 = vdwg.mxu0
        %v4851 = vunpack.c.l.b16 %v4795
        %v4852 = vunpack.c.l.b16 %v4796
        %v4853 = vpack.c.b16 %v4852, %v4851
        %4854 = vrot.lane.b32.xlu0 %v3191, 48
        %v4855 = vpop.permute.xlu0 %4854
        %v4858 = vsel %vm2992, %v4853, 0
        %4860 = vmatpush.bf16.msra.mxu0 0
        %4861 = vmatpush.bf16.msra.mxu0 0
        %4862 = vmatpush.bf16.msra.mxu0 0
        %4863 = vmatpush.bf16.msra.mxu0 0
        %4864 = vmatpush.bf16.msra.mxu0 0
        %4865 = vmatpush.bf16.msra.mxu0 0
        %4866 = vmatpush.bf16.msra.mxu0 0
        %4867 = vmatpush.bf16.msra.mxu0 %v4855
        %4868 = vmatmul.bf16.gmra.mxu0 %v4858
        %v4869 = vpop.f32.mrf.mxu0
        %v4870 = vadd.f32 0.0, %v4869
        %v4871 = vpop.f32.mrf.mxu0
        %v4872 = vadd.f32 0.0, %v4871
        %4873 = vdwg.mxu0
        %v4876 = vunpack.c.l.b16 %v4797
        %v4877 = vunpack.c.l.b16 %v4798
        %v4878 = vpack.c.b16 %v4877, %v4876
        %4879 = vrot.lane.b32.xlu0 %v3223, 48
        %v4880 = vpop.permute.xlu0 %4879
        %v4883 = vsel %vm2992, %v4878, 0
        %4885 = vmatpush.bf16.msra.mxu0 0
        %4886 = vmatpush.bf16.msra.mxu0 0
        %4887 = vmatpush.bf16.msra.mxu0 0
        %4888 = vmatpush.bf16.msra.mxu0 0
        %4889 = vmatpush.bf16.msra.mxu0 0
        %4890 = vmatpush.bf16.msra.mxu0 0
        %4891 = vmatpush.bf16.msra.mxu0 0
        %4892 = vmatpush.bf16.msra.mxu0 %v4880
        %4893 = vmatmul.bf16.gmra.mxu0 %v4883
        %v4894 = vpop.f32.mrf.mxu0
        %v4895 = vadd.f32 0.0, %v4894
        %v4896 = vpop.f32.mrf.mxu0
        %v4897 = vadd.f32 0.0, %v4896
        %4898 = vdwg.mxu0
        %4899 = vrot.lane.b32.xlu0 %v3127, 104
        %v4900 = vpop.permute.xlu0 %4899
        %4901 = vrot.lane.b32.xlu0 %v3132, 72
        %v4902 = vpop.permute.xlu0 %4901
        %v4904 = vsel %vm710, %v4900, 0
        %v4907 = vsel %vm710, %v4902, 0
        %4909 = vmatpush.bf16.xpose.msra.mxu0 0
        %4910 = vmatpush.bf16.xpose.msra.mxu0 0
        %4911 = vmatpush.bf16.xpose.msra.mxu0 0
        %4912 = vmatpush.bf16.xpose.msra.mxu0 0
        %4913 = vmatpush.bf16.xpose.msra.mxu0 0
        %4914 = vmatpush.bf16.xpose.msra.mxu0 0
        %4915 = vmatpush.bf16.xpose.msra.mxu0 0
        %4916 = vmatpush.bf16.xpose.msra.mxu0 %v4907
        %4917 = vmatmul.bf16.gmra.mxu0 %v4904
        %v4918 = vpop.f32.mrf.mxu0
        %v4919 = vadd.f32 0.0, %v4918
        %v4920 = vpop.f32.mrf.mxu0
        %v4921 = vadd.f32 0.0, %v4920
        %4922 = vdwg.mxu0
        %4923 = vrot.lane.b32.xlu0 %v3159, 104
        %v4924 = vpop.permute.xlu0 %4923
        %4925 = vrot.lane.b32.xlu0 %v3164, 72
        %v4926 = vpop.permute.xlu0 %4925
        %v4928 = vsel %vm710, %v4924, 0
        %v4931 = vsel %vm710, %v4926, 0
        %4933 = vmatpush.bf16.xpose.msra.mxu0 0
        %4934 = vmatpush.bf16.xpose.msra.mxu0 0
        %4935 = vmatpush.bf16.xpose.msra.mxu0 0
        %4936 = vmatpush.bf16.xpose.msra.mxu0 0
        %4937 = vmatpush.bf16.xpose.msra.mxu0 0
        %4938 = vmatpush.bf16.xpose.msra.mxu0 0
        %4939 = vmatpush.bf16.xpose.msra.mxu0 0
        %4940 = vmatpush.bf16.xpose.msra.mxu0 %v4931
        %4941 = vmatmul.bf16.gmra.mxu0 %v4928
        %v4942 = vpop.f32.mrf.mxu0
        %v4943 = vadd.f32 0.0, %v4942
        %v4944 = vpop.f32.mrf.mxu0
        %v4945 = vadd.f32 0.0, %v4944
        %4946 = vdwg.mxu0
        %4947 = vrot.lane.b32.xlu0 %v3191, 104
        %v4948 = vpop.permute.xlu0 %4947
        %4949 = vrot.lane.b32.xlu0 %v3196, 72
        %v4950 = vpop.permute.xlu0 %4949
        %v4952 = vsel %vm710, %v4948, 0
        %v4955 = vsel %vm710, %v4950, 0
        %4957 = vmatpush.bf16.xpose.msra.mxu0 0
        %4958 = vmatpush.bf16.xpose.msra.mxu0 0
        %4959 = vmatpush.bf16.xpose.msra.mxu0 0
        %4960 = vmatpush.bf16.xpose.msra.mxu0 0
        %4961 = vmatpush.bf16.xpose.msra.mxu0 0
        %4962 = vmatpush.bf16.xpose.msra.mxu0 0
        %4963 = vmatpush.bf16.xpose.msra.mxu0 0
        %4964 = vmatpush.bf16.xpose.msra.mxu0 %v4955
        %4965 = vmatmul.bf16.gmra.mxu0 %v4952
        %v4966 = vpop.f32.mrf.mxu0
        %v4967 = vadd.f32 0.0, %v4966
        %v4968 = vpop.f32.mrf.mxu0
        %v4969 = vadd.f32 0.0, %v4968
        %4970 = vdwg.mxu0
        %4971 = vrot.lane.b32.xlu0 %v3223, 104
        %v4972 = vpop.permute.xlu0 %4971
        %4973 = vrot.lane.b32.xlu0 %v3228, 72
        %v4974 = vpop.permute.xlu0 %4973
        %v4976 = vsel %vm710, %v4972, 0
        %v4979 = vsel %vm710, %v4974, 0
        %4981 = vmatpush.bf16.xpose.msra.mxu0 0
        %4982 = vmatpush.bf16.xpose.msra.mxu0 0
        %4983 = vmatpush.bf16.xpose.msra.mxu0 0
        %4984 = vmatpush.bf16.xpose.msra.mxu0 0
        %4985 = vmatpush.bf16.xpose.msra.mxu0 0
        %4986 = vmatpush.bf16.xpose.msra.mxu0 0
        %4987 = vmatpush.bf16.xpose.msra.mxu0 0
        %4988 = vmatpush.bf16.xpose.msra.mxu0 %v4979
        %4989 = vmatmul.bf16.gmra.mxu0 %v4976
        %v4990 = vpop.f32.mrf.mxu0
        %v4991 = vadd.f32 0.0, %v4990
        %v4992 = vpop.f32.mrf.mxu0
        %v4993 = vadd.f32 0.0, %v4992
        %4994 = vdwg.mxu0
        %v4995 = vsel %vm2992, %v4919, -inf
        %4996 = vmax.xlane.f32.xlu0 %v4995
        %v4997 = vpop.xlane.xlu0 %4996
        %v4998 = vsel %vm2992, %v4921, -inf
        %4999 = vmax.xlane.f32.xlu0 %v4998
        %v5000 = vpop.xlane.xlu0 %4999
        %v5001 = vsel %vm2992, %v4943, -inf
        %5002 = vmax.xlane.f32.xlu0 %v5001
        %v5003 = vpop.xlane.xlu0 %5002
        %v5004 = vsel %vm2992, %v4945, -inf
        %5005 = vmax.xlane.f32.xlu0 %v5004
        %v5006 = vpop.xlane.xlu0 %5005
        %v5007 = vsel %vm2992, %v4967, -inf
        %5008 = vmax.xlane.f32.xlu0 %v5007
        %v5009 = vpop.xlane.xlu0 %5008
        %v5010 = vsel %vm2992, %v4969, -inf
        %5011 = vmax.xlane.f32.xlu0 %v5010
        %v5012 = vpop.xlane.xlu0 %5011
        %v5013 = vsel %vm2992, %v4991, -inf
        %5014 = vmax.xlane.f32.xlu0 %v5013
        %v5015 = vpop.xlane.xlu0 %5014
        %v5016 = vsel %vm2992, %v4993, -inf
        %5017 = vmax.xlane.f32.xlu0 %v5016
        %v5018 = vpop.xlane.xlu0 %5017
        %v5019 = vsub.f32 %v4919, %v4997
        %v5020 = vsub.f32 %v4921, %v5000
        %v5021 = vsub.f32 %v4943, %v5003
        %v5022 = vsub.f32 %v4945, %v5006
        %v5023 = vsub.f32 %v4967, %v5009
        %v5024 = vsub.f32 %v4969, %v5012
        %v5025 = vsub.f32 %v4991, %v5015
        %v5026 = vsub.f32 %v4993, %v5018
        %v5027 = vmul.f32 %v5019, 1.442695
        %v5028 = vpow.pop %v5027
        %v5029 = vmul.f32 %v5020, 1.442695
        %v5030 = vpow.pop %v5029
        %v5031 = vmul.f32 %v5021, 1.442695
        %v5032 = vpow.pop %v5031
        %v5033 = vmul.f32 %v5022, 1.442695
        %v5034 = vpow.pop %v5033
        %v5035 = vmul.f32 %v5023, 1.442695
        %v5036 = vpow.pop %v5035
        %v5037 = vmul.f32 %v5024, 1.442695
        %v5038 = vpow.pop %v5037
        %v5039 = vmul.f32 %v5025, 1.442695
        %v5040 = vpow.pop %v5039
        %v5041 = vmul.f32 %v5026, 1.442695
        %v5042 = vpow.pop %v5041
        %v5043 = vsel %vm2992, %v5028, 0.0
        %5044 = vadd.xlane.f32.xlu0 %v5043
        %v5045 = vpop.xlane.xlu0 %5044
        %v5046 = vsel %vm2992, %v5030, 0.0
        %5047 = vadd.xlane.f32.xlu0 %v5046
        %v5048 = vpop.xlane.xlu0 %5047
        %v5049 = vsel %vm2992, %v5032, 0.0
        %5050 = vadd.xlane.f32.xlu0 %v5049
        %v5051 = vpop.xlane.xlu0 %5050
        %v5052 = vsel %vm2992, %v5034, 0.0
        %5053 = vadd.xlane.f32.xlu0 %v5052
        %v5054 = vpop.xlane.xlu0 %5053
        %v5055 = vsel %vm2992, %v5036, 0.0
        %5056 = vadd.xlane.f32.xlu0 %v5055
        %v5057 = vpop.xlane.xlu0 %5056
        %v5058 = vsel %vm2992, %v5038, 0.0
        %5059 = vadd.xlane.f32.xlu0 %v5058
        %v5060 = vpop.xlane.xlu0 %5059
        %v5061 = vsel %vm2992, %v5040, 0.0
        %5062 = vadd.xlane.f32.xlu0 %v5061
        %v5063 = vpop.xlane.xlu0 %5062
        %v5064 = vsel %vm2992, %v5042, 0.0
        %5065 = vadd.xlane.f32.xlu0 %v5064
        %v5066 = vpop.xlane.xlu0 %5065
        %v5067 = vrcp.pop %v5045
        %v5068 = vrcp.pop %v5048
        %v5069 = vrcp.pop %v5051
        %v5070 = vrcp.pop %v5054
        %v5071 = vrcp.pop %v5057
        %v5072 = vrcp.pop %v5060
        %v5073 = vrcp.pop %v5063
        %v5074 = vrcp.pop %v5066
        %v5075 = vmul.f32 %v5028, %v5067
        %v5076 = vmul.f32 %v5030, %v5068
        %v5077 = vmul.f32 %v5032, %v5069
        %v5078 = vmul.f32 %v5034, %v5070
        %v5079 = vmul.f32 %v5036, %v5071
        %v5080 = vmul.f32 %v5038, %v5072
        %v5081 = vmul.f32 %v5040, %v5073
        %v5082 = vmul.f32 %v5042, %v5074
        %v5083 = vpack.c.bf16 %v5075, %v5075
        %v5084 = vpack.c.bf16 %v5076, %v5076
        %v5085 = vpack.c.bf16 %v5077, %v5077
        %v5086 = vpack.c.bf16 %v5078, %v5078
        %v5087 = vpack.c.bf16 %v5079, %v5079
        %v5088 = vpack.c.bf16 %v5080, %v5080
        %v5089 = vpack.c.bf16 %v5081, %v5081
        %v5090 = vpack.c.bf16 %v5082, %v5082
        %v5093 = vunpack.c.l.b16 %v5083
        %v5094 = vunpack.c.l.b16 %v5084
        %v5095 = vpack.c.b16 %v5094, %v5093
        %5096 = vrot.lane.b32.xlu0 %v3132, 40
        %v5097 = vpop.permute.xlu0 %5096
        %v5100 = vsel %vm2992, %v5095, 0
        %5102 = vmatpush.bf16.msra.mxu0 0
        %5103 = vmatpush.bf16.msra.mxu0 0
        %5104 = vmatpush.bf16.msra.mxu0 0
        %5105 = vmatpush.bf16.msra.mxu0 0
        %5106 = vmatpush.bf16.msra.mxu0 0
        %5107 = vmatpush.bf16.msra.mxu0 0
        %5108 = vmatpush.bf16.msra.mxu0 0
        %5109 = vmatpush.bf16.msra.mxu0 %v5097
        %5110 = vmatmul.bf16.gmra.mxu0 %v5100
        %v5111 = vpop.f32.mrf.mxu0
        %v5112 = vadd.f32 0.0, %v5111
        %v5113 = vpop.f32.mrf.mxu0
        %v5114 = vadd.f32 0.0, %v5113
        %5115 = vdwg.mxu0
        %v5118 = vunpack.c.l.b16 %v5085
        %v5119 = vunpack.c.l.b16 %v5086
        %v5120 = vpack.c.b16 %v5119, %v5118
        %5121 = vrot.lane.b32.xlu0 %v3164, 40
        %v5122 = vpop.permute.xlu0 %5121
        %v5125 = vsel %vm2992, %v5120, 0
        %5127 = vmatpush.bf16.msra.mxu0 0
        %5128 = vmatpush.bf16.msra.mxu0 0
        %5129 = vmatpush.bf16.msra.mxu0 0
        %5130 = vmatpush.bf16.msra.mxu0 0
        %5131 = vmatpush.bf16.msra.mxu0 0
        %5132 = vmatpush.bf16.msra.mxu0 0
        %5133 = vmatpush.bf16.msra.mxu0 0
        %5134 = vmatpush.bf16.msra.mxu0 %v5122
        %5135 = vmatmul.bf16.gmra.mxu0 %v5125
        %v5136 = vpop.f32.mrf.mxu0
        %v5137 = vadd.f32 0.0, %v5136
        %v5138 = vpop.f32.mrf.mxu0
        %v5139 = vadd.f32 0.0, %v5138
        %5140 = vdwg.mxu0
        %v5143 = vunpack.c.l.b16 %v5087
        %v5144 = vunpack.c.l.b16 %v5088
        %v5145 = vpack.c.b16 %v5144, %v5143
        %5146 = vrot.lane.b32.xlu0 %v3196, 40
        %v5147 = vpop.permute.xlu0 %5146
        %v5150 = vsel %vm2992, %v5145, 0
        %5152 = vmatpush.bf16.msra.mxu0 0
        %5153 = vmatpush.bf16.msra.mxu0 0
        %5154 = vmatpush.bf16.msra.mxu0 0
        %5155 = vmatpush.bf16.msra.mxu0 0
        %5156 = vmatpush.bf16.msra.mxu0 0
        %5157 = vmatpush.bf16.msra.mxu0 0
        %5158 = vmatpush.bf16.msra.mxu0 0
        %5159 = vmatpush.bf16.msra.mxu0 %v5147
        %5160 = vmatmul.bf16.gmra.mxu0 %v5150
        %v5161 = vpop.f32.mrf.mxu0
        %v5162 = vadd.f32 0.0, %v5161
        %v5163 = vpop.f32.mrf.mxu0
        %v5164 = vadd.f32 0.0, %v5163
        %5165 = vdwg.mxu0
        %v5168 = vunpack.c.l.b16 %v5089
        %v5169 = vunpack.c.l.b16 %v5090
        %v5170 = vpack.c.b16 %v5169, %v5168
        %5171 = vrot.lane.b32.xlu0 %v3228, 40
        %v5172 = vpop.permute.xlu0 %5171
        %v5175 = vsel %vm2992, %v5170, 0
        %5177 = vmatpush.bf16.msra.mxu0 0
        %5178 = vmatpush.bf16.msra.mxu0 0
        %5179 = vmatpush.bf16.msra.mxu0 0
        %5180 = vmatpush.bf16.msra.mxu0 0
        %5181 = vmatpush.bf16.msra.mxu0 0
        %5182 = vmatpush.bf16.msra.mxu0 0
        %5183 = vmatpush.bf16.msra.mxu0 0
        %5184 = vmatpush.bf16.msra.mxu0 %v5172
        %5185 = vmatmul.bf16.gmra.mxu0 %v5175
        %v5186 = vpop.f32.mrf.mxu0
        %v5187 = vadd.f32 0.0, %v5186
        %v5188 = vpop.f32.mrf.mxu0
        %v5189 = vadd.f32 0.0, %v5188
        %5190 = vdwg.mxu0
        %5191 = vrot.lane.b32.xlu0 %v3132, 104
        %v5192 = vpop.permute.xlu0 %5191
        %5193 = vrot.lane.b32.xlu0 %v3127, 72
        %v5194 = vpop.permute.xlu0 %5193
        %v5196 = vsel %vm710, %v5192, 0
        %v5199 = vsel %vm710, %v5194, 0
        %5201 = vmatpush.bf16.xpose.msra.mxu0 0
        %5202 = vmatpush.bf16.xpose.msra.mxu0 0
        %5203 = vmatpush.bf16.xpose.msra.mxu0 0
        %5204 = vmatpush.bf16.xpose.msra.mxu0 0
        %5205 = vmatpush.bf16.xpose.msra.mxu0 0
        %5206 = vmatpush.bf16.xpose.msra.mxu0 0
        %5207 = vmatpush.bf16.xpose.msra.mxu0 0
        %5208 = vmatpush.bf16.xpose.msra.mxu0 %v5199
        %5209 = vmatmul.bf16.gmra.mxu0 %v5196
        %v5210 = vpop.f32.mrf.mxu0
        %v5211 = vadd.f32 0.0, %v5210
        %v5212 = vpop.f32.mrf.mxu0
        %v5213 = vadd.f32 0.0, %v5212
        %5214 = vdwg.mxu0
        %5215 = vrot.lane.b32.xlu0 %v3164, 104
        %v5216 = vpop.permute.xlu0 %5215
        %5217 = vrot.lane.b32.xlu0 %v3159, 72
        %v5218 = vpop.permute.xlu0 %5217
        %v5220 = vsel %vm710, %v5216, 0
        %v5223 = vsel %vm710, %v5218, 0
        %5225 = vmatpush.bf16.xpose.msra.mxu0 0
        %5226 = vmatpush.bf16.xpose.msra.mxu0 0
        %5227 = vmatpush.bf16.xpose.msra.mxu0 0
        %5228 = vmatpush.bf16.xpose.msra.mxu0 0
        %5229 = vmatpush.bf16.xpose.msra.mxu0 0
        %5230 = vmatpush.bf16.xpose.msra.mxu0 0
        %5231 = vmatpush.bf16.xpose.msra.mxu0 0
        %5232 = vmatpush.bf16.xpose.msra.mxu0 %v5223
        %5233 = vmatmul.bf16.gmra.mxu0 %v5220
        %v5234 = vpop.f32.mrf.mxu0
        %v5235 = vadd.f32 0.0, %v5234
        %v5236 = vpop.f32.mrf.mxu0
        %v5237 = vadd.f32 0.0, %v5236
        %5238 = vdwg.mxu0
        %5239 = vrot.lane.b32.xlu0 %v3196, 104
        %v5240 = vpop.permute.xlu0 %5239
        %5241 = vrot.lane.b32.xlu0 %v3191, 72
        %v5242 = vpop.permute.xlu0 %5241
        %v5244 = vsel %vm710, %v5240, 0
        %v5247 = vsel %vm710, %v5242, 0
        %5249 = vmatpush.bf16.xpose.msra.mxu0 0
        %5250 = vmatpush.bf16.xpose.msra.mxu0 0
        %5251 = vmatpush.bf16.xpose.msra.mxu0 0
        %5252 = vmatpush.bf16.xpose.msra.mxu0 0
        %5253 = vmatpush.bf16.xpose.msra.mxu0 0
        %5254 = vmatpush.bf16.xpose.msra.mxu0 0
        %5255 = vmatpush.bf16.xpose.msra.mxu0 0
        %5256 = vmatpush.bf16.xpose.msra.mxu0 %v5247
        %5257 = vmatmul.bf16.gmra.mxu0 %v5244
        %v5258 = vpop.f32.mrf.mxu0
        %v5259 = vadd.f32 0.0, %v5258
        %v5260 = vpop.f32.mrf.mxu0
        %v5261 = vadd.f32 0.0, %v5260
        %5262 = vdwg.mxu0
        %5263 = vrot.lane.b32.xlu0 %v3228, 104
        %v5264 = vpop.permute.xlu0 %5263
        %5265 = vrot.lane.b32.xlu0 %v3223, 72
        %v5266 = vpop.permute.xlu0 %5265
        %v5268 = vsel %vm710, %v5264, 0
        %v5271 = vsel %vm710, %v5266, 0
        %5273 = vmatpush.bf16.xpose.msra.mxu0 0
        %5274 = vmatpush.bf16.xpose.msra.mxu0 0
        %5275 = vmatpush.bf16.xpose.msra.mxu0 0
        %5276 = vmatpush.bf16.xpose.msra.mxu0 0
        %5277 = vmatpush.bf16.xpose.msra.mxu0 0
        %5278 = vmatpush.bf16.xpose.msra.mxu0 0
        %5279 = vmatpush.bf16.xpose.msra.mxu0 0
        %5280 = vmatpush.bf16.xpose.msra.mxu0 %v5271
        %5281 = vmatmul.bf16.gmra.mxu0 %v5268
        %v5282 = vpop.f32.mrf.mxu0
        %v5283 = vadd.f32 0.0, %v5282
        %v5284 = vpop.f32.mrf.mxu0
        %v5285 = vadd.f32 0.0, %v5284
        %5286 = vdwg.mxu0
        %v5287 = vsel %vm2992, %v5211, -inf
        %5288 = vmax.xlane.f32.xlu0 %v5287
        %v5289 = vpop.xlane.xlu0 %5288
        %v5290 = vsel %vm2992, %v5213, -inf
        %5291 = vmax.xlane.f32.xlu0 %v5290
        %v5292 = vpop.xlane.xlu0 %5291
        %v5293 = vsel %vm2992, %v5235, -inf
        %5294 = vmax.xlane.f32.xlu0 %v5293
        %v5295 = vpop.xlane.xlu0 %5294
        %v5296 = vsel %vm2992, %v5237, -inf
        %5297 = vmax.xlane.f32.xlu0 %v5296
        %v5298 = vpop.xlane.xlu0 %5297
        %v5299 = vsel %vm2992, %v5259, -inf
        %5300 = vmax.xlane.f32.xlu0 %v5299
        %v5301 = vpop.xlane.xlu0 %5300
        %v5302 = vsel %vm2992, %v5261, -inf
        %5303 = vmax.xlane.f32.xlu0 %v5302
        %v5304 = vpop.xlane.xlu0 %5303
        %v5305 = vsel %vm2992, %v5283, -inf
        %5306 = vmax.xlane.f32.xlu0 %v5305
        %v5307 = vpop.xlane.xlu0 %5306
        %v5308 = vsel %vm2992, %v5285, -inf
        %5309 = vmax.xlane.f32.xlu0 %v5308
        %v5310 = vpop.xlane.xlu0 %5309
        %v5311 = vsub.f32 %v5211, %v5289
        %v5312 = vsub.f32 %v5213, %v5292
        %v5313 = vsub.f32 %v5235, %v5295
        %v5314 = vsub.f32 %v5237, %v5298
        %v5315 = vsub.f32 %v5259, %v5301
        %v5316 = vsub.f32 %v5261, %v5304
        %v5317 = vsub.f32 %v5283, %v5307
        %v5318 = vsub.f32 %v5285, %v5310
        %v5319 = vmul.f32 %v5311, 1.442695
        %v5320 = vpow.pop %v5319
        %v5321 = vmul.f32 %v5312, 1.442695
        %v5322 = vpow.pop %v5321
        %v5323 = vmul.f32 %v5313, 1.442695
        %v5324 = vpow.pop %v5323
        %v5325 = vmul.f32 %v5314, 1.442695
        %v5326 = vpow.pop %v5325
        %v5327 = vmul.f32 %v5315, 1.442695
        %v5328 = vpow.pop %v5327
        %v5329 = vmul.f32 %v5316, 1.442695
        %v5330 = vpow.pop %v5329
        %v5331 = vmul.f32 %v5317, 1.442695
        %v5332 = vpow.pop %v5331
        %v5333 = vmul.f32 %v5318, 1.442695
        %v5334 = vpow.pop %v5333
        %v5335 = vsel %vm2992, %v5320, 0.0
        %5336 = vadd.xlane.f32.xlu0 %v5335
        %v5337 = vpop.xlane.xlu0 %5336
        %v5338 = vsel %vm2992, %v5322, 0.0
        %5339 = vadd.xlane.f32.xlu0 %v5338
        %v5340 = vpop.xlane.xlu0 %5339
        %v5341 = vsel %vm2992, %v5324, 0.0
        %5342 = vadd.xlane.f32.xlu0 %v5341
        %v5343 = vpop.xlane.xlu0 %5342
        %v5344 = vsel %vm2992, %v5326, 0.0
        %5345 = vadd.xlane.f32.xlu0 %v5344
        %v5346 = vpop.xlane.xlu0 %5345
        %v5347 = vsel %vm2992, %v5328, 0.0
        %5348 = vadd.xlane.f32.xlu0 %v5347
        %v5349 = vpop.xlane.xlu0 %5348
        %v5350 = vsel %vm2992, %v5330, 0.0
        %5351 = vadd.xlane.f32.xlu0 %v5350
        %v5352 = vpop.xlane.xlu0 %5351
        %v5353 = vsel %vm2992, %v5332, 0.0
        %5354 = vadd.xlane.f32.xlu0 %v5353
        %v5355 = vpop.xlane.xlu0 %5354
        %v5356 = vsel %vm2992, %v5334, 0.0
        %5357 = vadd.xlane.f32.xlu0 %v5356
        %v5358 = vpop.xlane.xlu0 %5357
        %v5359 = vrcp.pop %v5337
        %v5360 = vrcp.pop %v5340
        %v5361 = vrcp.pop %v5343
        %v5362 = vrcp.pop %v5346
        %v5363 = vrcp.pop %v5349
        %v5364 = vrcp.pop %v5352
        %v5365 = vrcp.pop %v5355
        %v5366 = vrcp.pop %v5358
        %v5367 = vmul.f32 %v5320, %v5359
        %v5368 = vmul.f32 %v5322, %v5360
        %v5369 = vmul.f32 %v5324, %v5361
        %v5370 = vmul.f32 %v5326, %v5362
        %v5371 = vmul.f32 %v5328, %v5363
        %v5372 = vmul.f32 %v5330, %v5364
        %v5373 = vmul.f32 %v5332, %v5365
        %v5374 = vmul.f32 %v5334, %v5366
        %v5375 = vpack.c.bf16 %v5367, %v5367
        %v5376 = vpack.c.bf16 %v5368, %v5368
        %v5377 = vpack.c.bf16 %v5369, %v5369
        %v5378 = vpack.c.bf16 %v5370, %v5370
        %v5379 = vpack.c.bf16 %v5371, %v5371
        %v5380 = vpack.c.bf16 %v5372, %v5372
        %v5381 = vpack.c.bf16 %v5373, %v5373
        %v5382 = vpack.c.bf16 %v5374, %v5374
        %v5385 = vunpack.c.l.b16 %v5375
        %v5386 = vunpack.c.l.b16 %v5376
        %v5387 = vpack.c.b16 %v5386, %v5385
        %5388 = vrot.lane.b32.xlu0 %v3127, 40
        %v5389 = vpop.permute.xlu0 %5388
        %v5392 = vsel %vm2992, %v5387, 0
        %5394 = vmatpush.bf16.msra.mxu0 0
        %5395 = vmatpush.bf16.msra.mxu0 0
        %5396 = vmatpush.bf16.msra.mxu0 0
        %5397 = vmatpush.bf16.msra.mxu0 0
        %5398 = vmatpush.bf16.msra.mxu0 0
        %5399 = vmatpush.bf16.msra.mxu0 0
        %5400 = vmatpush.bf16.msra.mxu0 0
        %5401 = vmatpush.bf16.msra.mxu0 %v5389
        %5402 = vmatmul.bf16.gmra.mxu0 %v5392
        %v5403 = vpop.f32.mrf.mxu0
        %v5404 = vadd.f32 0.0, %v5403
        %v5405 = vpop.f32.mrf.mxu0
        %v5406 = vadd.f32 0.0, %v5405
        %5407 = vdwg.mxu0
        %v5410 = vunpack.c.l.b16 %v5377
        %v5411 = vunpack.c.l.b16 %v5378
        %v5412 = vpack.c.b16 %v5411, %v5410
        %5413 = vrot.lane.b32.xlu0 %v3159, 40
        %v5414 = vpop.permute.xlu0 %5413
        %v5417 = vsel %vm2992, %v5412, 0
        %5419 = vmatpush.bf16.msra.mxu0 0
        %5420 = vmatpush.bf16.msra.mxu0 0
        %5421 = vmatpush.bf16.msra.mxu0 0
        %5422 = vmatpush.bf16.msra.mxu0 0
        %5423 = vmatpush.bf16.msra.mxu0 0
        %5424 = vmatpush.bf16.msra.mxu0 0
        %5425 = vmatpush.bf16.msra.mxu0 0
        %5426 = vmatpush.bf16.msra.mxu0 %v5414
        %5427 = vmatmul.bf16.gmra.mxu0 %v5417
        %v5428 = vpop.f32.mrf.mxu0
        %v5429 = vadd.f32 0.0, %v5428
        %v5430 = vpop.f32.mrf.mxu0
        %v5431 = vadd.f32 0.0, %v5430
        %5432 = vdwg.mxu0
        %v5435 = vunpack.c.l.b16 %v5379
        %v5436 = vunpack.c.l.b16 %v5380
        %v5437 = vpack.c.b16 %v5436, %v5435
        %5438 = vrot.lane.b32.xlu0 %v3191, 40
        %v5439 = vpop.permute.xlu0 %5438
        %v5442 = vsel %vm2992, %v5437, 0
        %5444 = vmatpush.bf16.msra.mxu0 0
        %5445 = vmatpush.bf16.msra.mxu0 0
        %5446 = vmatpush.bf16.msra.mxu0 0
        %5447 = vmatpush.bf16.msra.mxu0 0
        %5448 = vmatpush.bf16.msra.mxu0 0
        %5449 = vmatpush.bf16.msra.mxu0 0
        %5450 = vmatpush.bf16.msra.mxu0 0
        %5451 = vmatpush.bf16.msra.mxu0 %v5439
        %5452 = vmatmul.bf16.gmra.mxu0 %v5442
        %v5453 = vpop.f32.mrf.mxu0
        %v5454 = vadd.f32 0.0, %v5453
        %v5455 = vpop.f32.mrf.mxu0
        %v5456 = vadd.f32 0.0, %v5455
        %5457 = vdwg.mxu0
        %v5460 = vunpack.c.l.b16 %v5381
        %v5461 = vunpack.c.l.b16 %v5382
        %v5462 = vpack.c.b16 %v5461, %v5460
        %5463 = vrot.lane.b32.xlu0 %v3223, 40
        %v5464 = vpop.permute.xlu0 %5463
        %v5467 = vsel %vm2992, %v5462, 0
        %5469 = vmatpush.bf16.msra.mxu0 0
        %5470 = vmatpush.bf16.msra.mxu0 0
        %5471 = vmatpush.bf16.msra.mxu0 0
        %5472 = vmatpush.bf16.msra.mxu0 0
        %5473 = vmatpush.bf16.msra.mxu0 0
        %5474 = vmatpush.bf16.msra.mxu0 0
        %5475 = vmatpush.bf16.msra.mxu0 0
        %5476 = vmatpush.bf16.msra.mxu0 %v5464
        %5477 = vmatmul.bf16.gmra.mxu0 %v5467
        %v5478 = vpop.f32.mrf.mxu0
        %v5479 = vadd.f32 0.0, %v5478
        %v5480 = vpop.f32.mrf.mxu0
        %v5481 = vadd.f32 0.0, %v5480
        %5482 = vdwg.mxu0
        %5491 = vrot.lane.b32.xlu0 %v3944, 8
        %v5492 = vpop.permute.xlu0 %5491
        %5493 = vrot.lane.b32.xlu0 %v3946, 8
        %v5494 = vpop.permute.xlu0 %5493
        %5495 = vrot.lane.b32.xlu0 %v3969, 8
        %v5496 = vpop.permute.xlu0 %5495
        %5497 = vrot.lane.b32.xlu0 %v3971, 8
        %v5498 = vpop.permute.xlu0 %5497
        %5499 = vrot.lane.b32.xlu0 %v3994, 8
        %v5500 = vpop.permute.xlu0 %5499
        %5501 = vrot.lane.b32.xlu0 %v3996, 8
        %v5502 = vpop.permute.xlu0 %5501
        %5503 = vrot.lane.b32.xlu0 %v4019, 8
        %v5504 = vpop.permute.xlu0 %5503
        %5505 = vrot.lane.b32.xlu0 %v4021, 8
        %v5506 = vpop.permute.xlu0 %5505
        %5523 = vrot.lane.b32.xlu0 %v4528, 16
        %v5524 = vpop.permute.xlu0 %5523
        %5525 = vrot.lane.b32.xlu0 %v4530, 16
        %v5526 = vpop.permute.xlu0 %5525
        %5527 = vrot.lane.b32.xlu0 %v4553, 16
        %v5528 = vpop.permute.xlu0 %5527
        %5529 = vrot.lane.b32.xlu0 %v4555, 16
        %v5530 = vpop.permute.xlu0 %5529
        %5531 = vrot.lane.b32.xlu0 %v4578, 16
        %v5532 = vpop.permute.xlu0 %5531
        %5533 = vrot.lane.b32.xlu0 %v4580, 16
        %v5534 = vpop.permute.xlu0 %5533
        %5535 = vrot.lane.b32.xlu0 %v4603, 16
        %v5536 = vpop.permute.xlu0 %5535
        %5537 = vrot.lane.b32.xlu0 %v4605, 16
        %v5538 = vpop.permute.xlu0 %5537
        %5555 = vrot.lane.b32.xlu0 %v5112, 24
        %v5556 = vpop.permute.xlu0 %5555
        %5557 = vrot.lane.b32.xlu0 %v5114, 24
        %v5558 = vpop.permute.xlu0 %5557
        %5559 = vrot.lane.b32.xlu0 %v5137, 24
        %v5560 = vpop.permute.xlu0 %5559
        %5561 = vrot.lane.b32.xlu0 %v5139, 24
        %v5562 = vpop.permute.xlu0 %5561
        %5563 = vrot.lane.b32.xlu0 %v5162, 24
        %v5564 = vpop.permute.xlu0 %5563
        %5565 = vrot.lane.b32.xlu0 %v5164, 24
        %v5566 = vpop.permute.xlu0 %5565
        %5567 = vrot.lane.b32.xlu0 %v5187, 24
        %v5568 = vpop.permute.xlu0 %5567
        %5569 = vrot.lane.b32.xlu0 %v5189, 24
        %v5570 = vpop.permute.xlu0 %5569
        %v5579 = vsel %vm710, %v3368, %v5492
        %v5580 = vsel %vm710, %v3370, %v5494
        %v5581 = vsel %vm710, %v3393, %v5496
        %v5582 = vsel %vm710, %v3395, %v5498
        %v5583 = vsel %vm710, %v3418, %v5500
        %v5584 = vsel %vm710, %v3420, %v5502
        %v5585 = vsel %vm710, %v3443, %v5504
        %v5586 = vsel %vm710, %v3445, %v5506
        %v5587 = vsel %vm2992, %v5579, %v5524
        %v5588 = vsel %vm2992, %v5580, %v5526
        %v5589 = vsel %vm2992, %v5581, %v5528
        %v5590 = vsel %vm2992, %v5582, %v5530
        %v5591 = vsel %vm2992, %v5583, %v5532
        %v5592 = vsel %vm2992, %v5584, %v5534
        %v5593 = vsel %vm2992, %v5585, %v5536
        %v5594 = vsel %vm2992, %v5586, %v5538
        %v5595 = vsel %vm3009, %v5587, %v5556
        %v5596 = vsel %vm3009, %v5588, %v5558
        %v5597 = vsel %vm3009, %v5589, %v5560
        %v5598 = vsel %vm3009, %v5590, %v5562
        %v5599 = vsel %vm3009, %v5591, %v5564
        %v5600 = vsel %vm3009, %v5592, %v5566
        %v5601 = vsel %vm3009, %v5593, %v5568
        %v5602 = vsel %vm3009, %v5594, %v5570
        %5611 = vrot.lane.b32.xlu0 %v4236, 8
        %v5612 = vpop.permute.xlu0 %5611
        %5613 = vrot.lane.b32.xlu0 %v4238, 8
        %v5614 = vpop.permute.xlu0 %5613
        %5615 = vrot.lane.b32.xlu0 %v4261, 8
        %v5616 = vpop.permute.xlu0 %5615
        %5617 = vrot.lane.b32.xlu0 %v4263, 8
        %v5618 = vpop.permute.xlu0 %5617
        %5619 = vrot.lane.b32.xlu0 %v4286, 8
        %v5620 = vpop.permute.xlu0 %5619
        %5621 = vrot.lane.b32.xlu0 %v4288, 8
        %v5622 = vpop.permute.xlu0 %5621
        %5623 = vrot.lane.b32.xlu0 %v4311, 8
        %v5624 = vpop.permute.xlu0 %5623
        %5625 = vrot.lane.b32.xlu0 %v4313, 8
        %v5626 = vpop.permute.xlu0 %5625
        %5643 = vrot.lane.b32.xlu0 %v4820, 16
        %v5644 = vpop.permute.xlu0 %5643
        %5645 = vrot.lane.b32.xlu0 %v4822, 16
        %v5646 = vpop.permute.xlu0 %5645
        %5647 = vrot.lane.b32.xlu0 %v4845, 16
        %v5648 = vpop.permute.xlu0 %5647
        %5649 = vrot.lane.b32.xlu0 %v4847, 16
        %v5650 = vpop.permute.xlu0 %5649
        %5651 = vrot.lane.b32.xlu0 %v4870, 16
        %v5652 = vpop.permute.xlu0 %5651
        %5653 = vrot.lane.b32.xlu0 %v4872, 16
        %v5654 = vpop.permute.xlu0 %5653
        %5655 = vrot.lane.b32.xlu0 %v4895, 16
        %v5656 = vpop.permute.xlu0 %5655
        %5657 = vrot.lane.b32.xlu0 %v4897, 16
        %v5658 = vpop.permute.xlu0 %5657
        %5675 = vrot.lane.b32.xlu0 %v5404, 24
        %v5676 = vpop.permute.xlu0 %5675
        %5677 = vrot.lane.b32.xlu0 %v5406, 24
        %v5678 = vpop.permute.xlu0 %5677
        %5679 = vrot.lane.b32.xlu0 %v5429, 24
        %v5680 = vpop.permute.xlu0 %5679
        %5681 = vrot.lane.b32.xlu0 %v5431, 24
        %v5682 = vpop.permute.xlu0 %5681
        %5683 = vrot.lane.b32.xlu0 %v5454, 24
        %v5684 = vpop.permute.xlu0 %5683
        %5685 = vrot.lane.b32.xlu0 %v5456, 24
        %v5686 = vpop.permute.xlu0 %5685
        %5687 = vrot.lane.b32.xlu0 %v5479, 24
        %v5688 = vpop.permute.xlu0 %5687
        %5689 = vrot.lane.b32.xlu0 %v5481, 24
        %v5690 = vpop.permute.xlu0 %5689
        %v5699 = vsel %vm710, %v3652, %v5612
        %v5700 = vsel %vm710, %v3654, %v5614
        %v5701 = vsel %vm710, %v3677, %v5616
        %v5702 = vsel %vm710, %v3679, %v5618
        %v5703 = vsel %vm710, %v3702, %v5620
        %v5704 = vsel %vm710, %v3704, %v5622
        %v5705 = vsel %vm710, %v3727, %v5624
        %v5706 = vsel %vm710, %v3729, %v5626
        %v5707 = vsel %vm2992, %v5699, %v5644
        %v5708 = vsel %vm2992, %v5700, %v5646
        %v5709 = vsel %vm2992, %v5701, %v5648
        %v5710 = vsel %vm2992, %v5702, %v5650
        %v5711 = vsel %vm2992, %v5703, %v5652
        %v5712 = vsel %vm2992, %v5704, %v5654
        %v5713 = vsel %vm2992, %v5705, %v5656
        %v5714 = vsel %vm2992, %v5706, %v5658
        %v5715 = vsel %vm3009, %v5707, %v5676
        %v5716 = vsel %vm3009, %v5708, %v5678
        %v5717 = vsel %vm3009, %v5709, %v5680
        %v5718 = vsel %vm3009, %v5710, %v5682
        %v5719 = vsel %vm3009, %v5711, %v5684
        %v5720 = vsel %vm3009, %v5712, %v5686
        %v5721 = vsel %vm3009, %v5713, %v5688
        %v5722 = vsel %vm3009, %v5714, %v5690
        %v5723 = vpack.c.bf16 %v5596, %v5595
        %v5724 = vpack.c.bf16 %v5598, %v5597
        %v5725 = vpack.c.bf16 %v5600, %v5599
        %v5726 = vpack.c.bf16 %v5602, %v5601
        %v5727 = vld [vmem:[#allocation13] sm:$0xf]
        %v5728 = vld [vmem:[#allocation13 + $0x4] sm:$0xf]
        %v5729 = vld [vmem:[#allocation13 + $0x8] sm:$0xf]
        %v5730 = vld [vmem:[#allocation13 + $0xc] sm:$0xf]
        %v5735 = vunpack.c.l.b16 %v5727
        %v5736 = vunpack.c.l.b16 %v5728
        %v5737 = vunpack.c.l.b16 %v5729
        %v5738 = vunpack.c.l.b16 %v5730
        %v5739 = vpack.c.b16 %v5736, %v5735
        %v5740 = vpack.c.b16 %v5738, %v5737
        %v5744 = vsel %vm469, %v5723, 0
        %v5747 = vsel %vm469, %v5724, 0
        %v5750 = vsel %vm469, %v5725, 0
        %v5753 = vsel %vm469, %v5726, 0
        %5755 = vmatpush.bf16.msra.mxu0 0
        %5756 = vmatpush.bf16.msra.mxu0 0
        %5757 = vmatpush.bf16.msra.mxu0 0
        %5758 = vmatpush.bf16.msra.mxu0 0
        %5759 = vmatpush.bf16.msra.mxu0 0
        %5760 = vmatpush.bf16.msra.mxu0 0
        %5761 = vmatpush.bf16.msra.mxu0 %v5740
        %5762 = vmatpush.bf16.msra.mxu0 %v5739
        %5763 = vmatmul.bf16.gmra.mxu0 %v5744
        %v5764 = vpop.f32.mrf.mxu0
        %v5765 = vadd.f32 0.0, %v5764
        %v5766 = vpop.f32.mrf.mxu0
        %v5767 = vadd.f32 0.0, %v5766
        %5768 = vmatmul.bf16.gmra.mxu0 %v5747
        %v5769 = vpop.f32.mrf.mxu0
        %v5770 = vadd.f32 0.0, %v5769
        %v5771 = vpop.f32.mrf.mxu0
        %v5772 = vadd.f32 0.0, %v5771
        %5773 = vmatmul.bf16.gmra.mxu0 %v5750
        %v5774 = vpop.f32.mrf.mxu0
        %v5775 = vadd.f32 0.0, %v5774
        %v5776 = vpop.f32.mrf.mxu0
        %v5777 = vadd.f32 0.0, %v5776
        %5778 = vmatmul.bf16.gmra.mxu0 %v5753
        %v5779 = vpop.f32.mrf.mxu0
        %v5780 = vadd.f32 0.0, %v5779
        %v5781 = vpop.f32.mrf.mxu0
        %v5782 = vadd.f32 0.0, %v5781
        %5783 = vdwg.mxu0
        %v5784 = vpack.c.bf16 %v5716, %v5715
        %v5785 = vpack.c.bf16 %v5718, %v5717
        %v5786 = vpack.c.bf16 %v5720, %v5719
        %v5787 = vpack.c.bf16 %v5722, %v5721
        %v5789 = vsel %vm469, %v5784, 0
        %v5792 = vsel %vm469, %v5785, 0
        %v5795 = vsel %vm469, %v5786, 0
        %v5798 = vsel %vm469, %v5787, 0
        %5800 = vmatpush.bf16.msra.mxu0 0
        %5801 = vmatpush.bf16.msra.mxu0 0
        %5802 = vmatpush.bf16.msra.mxu0 0
        %5803 = vmatpush.bf16.msra.mxu0 0
        %5804 = vmatpush.bf16.msra.mxu0 0
        %5805 = vmatpush.bf16.msra.mxu0 0
        %5806 = vmatpush.bf16.msra.mxu0 %v5740
        %5807 = vmatpush.bf16.msra.mxu0 %v5739
        %5808 = vmatmul.bf16.gmra.mxu0 %v5789
        %v5809 = vpop.f32.mrf.mxu0
        %v5810 = vadd.f32 0.0, %v5809
        %v5811 = vpop.f32.mrf.mxu0
        %v5812 = vadd.f32 0.0, %v5811
        %5813 = vmatmul.bf16.gmra.mxu0 %v5792
        %v5814 = vpop.f32.mrf.mxu0
        %v5815 = vadd.f32 0.0, %v5814
        %v5816 = vpop.f32.mrf.mxu0
        %v5817 = vadd.f32 0.0, %v5816
        %5818 = vmatmul.bf16.gmra.mxu0 %v5795
        %v5819 = vpop.f32.mrf.mxu0
        %v5820 = vadd.f32 0.0, %v5819
        %v5821 = vpop.f32.mrf.mxu0
        %v5822 = vadd.f32 0.0, %v5821
        %5823 = vmatmul.bf16.gmra.mxu0 %v5798
        %v5824 = vpop.f32.mrf.mxu0
        %v5825 = vadd.f32 0.0, %v5824
        %v5826 = vpop.f32.mrf.mxu0
        %v5827 = vadd.f32 0.0, %v5826
        %5828 = vdwg.mxu0
        %v5829 = vadd.f32 %v3084, %v5765
        %v5830 = vadd.f32 %v3086, %v5767
        %v5831 = vadd.f32 %v3094, %v5770
        %v5832 = vadd.f32 %v3096, %v5772
        %v5833 = vadd.f32 %v3104, %v5775
        %v5834 = vadd.f32 %v3106, %v5777
        %v5835 = vadd.f32 %v3114, %v5780
        %v5836 = vadd.f32 %v3116, %v5782
        %v5837 = vld [vmem:[%s4] sm:$0x1]
        %v5839 = vperm.slane %v5837, 0
        %v5841 = vadd.f32 %v5829, %v5839
        %v5842 = vadd.f32 %v5830, %v5839
        %v5843 = vadd.f32 %v5831, %v5839
        %v5844 = vadd.f32 %v5832, %v5839
        %v5845 = vadd.f32 %v5833, %v5839
        %v5846 = vadd.f32 %v5834, %v5839
        %v5847 = vadd.f32 %v5835, %v5839
        %v5848 = vadd.f32 %v5836, %v5839
        %5849 = vst.msk [vmem:[%s425] sm:$0xff] %vm469, %v5841
        %5850 = vst.msk [vmem:[%s425 + $0x8] sm:$0xff] %vm469, %v5842
        %5851 = vst.msk [vmem:[%s425 + $0x20] sm:$0xff] %vm469, %v5843
        %5852 = vst.msk [vmem:[%s425 + $0x28] sm:$0xff] %vm469, %v5844
        %5853 = vst.msk [vmem:[%s425 + $0x40] sm:$0xff] %vm469, %v5845
        %5854 = vst.msk [vmem:[%s425 + $0x48] sm:$0xff] %vm469, %v5846
        %5855 = vst.msk [vmem:[%s425 + $0x60] sm:$0xff] %vm469, %v5847
        %5856 = vst.msk [vmem:[%s425 + $0x68] sm:$0xff] %vm469, %v5848
        %v5857 = vadd.f32 %v3089, %v5810
        %v5858 = vadd.f32 %v3091, %v5812
        %v5859 = vadd.f32 %v3099, %v5815
        %v5860 = vadd.f32 %v3101, %v5817
        %v5861 = vadd.f32 %v3109, %v5820
        %v5862 = vadd.f32 %v3111, %v5822
        %v5863 = vadd.f32 %v3119, %v5825
        %v5864 = vadd.f32 %v3121, %v5827
        %v5865 = vld [vmem:[%s4] sm:$0x1]
        %v5867 = vperm.slane %v5865, 0
        %v5869 = vadd.f32 %v5857, %v5867
        %v5870 = vadd.f32 %v5858, %v5867
        %v5871 = vadd.f32 %v5859, %v5867
        %v5872 = vadd.f32 %v5860, %v5867
        %v5873 = vadd.f32 %v5861, %v5867
        %v5874 = vadd.f32 %v5862, %v5867
        %v5875 = vadd.f32 %v5863, %v5867
        %v5876 = vadd.f32 %v5864, %v5867
        %5877 = vst.msk [vmem:[%s425 + $0x10] sm:$0xff] %vm469, %v5869
        %5878 = vst.msk [vmem:[%s425 + $0x18] sm:$0xff] %vm469, %v5870
        %5879 = vst.msk [vmem:[%s425 + $0x30] sm:$0xff] %vm469, %v5871
        %5880 = vst.msk [vmem:[%s425 + $0x38] sm:$0xff] %vm469, %v5872
        %5881 = vst.msk [vmem:[%s425 + $0x50] sm:$0xff] %vm469, %v5873
        %5882 = vst.msk [vmem:[%s425 + $0x58] sm:$0xff] %vm469, %v5874
        %5883 = vst.msk [vmem:[%s425 + $0x70] sm:$0xff] %vm469, %v5875
        %5884 = vst.msk [vmem:[%s425 + $0x78] sm:$0xff] %vm469, %v5876
        %s5885 = sand.u32 %s209, 1
        %s5886 = scalar_lea.sflag [#allocation4], %s5885
        %s5887 = sand.u32 %s209, 1
        %s5888 = smul.addr %s5887, 128
        %s5889 = scalar_lea.vmem [#allocation14], %s5888
        // Predicated region
        $region81: #{tpu_custom_call.1} parent=51 // pred_check
          %p5890 = pneg %p219
        $region82: #{tpu_custom_call.1} parent=51 // pred_check_branch
          %5892 = sbr.rel (%p5890) target = $region84
        $region83: #{tpu_custom_call.1} parent=51 // pred_region
          %s5893 = smul.u32 4, %s28
          %5895 = vsyncadd %s5886, 0
          %s5896 = smul.addr %s5893, 4
          %s5897 = smul.addr %s5896, 8
          %s5898 = scalar_lea.hbm %s8, %s5897
          %s5899 = sshll.u32 %s5889, 4
          %s5900 = int_to_ptr.vmem [resolvable:$true] %s5899
          %s5901 = sshll.u32 %s5898, 4
          %s5902 = int_to_ptr.hbm [resolvable:$true] %s5901
          %5907 = dma.vmem_to_hbm [thread:$0]  %s5900, 2048, %s5902, %s5886, 128, 128, 8
        $region84: #{tpu_custom_call.1} parent=51 // pred_fallthru
          _
      $region52: #{tpu_custom_call.1} parent=5 // pred_fallthru
        _
      %p5908 = scmp.le.s32.totalorder 2, %s23
      // Predicated region
      $region85: #{tpu_custom_call.1} parent=5 // pred_check
        %p5909 = pneg %p5908
      $region86: #{tpu_custom_call.1} parent=5 // pred_check_branch
        %5911 = sbr.rel (%p5909) target = $region88
      $region87: #{tpu_custom_call.1} parent=5 // pred_region
        %s5912 = ssub.s32 %s23, 2
        // Predicated region
        $region89: #{tpu_custom_call.1} parent=87 // pred_check
          %p5913 = pneg %p225
        $region90: #{tpu_custom_call.1} parent=87 // pred_check_branch
          %5915 = sbr.rel (%p5913) target = $region92
        $region91: #{tpu_custom_call.1} parent=87 // pred_region
          %s5916 = sand.u32 %s210, 1
          %s5917 = scalar_lea.sflag [#allocation4], %s5916
          %s5918 = sand.u32 %s210, 1
          %s5919 = smul.addr %s5918, 128
          %s5920 = scalar_lea.vmem [#allocation14], %s5919
          %5922 = dma.done %s5917, 2048
        $region92: #{tpu_custom_call.1} parent=87 // pred_fallthru
          _
      $region88: #{tpu_custom_call.1} parent=5 // pred_fallthru
        _
    $region6: #{tpu_custom_call.1} parent=1 // loop_footer
      %s27 = sadd.s32 1, %s23
    $region7: #{tpu_custom_call.1} parent=1 // loop_footer_branch
      %22 = sbr.rel target = $region3
    $region8: #{tpu_custom_call.1} parent=1 // loop_exit
      _
    %5923 = vsyncpa [#allocation3], 1
    %s5924 = scalar_lea.sflag [#allocation3], 1
    %5925 = vsyncpa %s5924, 1
    %5926 = vsyncpa [#allocation6], 1
    %5927 = vsyncpa [#allocation9], 1
    %5928 = vsyncpa [#allocation12], 1
    %5929 = vsyncpa [#allocation4], 1
    %s5930 = scalar_lea.sflag [#allocation4], 1
    %5931 = vsyncpa %s5930, 1

</llo_original>
